<compile_context>
chip_gen: v6e
topology: v6e:2x2x1
jax: 0.10.0
libtpu: 0.0.40
codegen_flags: <defaults>
</compile_context>

<pallas_src>
import functools
import math

import jax
import jax.numpy as jnp
from jax.experimental import pallas as pl
from jax.experimental.pallas import tpu as pltpu

EPS = 1e-3                      # matches torch.nn.BatchNorm2d(eps=0.001)
COMPUTE_DTYPE = jnp.bfloat16    # activations / weights feeding the MXU

MAX_TILE_K = 2048               # above this, split K into 512-wide MXU blocks
SPLIT_TILE_K = 512
TILE_M_CANDIDATES = (2048, 1024, 512, 256, 128)
VMEM_STEP_BUDGET = 20 * 1024 * 1024   # target bytes for one pipelined step
VMEM_LIMIT_CAP = 40 * 1024 * 1024     # safe on v7x (64 MiB physical VMEM)


# ----------------------------- Pallas kernels ------------------------------ #

def _gemm_bn_kernel(a_ref, w_ref, b_ref, o_ref, acc_ref, *, relu):
    """(tile_m, tile_k) @ (tile_k, tile_n) accumulated in f32; epilogue = bias(+ReLU)."""
    @pl.when(pl.program_id(2) == 0)
    def _():
        acc_ref[...] = jnp.zeros_like(acc_ref)

    acc_ref[...] += jnp.dot(a_ref[...], w_ref[...],
                            preferred_element_type=jnp.float32)

    @pl.when(pl.program_id(2) == pl.num_programs(2) - 1)
    def _():
        out = acc_ref[...] + b_ref[...]
        if relu:
            out = jnp.maximum(out, 0.0)
        o_ref[...] = out.astype(o_ref.dtype)


def _gemm_bn_res_kernel(a_ref, w_ref, b_ref, r_ref, o_ref, acc_ref, *, relu):
    """conv2 of a Residual block: relu(BN(conv(y)) + shortcut), fully fused."""
    @pl.when(pl.program_id(2) == 0)
    def _():
        acc_ref[...] = jnp.zeros_like(acc_ref)

    acc_ref[...] += jnp.dot(a_ref[...], w_ref[...],
                            preferred_element_type=jnp.float32)

    @pl.when(pl.program_id(2) == pl.num_programs(2) - 1)
    def _():
        out = acc_ref[...] + b_ref[...] + r_ref[...].astype(jnp.float32)
        if relu:
            out = jnp.maximum(out, 0.0)
        o_ref[...] = out.astype(o_ref.dtype)


def _maxpool_kernel(ee_ref, eo_ref, oe_ref, oo_ref, o_ref):
    """3x3 stride-2 max pool from the four parity sub-grids (unit-stride taps)."""
    ho = o_ref.shape[1]
    wo = o_ref.shape[2]
    ee = ee_ref[...]              # (1, ho+1, wo+1, C)
    eo = eo_ref[...]              # (1, ho+1, wo,   C)
    oe = oe_ref[...]              # (1, ho,   wo+1, C)
    m = oo_ref[...]               # (1, ho,   wo,   C)
    m = jnp.maximum(m, ee[:, :ho, :wo, :])
    m = jnp.maximum(m, ee[:, :ho, 1:, :])
    m = jnp.maximum(m, ee[:, 1:, :wo, :])
    m = jnp.maximum(m, ee[:, 1:, 1:, :])
    m = jnp.maximum(m, eo[:, :ho, :, :])
    m = jnp.maximum(m, eo[:, 1:, :, :])
    m = jnp.maximum(m, oe[:, :, :wo, :])
    m = jnp.maximum(m, oe[:, :, 1:, :])
    o_ref[...] = m


# ------------------------------- helpers ----------------------------------- #

def _round_up(v, m):
    return (v + m - 1) // m * m


def _cdiv(a, b):
    return -(-a // b)


def _choose_tile_n(cout):
    if cout % 256 == 0:
        return 256
    if cout % 128 == 0:
        return 128
    return cout                   # full-extent lane block: no Cout padding


def _choose_k_tiling(kk):
    if kk <= MAX_TILE_K:
        return kk, kk             # single full-extent K block: no padding
    return _round_up(kk, SPLIT_TILE_K), SPLIT_TILE_K


def _choose_tile_m(m, tile_k, tile_n, has_res):
    def step_bytes(t):
        b = 2 * (t * tile_k + tile_k * tile_n + t * tile_n)   # bf16 streams
        if has_res:
            b += 2 * t * tile_n
        return 2 * b + 4 * t * tile_n                         # 2x buffers + f32 acc
    for t in TILE_M_CANDIDATES:
        if step_bytes(t) <= VMEM_STEP_BUDGET:
            return m if m <= t else t
    return min(m, TILE_M_CANDIDATES[-1])


def _compiler_params(dim_sem, block_bytes, scratch_bytes=0):
    # Always set an explicit VMEM limit: v5e's scoped default is only 16 MiB,
    # and v7x's physical VMEM is 64 MiB, so cap the request.
    est = 2 * block_bytes + scratch_bytes + (4 << 20)
    limit = int(min(max(est, 16 << 20), VMEM_LIMIT_CAP))
    return pltpu.CompilerParams(dimension_semantics=dim_sem,
                                vmem_limit_bytes=limit)


def _im2col(x, k, s, p):
    """x: NHWC -> patches (N*Ho*Wo, k*k*Cin), ordered (kh, kw, cin)."""
    n, h, w, c = x.shape
    ho = (h + 2 * p - k) // s + 1
    wo = (w + 2 * p - k) // s + 1
    xp = jnp.pad(x, ((0, 0), (p, p), (p, p), (0, 0)))
    cols = []
    for i in range(k):
        for j in range(k):
            cols.append(xp[:, i:i + (ho - 1) * s + 1:s, j:j + (wo - 1) * s + 1:s, :])
    patches = jnp.concatenate(cols, axis=-1)          # (N, Ho, Wo, k*k*Cin)
    return patches.reshape(n * ho * wo, k * k * c), (n, ho, wo)


def conv_bn_act(x, params, *, k, s, p, relu, residual=None):
    """Fused Conv2d(bias=False) + BatchNorm2d(eps=1e-3) (+ residual add) + ReLU.

    x / residual: NHWC in COMPUTE_DTYPE.  Returns NHWC in COMPUTE_DTYPE.
    """
    a, (n, ho, wo) = _im2col(x, k, s, p)
    m, kk = a.shape
    cout = params["w"].shape[-1]

    # Fold the BN scale into the weight so the epilogue is just bias(+res,+relu).
    scale = params["gamma"] / jnp.sqrt(params["var"] + EPS)
    w = params["w"].astype(jnp.float32).reshape(kk, cout) * scale[None, :]
    bias = (params["beta"] - params["mean"] * scale).reshape(1, cout)
    bias = bias.astype(jnp.float32)

    kp, tile_k = _choose_k_tiling(kk)
    tile_n = _choose_tile_n(cout)

    a = a.astype(COMPUTE_DTYPE)
    wq = w.astype(COMPUTE_DTYPE)
    if kp != kk:                     # zero-pad K only when K is actually split
        a = jnp.pad(a, ((0, 0), (0, kp - kk)))
        wq = jnp.pad(wq, ((0, kp - kk), (0, 0)))

    has_res = residual is not None
    tile_m = _choose_tile_m(m, tile_k, tile_n, has_res)

    n_m = _cdiv(m, tile_m)
    n_n = _cdiv(cout, tile_n)
    n_k = kp // tile_k
    grid = (n_m, n_n, n_k)

    in_specs = [
        pl.BlockSpec((tile_m, tile_k), lambda i, j, kdx: (i, kdx)),
        pl.BlockSpec((tile_k, tile_n), lambda i, j, kdx: (kdx, j)),
        pl.BlockSpec((1, tile_n), lambda i, j, kdx: (0, j)),
    ]
    args = [a, wq, bias]
    kernel = functools.partial(_gemm_bn_kernel, relu=relu)

    if has_res:
        r = residual.astype(COMPUTE_DTYPE).reshape(m, cout)
        in_specs.append(pl.BlockSpec((tile_m, tile_n), lambda i, j, kdx: (i, j)))
        args.append(r)
        kernel = functools.partial(_gemm_bn_res_kernel, relu=relu)

    block_bytes = (tile_m * tile_k * 2 + tile_k * tile_n * 2 + tile_n * 4
                   + tile_m * tile_n * 2
                   + (tile_m * tile_n * 2 if has_res else 0))
    scratch_bytes = tile_m * tile_n * 4

    # Honest byte counts: A is re-fetched per Cout block, W per M block, the
    # output / residual / bias move once.
    bytes_accessed = (n_n * m * kp * 2 + n_m * kp * cout * 2 + cout * 4
                      + m * cout * 2 + (m * cout * 2 if has_res else 0))
    cost = pl.CostEstimate(flops=2 * m * kk * cout, transcendentals=0,
                           bytes_accessed=int(bytes_accessed))

    out = pl.pallas_call(
        kernel,
        grid=grid,
        in_specs=in_specs,
        out_specs=pl.BlockSpec((tile_m, tile_n), lambda i, j, kdx: (i, j)),
        out_shape=jax.ShapeDtypeStruct((m, cout), COMPUTE_DTYPE),
        scratch_shapes=[pltpu.VMEM((tile_m, tile_n), jnp.float32)],
        compiler_params=_compiler_params(
            ("parallel", "parallel", "arbitrary"), block_bytes, scratch_bytes),
        cost_estimate=cost,
    )(*args)

    return out.reshape(n, ho, wo, cout)


def maxpool_3x3_s2_p1(x):
    """MaxPool2d(kernel_size=3, stride=2, padding=1) on NHWC input.

    Every 3x3/stride-2 window is the max of 9 taps that are unit-stride shifted
    windows of the four (even/odd row, even/odd col) parity sub-grids, so the
    kernel reads ~1x the activation instead of a 9x HBM window stack.
    """
    n, h, w, c = x.shape
    p = 1
    ho = (h + 2 * p - 3) // 2 + 1
    wo = (w + 2 * p - 3) // 2 + 1
    xp = jnp.pad(x, ((0, 0), (p, p), (p, p), (0, 0)), constant_values=-jnp.inf)

    ee = xp[:, 0:2 * ho + 1:2, 0:2 * wo + 1:2, :]   # (N, ho+1, wo+1, C)
    eo = xp[:, 0:2 * ho + 1:2, 1:2 * wo:2, :]       # (N, ho+1, wo,   C)
    oe = xp[:, 1:2 * ho:2, 0:2 * wo + 1:2, :]       # (N, ho,   wo+1, C)
    oo = xp[:, 1:2 * ho:2, 1:2 * wo:2, :]           # (N, ho,   wo,   C)

    itemsize = jnp.dtype(x.dtype).itemsize
    block_bytes = itemsize * c * ((ho + 1) * (wo + 1) + (ho + 1) * wo
                                  + ho * (wo + 1) + 2 * ho * wo)

    out = pl.pallas_call(
        _maxpool_kernel,
        grid=(n,),
        in_specs=[
            pl.BlockSpec((1, ho + 1, wo + 1, c), lambda b: (b, 0, 0, 0)),
            pl.BlockSpec((1, ho + 1, wo, c), lambda b: (b, 0, 0, 0)),
            pl.BlockSpec((1, ho, wo + 1, c), lambda b: (b, 0, 0, 0)),
            pl.BlockSpec((1, ho, wo, c), lambda b: (b, 0, 0, 0)),
        ],
        out_specs=pl.BlockSpec((1, ho, wo, c), lambda b: (b, 0, 0, 0)),
        out_shape=jax.ShapeDtypeStruct((n, ho, wo, c), x.dtype),
        compiler_params=_compiler_params(("parallel",), block_bytes),
    )(ee, eo, oe, oo)
    return out


# ------------------------------ parameters --------------------------------- #

def init_conv_params(key, cin, cout, k):
    k1, k2, k3, k4, k5 = jax.random.split(key, 5)
    fan_in = k * k * cin
    return dict(
        w=jax.random.normal(k1, (k, k, cin, cout), jnp.float32) / math.sqrt(fan_in),
        gamma=1.0 + 0.1 * jax.random.normal(k2, (cout,), jnp.float32),
        beta=0.1 * jax.random.normal(k3, (cout,), jnp.float32),
        mean=0.1 * jax.random.normal(k4, (cout,), jnp.float32),
        var=jax.random.uniform(k5, (cout,), jnp.float32, minval=0.5, maxval=1.5),
    )


def init_residual_params(key, cin, cout, s):
    keys = jax.random.split(key, 3)
    params = dict(conv1=init_conv_params(keys[0], cin, cout, 3),
                  conv2=init_conv_params(keys[1], cout, cout, 3))
    if s != 1 or cin != cout:          # downsample / channel-change shortcut
        params["conv3"] = init_conv_params(keys[2], cin, cout, 1)
    return params


def init_resnet_params(key, filters):
    keys = jax.random.split(key, 10)
    return dict(
        p1=[init_conv_params(keys[0], filters[0], filters[1], 7)],
        p2=[init_residual_params(keys[1], filters[1], filters[1], 1),
            init_residual_params(keys[2], filters[1], filters[1], 1)],
        p3=[init_residual_params(keys[3], filters[1], filters[2], 2),
            init_residual_params(keys[4], filters[2], filters[2], 1)],
        p4=[init_residual_params(keys[5], filters[2], filters[3], 2),
            init_residual_params(keys[6], filters[3], filters[3], 1)],
        p5=[init_residual_params(keys[7], filters[3], filters[4], 2),
            init_residual_params(keys[8], filters[4], filters[4], 1)],
    )


# ------------------------------ forward pass -------------------------------- #

STAGE_STRIDES = dict(p2=(1, 1), p3=(2, 1), p4=(2, 1), p5=(2, 1))  # static config


def residual_forward(x, params, *, s):
    y = conv_bn_act(x, params["conv1"], k=3, s=s, p=1, relu=True)
    if "conv3" in params:
        shortcut = conv_bn_act(x, params["conv3"], k=1, s=s, p=0, relu=False)
    else:
        shortcut = x
    # conv2 (BN, identity act) + shortcut add + final ReLU, fused in one kernel
    # (the relu flag applies AFTER the residual add, matching relu(x + y)).
    return conv_bn_act(y, params["conv2"], k=3, s=1, p=1, relu=True,
                       residual=shortcut)


def resnet_forward(x_nchw, params):
    x = jnp.transpose(x_nchw, (0, 2, 3, 1)).astype(COMPUTE_DTYPE)  # NCHW -> NHWC

    p1 = conv_bn_act(x, params["p1"][0], k=7, s=2, p=3, relu=True)

    feats = {"p1": p1}
    cur = maxpool_3x3_s2_p1(p1)
    for stage in ("p2", "p3", "p4", "p5"):
        for rp, s in zip(params[stage], STAGE_STRIDES[stage]):
            cur = residual_forward(cur, rp, s=s)
        feats[stage] = cur

    to_nchw = lambda t: jnp.transpose(t.astype(jnp.float32), (0, 3, 1, 2))
    return tuple(to_nchw(feats[k]) for k in ("p1", "p2", "p3", "p4", "p5"))


# ---------------------------------- main ------------------------------------ #

if __name__ == "__main__":
    key = jax.random.PRNGKey(0)
    k_x, k_p = jax.random.split(key)

    filters = [4, 8, 16, 32, 64]            # small synthetic config
    x = jax.random.normal(k_x, (2, 4, 16, 16), jnp.float32)  # NCHW like PyTorch

    params = init_resnet_params(k_p, filters)

    forward = jax.jit(resnet_forward)        # single compiled program
    outs = jax.block_until_ready(forward(x, params))

    expected = [
        (2, filters[1], 8, 8),   # p1
        (2, filters[1], 4, 4),   # p2
        (2, filters[2], 2, 2),   # p3
        (2, filters[3], 1, 1),   # p4
        (2, filters[4], 1, 1),   # p5
    ]
    for o, e in zip(outs, expected):
        assert o.shape == e, (o.shape, e)
        assert bool(jnp.all(jnp.isfinite(o)))

    print("KERNEL_OK")
</pallas_src>

<mosaic_0001>
module attributes {stable_mosaic.version = 11 : i64} {
  func.func @_gemm_bn_kernel(%arg0: i32, %arg1: i32, %arg2: i32, %arg3: memref<128x196xbf16, #tpu.memory_space<vmem>>, %arg4: memref<196x8xbf16, #tpu.memory_space<vmem>>, %arg5: memref<1x8xf32, #tpu.memory_space<vmem>>, %arg6: memref<128x8xbf16, #tpu.memory_space<vmem>>, %arg7: memref<128x8xf32, #tpu.memory_space<vmem>>) attributes {dimension_semantics = [#tpu.dimension_semantics<parallel>, #tpu.dimension_semantics<parallel>, #tpu.dimension_semantics<arbitrary>], iteration_bounds = array<i64: 1, 1, 1>, scalar_prefetch = 0 : i64, scratch_operands = 1 : i64, tpu.core_type = #tpu.core_type<tc>, window_params = [{transform_indices = @transform_0, window_bounds = array<i64: 128, 196>}, {transform_indices = @transform_1, window_bounds = array<i64: 196, 8>}, {transform_indices = @transform_2, window_bounds = array<i64: 1, 8>}, {transform_indices = @transform_3, window_bounds = array<i64: 128, 8>}]} {
    %c0_i32 = arith.constant 0 : i32
    %0 = arith.cmpi eq, %arg2, %c0_i32 : i32
    %1 = arith.extui %0 : i1 to i32
    %c0_i32_0 = arith.constant 0 : i32
    %2 = arith.cmpi ne, %1, %c0_i32_0 : i32
    scf.if %2 {
      %cst_10 = arith.constant 0.000000e+00 : f32
      %12 = vector.broadcast %cst_10 : f32 to vector<128x8xf32>
      %c0_11 = arith.constant 0 : index
      %c0_12 = arith.constant 0 : index
      %13 = vector.load %arg7[%c0_11, %c0_12] : memref<128x8xf32, #tpu.memory_space<vmem>>, vector<128x8xf32>
      tpu.vector_store %arg7[%c0_11, %c0_12], %12 {strides = array<i32>} : memref<128x8xf32, #tpu.memory_space<vmem>>, vector<128x8xf32>,
    } else {
    }
    %c0 = arith.constant 0 : index
    %c0_1 = arith.constant 0 : index
    %3 = vector.load %arg7[%c0, %c0_1] : memref<128x8xf32, #tpu.memory_space<vmem>>, vector<128x8xf32>
    %c0_2 = arith.constant 0 : index
    %c0_3 = arith.constant 0 : index
    %4 = vector.load %arg3[%c0_2, %c0_3] : memref<128x196xbf16, #tpu.memory_space<vmem>>, vector<128x196xbf16>
    %c0_4 = arith.constant 0 : index
    %c0_5 = arith.constant 0 : index
    %5 = vector.load %arg4[%c0_4, %c0_5] : memref<196x8xbf16, #tpu.memory_space<vmem>>, vector<196x8xbf16>
    %cst = arith.constant dense<0.000000e+00> : vector<128x8xf32>
    %6 = tpu.matmul %4, %5, %cst {dimension_numbers = #tpu.dot_dimension_numbers<[1], [0], [0], [1], [0, 0, 1, 1], [], []>} : vector<128x196xbf16>, vector<196x8xbf16>, vector<128x8xf32> -> vector<128x8xf32>
    %7 = arith.addf %3, %6 : vector<128x8xf32>
    %c0_6 = arith.constant 0 : index
    %c0_7 = arith.constant 0 : index
    %8 = vector.load %arg7[%c0_6, %c0_7] : memref<128x8xf32, #tpu.memory_space<vmem>>, vector<128x8xf32>
    tpu.vector_store %arg7[%c0_6, %c0_7], %7 {strides = array<i32>} : memref<128x8xf32, #tpu.memory_space<vmem>>, vector<128x8xf32>,
    %c0_i32_8 = arith.constant 0 : i32
    %9 = arith.cmpi eq, %arg2, %c0_i32_8 : i32
    %10 = arith.extui %9 : i1 to i32
    %c0_i32_9 = arith.constant 0 : i32
    %11 = arith.cmpi ne, %10, %c0_i32_9 : i32
    scf.if %11 {
      %c0_10 = arith.constant 0 : index
      %c0_11 = arith.constant 0 : index
      %12 = vector.load %arg7[%c0_10, %c0_11] : memref<128x8xf32, #tpu.memory_space<vmem>>, vector<128x8xf32>
      %c0_12 = arith.constant 0 : index
      %c0_13 = arith.constant 0 : index
      %13 = vector.load %arg5[%c0_12, %c0_13] : memref<1x8xf32, #tpu.memory_space<vmem>>, vector<1x8xf32>
      %14 = vector.broadcast %13 : vector<1x8xf32> to vector<128x8xf32>
      %15 = arith.addf %12, %14 : vector<128x8xf32>
      %cst_14 = arith.constant 0.000000e+00 : f32
      %16 = vector.broadcast %cst_14 : f32 to vector<128x8xf32>
      %17 = arith.maximumf %15, %16 : vector<128x8xf32>
      %18 = arith.truncf %17 : vector<128x8xf32> to vector<128x8xbf16>
      %c0_15 = arith.constant 0 : index
      %c0_16 = arith.constant 0 : index
      %19 = vector.load %arg6[%c0_15, %c0_16] : memref<128x8xbf16, #tpu.memory_space<vmem>>, vector<128x8xbf16>
      tpu.vector_store %arg6[%c0_15, %c0_16], %18 {strides = array<i32>} : memref<128x8xbf16, #tpu.memory_space<vmem>>, vector<128x8xbf16>,
    } else {
    }
    return
  }
  func.func @transform_0(%arg0: i32, %arg1: i32, %arg2: i32) -> (i32, i32) {
    %c0_i32 = arith.constant 0 : i32
    return %arg0, %arg2 : i32, i32
  }
  func.func @transform_1(%arg0: i32, %arg1: i32, %arg2: i32) -> (i32, i32) {
    %c0_i32 = arith.constant 0 : i32
    return %arg2, %arg1 : i32, i32
  }
  func.func @transform_2(%arg0: i32, %arg1: i32, %arg2: i32) -> (i32, i32) {
    %c0_i32 = arith.constant 0 : i32
    %c0_i32_0 = arith.constant 0 : i32
    return %c0_i32, %arg1 : i32, i32
  }
  func.func @transform_3(%arg0: i32, %arg1: i32, %arg2: i32) -> (i32, i32) {
    %c0_i32 = arith.constant 0 : i32
    return %arg0, %arg1 : i32, i32
  }
}

module attributes {stable_mosaic.version = 11 : i64} {
  func.func @_maxpool_kernel(%arg0: i32, %arg1: memref<1x5x5x8xbf16, #tpu.memory_space<vmem>>, %arg2: memref<1x5x4x8xbf16, #tpu.memory_space<vmem>>, %arg3: memref<1x4x5x8xbf16, #tpu.memory_space<vmem>>, %arg4: memref<1x4x4x8xbf16, #tpu.memory_space<vmem>>, %arg5: memref<1x4x4x8xbf16, #tpu.memory_space<vmem>>) attributes {dimension_semantics = [#tpu.dimension_semantics<parallel>], iteration_bounds = array<i64: 2>, scalar_prefetch = 0 : i64, scratch_operands = 0 : i64, tpu.core_type = #tpu.core_type<tc>, window_params = [{transform_indices = @transform_0, window_bounds = array<i64: 1, 5, 5, 8>}, {transform_indices = @transform_1, window_bounds = array<i64: 1, 5, 4, 8>}, {transform_indices = @transform_2, window_bounds = array<i64: 1, 4, 5, 8>}, {transform_indices = @transform_3, window_bounds = array<i64: 1, 4, 4, 8>}, {transform_indices = @transform_4, window_bounds = array<i64: 1, 4, 4, 8>}]} {
    %c0 = arith.constant 0 : index
    %c0_0 = arith.constant 0 : index
    %c0_1 = arith.constant 0 : index
    %c0_2 = arith.constant 0 : index
    %0 = vector.load %arg1[%c0, %c0_0, %c0_1, %c0_2] : memref<1x5x5x8xbf16, #tpu.memory_space<vmem>>, vector<1x5x5x8xbf16>
    %c0_3 = arith.constant 0 : index
    %c0_4 = arith.constant 0 : index
    %c0_5 = arith.constant 0 : index
    %c0_6 = arith.constant 0 : index
    %1 = vector.load %arg2[%c0_3, %c0_4, %c0_5, %c0_6] : memref<1x5x4x8xbf16, #tpu.memory_space<vmem>>, vector<1x5x4x8xbf16>
    %c0_7 = arith.constant 0 : index
    %c0_8 = arith.constant 0 : index
    %c0_9 = arith.constant 0 : index
    %c0_10 = arith.constant 0 : index
    %2 = vector.load %arg3[%c0_7, %c0_8, %c0_9, %c0_10] : memref<1x4x5x8xbf16, #tpu.memory_space<vmem>>, vector<1x4x5x8xbf16>
    %c0_11 = arith.constant 0 : index
    %c0_12 = arith.constant 0 : index
    %c0_13 = arith.constant 0 : index
    %c0_14 = arith.constant 0 : index
    %3 = vector.load %arg4[%c0_11, %c0_12, %c0_13, %c0_14] : memref<1x4x4x8xbf16, #tpu.memory_space<vmem>>, vector<1x4x4x8xbf16>
    %4 = vector.extract_strided_slice %0 {offsets = [0, 0, 0, 0], sizes = [1, 4, 4, 8], strides = [1, 1, 1, 1]} : vector<1x5x5x8xbf16> to vector<1x4x4x8xbf16>
    %5 = arith.maximumf %3, %4 : vector<1x4x4x8xbf16>
    %6 = vector.extract_strided_slice %0 {offsets = [0, 0, 1, 0], sizes = [1, 4, 4, 8], strides = [1, 1, 1, 1]} : vector<1x5x5x8xbf16> to vector<1x4x4x8xbf16>
    %7 = arith.maximumf %5, %6 : vector<1x4x4x8xbf16>
    %8 = vector.extract_strided_slice %0 {offsets = [0, 1, 0, 0], sizes = [1, 4, 4, 8], strides = [1, 1, 1, 1]} : vector<1x5x5x8xbf16> to vector<1x4x4x8xbf16>
    %9 = arith.maximumf %7, %8 : vector<1x4x4x8xbf16>
    %10 = vector.extract_strided_slice %0 {offsets = [0, 1, 1, 0], sizes = [1, 4, 4, 8], strides = [1, 1, 1, 1]} : vector<1x5x5x8xbf16> to vector<1x4x4x8xbf16>
    %11 = arith.maximumf %9, %10 : vector<1x4x4x8xbf16>
    %12 = vector.extract_strided_slice %1 {offsets = [0, 0, 0, 0], sizes = [1, 4, 4, 8], strides = [1, 1, 1, 1]} : vector<1x5x4x8xbf16> to vector<1x4x4x8xbf16>
    %13 = arith.maximumf %11, %12 : vector<1x4x4x8xbf16>
    %14 = vector.extract_strided_slice %1 {offsets = [0, 1, 0, 0], sizes = [1, 4, 4, 8], strides = [1, 1, 1, 1]} : vector<1x5x4x8xbf16> to vector<1x4x4x8xbf16>
    %15 = arith.maximumf %13, %14 : vector<1x4x4x8xbf16>
    %16 = vector.extract_strided_slice %2 {offsets = [0, 0, 0, 0], sizes = [1, 4, 4, 8], strides = [1, 1, 1, 1]} : vector<1x4x5x8xbf16> to vector<1x4x4x8xbf16>
    %17 = arith.maximumf %15, %16 : vector<1x4x4x8xbf16>
    %18 = vector.extract_strided_slice %2 {offsets = [0, 0, 1, 0], sizes = [1, 4, 4, 8], strides = [1, 1, 1, 1]} : vector<1x4x5x8xbf16> to vector<1x4x4x8xbf16>
    %19 = arith.maximumf %17, %18 : vector<1x4x4x8xbf16>
    %c0_15 = arith.constant 0 : index
    %c0_16 = arith.constant 0 : index
    %c0_17 = arith.constant 0 : index
    %c0_18 = arith.constant 0 : index
    %20 = vector.load %arg5[%c0_15, %c0_16, %c0_17, %c0_18] : memref<1x4x4x8xbf16, #tpu.memory_space<vmem>>, vector<1x4x4x8xbf16>
    tpu.vector_store %arg5[%c0_15, %c0_16, %c0_17, %c0_18], %19 {strides = array<i32>} : memref<1x4x4x8xbf16, #tpu.memory_space<vmem>>, vector<1x4x4x8xbf16>,
    return
  }
  func.func @transform_0(%arg0: i32) -> (i32, i32, i32, i32) {
    %c0_i32 = arith.constant 0 : i32
    %c0_i32_0 = arith.constant 0 : i32
    %c0_i32_1 = arith.constant 0 : i32
    %c0_i32_2 = arith.constant 0 : i32
    return %arg0, %c0_i32, %c0_i32_0, %c0_i32_1 : i32, i32, i32, i32
  }
  func.func @transform_1(%arg0: i32) -> (i32, i32, i32, i32) {
    %c0_i32 = arith.constant 0 : i32
    %c0_i32_0 = arith.constant 0 : i32
    %c0_i32_1 = arith.constant 0 : i32
    %c0_i32_2 = arith.constant 0 : i32
    return %arg0, %c0_i32, %c0_i32_0, %c0_i32_1 : i32, i32, i32, i32
  }
  func.func @transform_2(%arg0: i32) -> (i32, i32, i32, i32) {
    %c0_i32 = arith.constant 0 : i32
    %c0_i32_0 = arith.constant 0 : i32
    %c0_i32_1 = arith.constant 0 : i32
    %c0_i32_2 = arith.constant 0 : i32
    return %arg0, %c0_i32, %c0_i32_0, %c0_i32_1 : i32, i32, i32, i32
  }
  func.func @transform_3(%arg0: i32) -> (i32, i32, i32, i32) {
    %c0_i32 = arith.constant 0 : i32
    %c0_i32_0 = arith.constant 0 : i32
    %c0_i32_1 = arith.constant 0 : i32
    %c0_i32_2 = arith.constant 0 : i32
    return %arg0, %c0_i32, %c0_i32_0, %c0_i32_1 : i32, i32, i32, i32
  }
  func.func @transform_4(%arg0: i32) -> (i32, i32, i32, i32) {
    %c0_i32 = arith.constant 0 : i32
    %c0_i32_0 = arith.constant 0 : i32
    %c0_i32_1 = arith.constant 0 : i32
    %c0_i32_2 = arith.constant 0 : i32
    return %arg0, %c0_i32, %c0_i32_0, %c0_i32_1 : i32, i32, i32, i32
  }
}

module attributes {stable_mosaic.version = 11 : i64} {
  func.func @_gemm_bn_kernel(%arg0: i32, %arg1: i32, %arg2: i32, %arg3: memref<32x72xbf16, #tpu.memory_space<vmem>>, %arg4: memref<72x8xbf16, #tpu.memory_space<vmem>>, %arg5: memref<1x8xf32, #tpu.memory_space<vmem>>, %arg6: memref<32x8xbf16, #tpu.memory_space<vmem>>, %arg7: memref<32x8xf32, #tpu.memory_space<vmem>>) attributes {dimension_semantics = [#tpu.dimension_semantics<parallel>, #tpu.dimension_semantics<parallel>, #tpu.dimension_semantics<arbitrary>], iteration_bounds = array<i64: 1, 1, 1>, scalar_prefetch = 0 : i64, scratch_operands = 1 : i64, tpu.core_type = #tpu.core_type<tc>, window_params = [{transform_indices = @transform_0, window_bounds = array<i64: 32, 72>}, {transform_indices = @transform_1, window_bounds = array<i64: 72, 8>}, {transform_indices = @transform_2, window_bounds = array<i64: 1, 8>}, {transform_indices = @transform_3, window_bounds = array<i64: 32, 8>}]} {
    %c0_i32 = arith.constant 0 : i32
    %0 = arith.cmpi eq, %arg2, %c0_i32 : i32
    %1 = arith.extui %0 : i1 to i32
    %c0_i32_0 = arith.constant 0 : i32
    %2 = arith.cmpi ne, %1, %c0_i32_0 : i32
    scf.if %2 {
      %cst_10 = arith.constant 0.000000e+00 : f32
      %12 = vector.broadcast %cst_10 : f32 to vector<32x8xf32>
      %c0_11 = arith.constant 0 : index
      %c0_12 = arith.constant 0 : index
      %13 = vector.load %arg7[%c0_11, %c0_12] : memref<32x8xf32, #tpu.memory_space<vmem>>, vector<32x8xf32>
      tpu.vector_store %arg7[%c0_11, %c0_12], %12 {strides = array<i32>} : memref<32x8xf32, #tpu.memory_space<vmem>>, vector<32x8xf32>,
    } else {
    }
    %c0 = arith.constant 0 : index
    %c0_1 = arith.constant 0 : index
    %3 = vector.load %arg7[%c0, %c0_1] : memref<32x8xf32, #tpu.memory_space<vmem>>, vector<32x8xf32>
    %c0_2 = arith.constant 0 : index
    %c0_3 = arith.constant 0 : index
    %4 = vector.load %arg3[%c0_2, %c0_3] : memref<32x72xbf16, #tpu.memory_space<vmem>>, vector<32x72xbf16>
    %c0_4 = arith.constant 0 : index
    %c0_5 = arith.constant 0 : index
    %5 = vector.load %arg4[%c0_4, %c0_5] : memref<72x8xbf16, #tpu.memory_space<vmem>>, vector<72x8xbf16>
    %cst = arith.constant dense<0.000000e+00> : vector<32x8xf32>
    %6 = tpu.matmul %4, %5, %cst {dimension_numbers = #tpu.dot_dimension_numbers<[1], [0], [0], [1], [0, 0, 1, 1], [], []>} : vector<32x72xbf16>, vector<72x8xbf16>, vector<32x8xf32> -> vector<32x8xf32>
    %7 = arith.addf %3, %6 : vector<32x8xf32>
    %c0_6 = arith.constant 0 : index
    %c0_7 = arith.constant 0 : index
    %8 = vector.load %arg7[%c0_6, %c0_7] : memref<32x8xf32, #tpu.memory_space<vmem>>, vector<32x8xf32>
    tpu.vector_store %arg7[%c0_6, %c0_7], %7 {strides = array<i32>} : memref<32x8xf32, #tpu.memory_space<vmem>>, vector<32x8xf32>,
    %c0_i32_8 = arith.constant 0 : i32
    %9 = arith.cmpi eq, %arg2, %c0_i32_8 : i32
    %10 = arith.extui %9 : i1 to i32
    %c0_i32_9 = arith.constant 0 : i32
    %11 = arith.cmpi ne, %10, %c0_i32_9 : i32
    scf.if %11 {
      %c0_10 = arith.constant 0 : index
      %c0_11 = arith.constant 0 : index
      %12 = vector.load %arg7[%c0_10, %c0_11] : memref<32x8xf32, #tpu.memory_space<vmem>>, vector<32x8xf32>
      %c0_12 = arith.constant 0 : index
      %c0_13 = arith.constant 0 : index
      %13 = vector.load %arg5[%c0_12, %c0_13] : memref<1x8xf32, #tpu.memory_space<vmem>>, vector<1x8xf32>
      %14 = vector.broadcast %13 : vector<1x8xf32> to vector<32x8xf32>
      %15 = arith.addf %12, %14 : vector<32x8xf32>
      %cst_14 = arith.constant 0.000000e+00 : f32
      %16 = vector.broadcast %cst_14 : f32 to vector<32x8xf32>
      %17 = arith.maximumf %15, %16 : vector<32x8xf32>
      %18 = arith.truncf %17 : vector<32x8xf32> to vector<32x8xbf16>
      %c0_15 = arith.constant 0 : index
      %c0_16 = arith.constant 0 : index
      %19 = vector.load %arg6[%c0_15, %c0_16] : memref<32x8xbf16, #tpu.memory_space<vmem>>, vector<32x8xbf16>
      tpu.vector_store %arg6[%c0_15, %c0_16], %18 {strides = array<i32>} : memref<32x8xbf16, #tpu.memory_space<vmem>>, vector<32x8xbf16>,
    } else {
    }
    return
  }
  func.func @transform_0(%arg0: i32, %arg1: i32, %arg2: i32) -> (i32, i32) {
    %c0_i32 = arith.constant 0 : i32
    return %arg0, %arg2 : i32, i32
  }
  func.func @transform_1(%arg0: i32, %arg1: i32, %arg2: i32) -> (i32, i32) {
    %c0_i32 = arith.constant 0 : i32
    return %arg2, %arg1 : i32, i32
  }
  func.func @transform_2(%arg0: i32, %arg1: i32, %arg2: i32) -> (i32, i32) {
    %c0_i32 = arith.constant 0 : i32
    %c0_i32_0 = arith.constant 0 : i32
    return %c0_i32, %arg1 : i32, i32
  }
  func.func @transform_3(%arg0: i32, %arg1: i32, %arg2: i32) -> (i32, i32) {
    %c0_i32 = arith.constant 0 : i32
    return %arg0, %arg1 : i32, i32
  }
}

module attributes {stable_mosaic.version = 11 : i64} {
  func.func @_gemm_bn_res_kernel(%arg0: i32, %arg1: i32, %arg2: i32, %arg3: memref<32x72xbf16, #tpu.memory_space<vmem>>, %arg4: memref<72x8xbf16, #tpu.memory_space<vmem>>, %arg5: memref<1x8xf32, #tpu.memory_space<vmem>>, %arg6: memref<32x8xbf16, #tpu.memory_space<vmem>>, %arg7: memref<32x8xbf16, #tpu.memory_space<vmem>>, %arg8: memref<32x8xf32, #tpu.memory_space<vmem>>) attributes {dimension_semantics = [#tpu.dimension_semantics<parallel>, #tpu.dimension_semantics<parallel>, #tpu.dimension_semantics<arbitrary>], iteration_bounds = array<i64: 1, 1, 1>, scalar_prefetch = 0 : i64, scratch_operands = 1 : i64, tpu.core_type = #tpu.core_type<tc>, window_params = [{transform_indices = @transform_0, window_bounds = array<i64: 32, 72>}, {transform_indices = @transform_1, window_bounds = array<i64: 72, 8>}, {transform_indices = @transform_2, window_bounds = array<i64: 1, 8>}, {transform_indices = @transform_3, window_bounds = array<i64: 32, 8>}, {transform_indices = @transform_4, window_bounds = array<i64: 32, 8>}]} {
    %c0_i32 = arith.constant 0 : i32
    %0 = arith.cmpi eq, %arg2, %c0_i32 : i32
    %1 = arith.extui %0 : i1 to i32
    %c0_i32_0 = arith.constant 0 : i32
    %2 = arith.cmpi ne, %1, %c0_i32_0 : i32
    scf.if %2 {
      %cst_10 = arith.constant 0.000000e+00 : f32
      %12 = vector.broadcast %cst_10 : f32 to vector<32x8xf32>
      %c0_11 = arith.constant 0 : index
      %c0_12 = arith.constant 0 : index
      %13 = vector.load %arg8[%c0_11, %c0_12] : memref<32x8xf32, #tpu.memory_space<vmem>>, vector<32x8xf32>
      tpu.vector_store %arg8[%c0_11, %c0_12], %12 {strides = array<i32>} : memref<32x8xf32, #tpu.memory_space<vmem>>, vector<32x8xf32>,
    } else {
    }
    %c0 = arith.constant 0 : index
    %c0_1 = arith.constant 0 : index
    %3 = vector.load %arg8[%c0, %c0_1] : memref<32x8xf32, #tpu.memory_space<vmem>>, vector<32x8xf32>
    %c0_2 = arith.constant 0 : index
    %c0_3 = arith.constant 0 : index
    %4 = vector.load %arg3[%c0_2, %c0_3] : memref<32x72xbf16, #tpu.memory_space<vmem>>, vector<32x72xbf16>
    %c0_4 = arith.constant 0 : index
    %c0_5 = arith.constant 0 : index
    %5 = vector.load %arg4[%c0_4, %c0_5] : memref<72x8xbf16, #tpu.memory_space<vmem>>, vector<72x8xbf16>
    %cst = arith.constant dense<0.000000e+00> : vector<32x8xf32>
    %6 = tpu.matmul %4, %5, %cst {dimension_numbers = #tpu.dot_dimension_numbers<[1], [0], [0], [1], [0, 0, 1, 1], [], []>} : vector<32x72xbf16>, vector<72x8xbf16>, vector<32x8xf32> -> vector<32x8xf32>
    %7 = arith.addf %3, %6 : vector<32x8xf32>
    %c0_6 = arith.constant 0 : index
    %c0_7 = arith.constant 0 : index
    %8 = vector.load %arg8[%c0_6, %c0_7] : memref<32x8xf32, #tpu.memory_space<vmem>>, vector<32x8xf32>
    tpu.vector_store %arg8[%c0_6, %c0_7], %7 {strides = array<i32>} : memref<32x8xf32, #tpu.memory_space<vmem>>, vector<32x8xf32>,
    %c0_i32_8 = arith.constant 0 : i32
    %9 = arith.cmpi eq, %arg2, %c0_i32_8 : i32
    %10 = arith.extui %9 : i1 to i32
    %c0_i32_9 = arith.constant 0 : i32
    %11 = arith.cmpi ne, %10, %c0_i32_9 : i32
    scf.if %11 {
      %c0_10 = arith.constant 0 : index
      %c0_11 = arith.constant 0 : index
      %12 = vector.load %arg8[%c0_10, %c0_11] : memref<32x8xf32, #tpu.memory_space<vmem>>, vector<32x8xf32>
      %c0_12 = arith.constant 0 : index
      %c0_13 = arith.constant 0 : index
      %13 = vector.load %arg5[%c0_12, %c0_13] : memref<1x8xf32, #tpu.memory_space<vmem>>, vector<1x8xf32>
      %14 = vector.broadcast %13 : vector<1x8xf32> to vector<32x8xf32>
      %15 = arith.addf %12, %14 : vector<32x8xf32>
      %c0_14 = arith.constant 0 : index
      %c0_15 = arith.constant 0 : index
      %16 = vector.load %arg6[%c0_14, %c0_15] : memref<32x8xbf16, #tpu.memory_space<vmem>>, vector<32x8xbf16>
      %17 = arith.extf %16 : vector<32x8xbf16> to vector<32x8xf32>
      %18 = arith.addf %15, %17 : vector<32x8xf32>
      %cst_16 = arith.constant 0.000000e+00 : f32
      %19 = vector.broadcast %cst_16 : f32 to vector<32x8xf32>
      %20 = arith.maximumf %18, %19 : vector<32x8xf32>
      %21 = arith.truncf %20 : vector<32x8xf32> to vector<32x8xbf16>
      %c0_17 = arith.constant 0 : index
      %c0_18 = arith.constant 0 : index
      %22 = vector.load %arg7[%c0_17, %c0_18] : memref<32x8xbf16, #tpu.memory_space<vmem>>, vector<32x8xbf16>
      tpu.vector_store %arg7[%c0_17, %c0_18], %21 {strides = array<i32>} : memref<32x8xbf16, #tpu.memory_space<vmem>>, vector<32x8xbf16>,
    } else {
    }
    return
  }
  func.func @transform_0(%arg0: i32, %arg1: i32, %arg2: i32) -> (i32, i32) {
    %c0_i32 = arith.constant 0 : i32
    return %arg0, %arg2 : i32, i32
  }
  func.func @transform_1(%arg0: i32, %arg1: i32, %arg2: i32) -> (i32, i32) {
    %c0_i32 = arith.constant 0 : i32
    return %arg2, %arg1 : i32, i32
  }
  func.func @transform_2(%arg0: i32, %arg1: i32, %arg2: i32) -> (i32, i32) {
    %c0_i32 = arith.constant 0 : i32
    %c0_i32_0 = arith.constant 0 : i32
    return %c0_i32, %arg1 : i32, i32
  }
  func.func @transform_3(%arg0: i32, %arg1: i32, %arg2: i32) -> (i32, i32) {
    %c0_i32 = arith.constant 0 : i32
    return %arg0, %arg1 : i32, i32
  }
  func.func @transform_4(%arg0: i32, %arg1: i32, %arg2: i32) -> (i32, i32) {
    %c0_i32 = arith.constant 0 : i32
    return %arg0, %arg1 : i32, i32
  }
}

module attributes {stable_mosaic.version = 11 : i64} {
  func.func @_gemm_bn_kernel(%arg0: i32, %arg1: i32, %arg2: i32, %arg3: memref<8x72xbf16, #tpu.memory_space<vmem>>, %arg4: memref<72x16xbf16, #tpu.memory_space<vmem>>, %arg5: memref<1x16xf32, #tpu.memory_space<vmem>>, %arg6: memref<8x16xbf16, #tpu.memory_space<vmem>>, %arg7: memref<8x16xf32, #tpu.memory_space<vmem>>) attributes {dimension_semantics = [#tpu.dimension_semantics<parallel>, #tpu.dimension_semantics<parallel>, #tpu.dimension_semantics<arbitrary>], iteration_bounds = array<i64: 1, 1, 1>, scalar_prefetch = 0 : i64, scratch_operands = 1 : i64, tpu.core_type = #tpu.core_type<tc>, window_params = [{transform_indices = @transform_0, window_bounds = array<i64: 8, 72>}, {transform_indices = @transform_1, window_bounds = array<i64: 72, 16>}, {transform_indices = @transform_2, window_bounds = array<i64: 1, 16>}, {transform_indices = @transform_3, window_bounds = array<i64: 8, 16>}]} {
    %c0_i32 = arith.constant 0 : i32
    %0 = arith.cmpi eq, %arg2, %c0_i32 : i32
    %1 = arith.extui %0 : i1 to i32
    %c0_i32_0 = arith.constant 0 : i32
    %2 = arith.cmpi ne, %1, %c0_i32_0 : i32
    scf.if %2 {
      %cst_10 = arith.constant 0.000000e+00 : f32
      %12 = vector.broadcast %cst_10 : f32 to vector<8x16xf32>
      %c0_11 = arith.constant 0 : index
      %c0_12 = arith.constant 0 : index
      %13 = vector.load %arg7[%c0_11, %c0_12] : memref<8x16xf32, #tpu.memory_space<vmem>>, vector<8x16xf32>
      tpu.vector_store %arg7[%c0_11, %c0_12], %12 {strides = array<i32>} : memref<8x16xf32, #tpu.memory_space<vmem>>, vector<8x16xf32>,
    } else {
    }
    %c0 = arith.constant 0 : index
    %c0_1 = arith.constant 0 : index
    %3 = vector.load %arg7[%c0, %c0_1] : memref<8x16xf32, #tpu.memory_space<vmem>>, vector<8x16xf32>
    %c0_2 = arith.constant 0 : index
    %c0_3 = arith.constant 0 : index
    %4 = vector.load %arg3[%c0_2, %c0_3] : memref<8x72xbf16, #tpu.memory_space<vmem>>, vector<8x72xbf16>
    %c0_4 = arith.constant 0 : index
    %c0_5 = arith.constant 0 : index
    %5 = vector.load %arg4[%c0_4, %c0_5] : memref<72x16xbf16, #tpu.memory_space<vmem>>, vector<72x16xbf16>
    %cst = arith.constant dense<0.000000e+00> : vector<8x16xf32>
    %6 = tpu.matmul %4, %5, %cst {dimension_numbers = #tpu.dot_dimension_numbers<[1], [0], [0], [1], [0, 0, 1, 1], [], []>} : vector<8x72xbf16>, vector<72x16xbf16>, vector<8x16xf32> -> vector<8x16xf32>
    %7 = arith.addf %3, %6 : vector<8x16xf32>
    %c0_6 = arith.constant 0 : index
    %c0_7 = arith.constant 0 : index
    %8 = vector.load %arg7[%c0_6, %c0_7] : memref<8x16xf32, #tpu.memory_space<vmem>>, vector<8x16xf32>
    tpu.vector_store %arg7[%c0_6, %c0_7], %7 {strides = array<i32>} : memref<8x16xf32, #tpu.memory_space<vmem>>, vector<8x16xf32>,
    %c0_i32_8 = arith.constant 0 : i32
    %9 = arith.cmpi eq, %arg2, %c0_i32_8 : i32
    %10 = arith.extui %9 : i1 to i32
    %c0_i32_9 = arith.constant 0 : i32
    %11 = arith.cmpi ne, %10, %c0_i32_9 : i32
    scf.if %11 {
      %c0_10 = arith.constant 0 : index
      %c0_11 = arith.constant 0 : index
      %12 = vector.load %arg7[%c0_10, %c0_11] : memref<8x16xf32, #tpu.memory_space<vmem>>, vector<8x16xf32>
      %c0_12 = arith.constant 0 : index
      %c0_13 = arith.constant 0 : index
      %13 = vector.load %arg5[%c0_12, %c0_13] : memref<1x16xf32, #tpu.memory_space<vmem>>, vector<1x16xf32>
      %14 = vector.broadcast %13 : vector<1x16xf32> to vector<8x16xf32>
      %15 = arith.addf %12, %14 : vector<8x16xf32>
      %cst_14 = arith.constant 0.000000e+00 : f32
      %16 = vector.broadcast %cst_14 : f32 to vector<8x16xf32>
      %17 = arith.maximumf %15, %16 : vector<8x16xf32>
      %18 = arith.truncf %17 : vector<8x16xf32> to vector<8x16xbf16>
      %c0_15 = arith.constant 0 : index
      %c0_16 = arith.constant 0 : index
      %19 = vector.load %arg6[%c0_15, %c0_16] : memref<8x16xbf16, #tpu.memory_space<vmem>>, vector<8x16xbf16>
      tpu.vector_store %arg6[%c0_15, %c0_16], %18 {strides = array<i32>} : memref<8x16xbf16, #tpu.memory_space<vmem>>, vector<8x16xbf16>,
    } else {
    }
    return
  }
  func.func @transform_0(%arg0: i32, %arg1: i32, %arg2: i32) -> (i32, i32) {
    %c0_i32 = arith.constant 0 : i32
    return %arg0, %arg2 : i32, i32
  }
  func.func @transform_1(%arg0: i32, %arg1: i32, %arg2: i32) -> (i32, i32) {
    %c0_i32 = arith.constant 0 : i32
    return %arg2, %arg1 : i32, i32
  }
  func.func @transform_2(%arg0: i32, %arg1: i32, %arg2: i32) -> (i32, i32) {
    %c0_i32 = arith.constant 0 : i32
    %c0_i32_0 = arith.constant 0 : i32
    return %c0_i32, %arg1 : i32, i32
  }
  func.func @transform_3(%arg0: i32, %arg1: i32, %arg2: i32) -> (i32, i32) {
    %c0_i32 = arith.constant 0 : i32
    return %arg0, %arg1 : i32, i32
  }
}

module attributes {stable_mosaic.version = 11 : i64} {
  func.func @_gemm_bn_res_kernel(%arg0: i32, %arg1: i32, %arg2: i32, %arg3: memref<8x144xbf16, #tpu.memory_space<vmem>>, %arg4: memref<144x16xbf16, #tpu.memory_space<vmem>>, %arg5: memref<1x16xf32, #tpu.memory_space<vmem>>, %arg6: memref<8x16xbf16, #tpu.memory_space<vmem>>, %arg7: memref<8x16xbf16, #tpu.memory_space<vmem>>, %arg8: memref<8x16xf32, #tpu.memory_space<vmem>>) attributes {dimension_semantics = [#tpu.dimension_semantics<parallel>, #tpu.dimension_semantics<parallel>, #tpu.dimension_semantics<arbitrary>], iteration_bounds = array<i64: 1, 1, 1>, scalar_prefetch = 0 : i64, scratch_operands = 1 : i64, tpu.core_type = #tpu.core_type<tc>, window_params = [{transform_indices = @transform_0, window_bounds = array<i64: 8, 144>}, {transform_indices = @transform_1, window_bounds = array<i64: 144, 16>}, {transform_indices = @transform_2, window_bounds = array<i64: 1, 16>}, {transform_indices = @transform_3, window_bounds = array<i64: 8, 16>}, {transform_indices = @transform_4, window_bounds = array<i64: 8, 16>}]} {
    %c0_i32 = arith.constant 0 : i32
    %0 = arith.cmpi eq, %arg2, %c0_i32 : i32
    %1 = arith.extui %0 : i1 to i32
    %c0_i32_0 = arith.constant 0 : i32
    %2 = arith.cmpi ne, %1, %c0_i32_0 : i32
    scf.if %2 {
      %cst_10 = arith.constant 0.000000e+00 : f32
      %12 = vector.broadcast %cst_10 : f32 to vector<8x16xf32>
      %c0_11 = arith.constant 0 : index
      %c0_12 = arith.constant 0 : index
      %13 = vector.load %arg8[%c0_11, %c0_12] : memref<8x16xf32, #tpu.memory_space<vmem>>, vector<8x16xf32>
      tpu.vector_store %arg8[%c0_11, %c0_12], %12 {strides = array<i32>} : memref<8x16xf32, #tpu.memory_space<vmem>>, vector<8x16xf32>,
    } else {
    }
    %c0 = arith.constant 0 : index
    %c0_1 = arith.constant 0 : index
    %3 = vector.load %arg8[%c0, %c0_1] : memref<8x16xf32, #tpu.memory_space<vmem>>, vector<8x16xf32>
    %c0_2 = arith.constant 0 : index
    %c0_3 = arith.constant 0 : index
    %4 = vector.load %arg3[%c0_2, %c0_3] : memref<8x144xbf16, #tpu.memory_space<vmem>>, vector<8x144xbf16>
    %c0_4 = arith.constant 0 : index
    %c0_5 = arith.constant 0 : index
    %5 = vector.load %arg4[%c0_4, %c0_5] : memref<144x16xbf16, #tpu.memory_space<vmem>>, vector<144x16xbf16>
    %cst = arith.constant dense<0.000000e+00> : vector<8x16xf32>
    %6 = tpu.matmul %4, %5, %cst {dimension_numbers = #tpu.dot_dimension_numbers<[1], [0], [0], [1], [0, 0, 1, 1], [], []>} : vector<8x144xbf16>, vector<144x16xbf16>, vector<8x16xf32> -> vector<8x16xf32>
    %7 = arith.addf %3, %6 : vector<8x16xf32>
    %c0_6 = arith.constant 0 : index
    %c0_7 = arith.constant 0 : index
    %8 = vector.load %arg8[%c0_6, %c0_7] : memref<8x16xf32, #tpu.memory_space<vmem>>, vector<8x16xf32>
    tpu.vector_store %arg8[%c0_6, %c0_7], %7 {strides = array<i32>} : memref<8x16xf32, #tpu.memory_space<vmem>>, vector<8x16xf32>,
    %c0_i32_8 = arith.constant 0 : i32
    %9 = arith.cmpi eq, %arg2, %c0_i32_8 : i32
    %10 = arith.extui %9 : i1 to i32
    %c0_i32_9 = arith.constant 0 : i32
    %11 = arith.cmpi ne, %10, %c0_i32_9 : i32
    scf.if %11 {
      %c0_10 = arith.constant 0 : index
      %c0_11 = arith.constant 0 : index
      %12 = vector.load %arg8[%c0_10, %c0_11] : memref<8x16xf32, #tpu.memory_space<vmem>>, vector<8x16xf32>
      %c0_12 = arith.constant 0 : index
      %c0_13 = arith.constant 0 : index
      %13 = vector.load %arg5[%c0_12, %c0_13] : memref<1x16xf32, #tpu.memory_space<vmem>>, vector<1x16xf32>
      %14 = vector.broadcast %13 : vector<1x16xf32> to vector<8x16xf32>
      %15 = arith.addf %12, %14 : vector<8x16xf32>
      %c0_14 = arith.constant 0 : index
      %c0_15 = arith.constant 0 : index
      %16 = vector.load %arg6[%c0_14, %c0_15] : memref<8x16xbf16, #tpu.memory_space<vmem>>, vector<8x16xbf16>
      %17 = arith.extf %16 : vector<8x16xbf16> to vector<8x16xf32>
      %18 = arith.addf %15, %17 : vector<8x16xf32>
      %cst_16 = arith.constant 0.000000e+00 : f32
      %19 = vector.broadcast %cst_16 : f32 to vector<8x16xf32>
      %20 = arith.maximumf %18, %19 : vector<8x16xf32>
      %21 = arith.truncf %20 : vector<8x16xf32> to vector<8x16xbf16>
      %c0_17 = arith.constant 0 : index
      %c0_18 = arith.constant 0 : index
      %22 = vector.load %arg7[%c0_17, %c0_18] : memref<8x16xbf16, #tpu.memory_space<vmem>>, vector<8x16xbf16>
      tpu.vector_store %arg7[%c0_17, %c0_18], %21 {strides = array<i32>} : memref<8x16xbf16, #tpu.memory_space<vmem>>, vector<8x16xbf16>,
    } else {
    }
    return
  }
  func.func @transform_0(%arg0: i32, %arg1: i32, %arg2: i32) -> (i32, i32) {
    %c0_i32 = arith.constant 0 : i32
    return %arg0, %arg2 : i32, i32
  }
  func.func @transform_1(%arg0: i32, %arg1: i32, %arg2: i32) -> (i32, i32) {
    %c0_i32 = arith.constant 0 : i32
    return %arg2, %arg1 : i32, i32
  }
  func.func @transform_2(%arg0: i32, %arg1: i32, %arg2: i32) -> (i32, i32) {
    %c0_i32 = arith.constant 0 : i32
    %c0_i32_0 = arith.constant 0 : i32
    return %c0_i32, %arg1 : i32, i32
  }
  func.func @transform_3(%arg0: i32, %arg1: i32, %arg2: i32) -> (i32, i32) {
    %c0_i32 = arith.constant 0 : i32
    return %arg0, %arg1 : i32, i32
  }
  func.func @transform_4(%arg0: i32, %arg1: i32, %arg2: i32) -> (i32, i32) {
    %c0_i32 = arith.constant 0 : i32
    return %arg0, %arg1 : i32, i32
  }
}

module attributes {stable_mosaic.version = 11 : i64} {
  func.func @_gemm_bn_kernel(%arg0: i32, %arg1: i32, %arg2: i32, %arg3: memref<8x144xbf16, #tpu.memory_space<vmem>>, %arg4: memref<144x16xbf16, #tpu.memory_space<vmem>>, %arg5: memref<1x16xf32, #tpu.memory_space<vmem>>, %arg6: memref<8x16xbf16, #tpu.memory_space<vmem>>, %arg7: memref<8x16xf32, #tpu.memory_space<vmem>>) attributes {dimension_semantics = [#tpu.dimension_semantics<parallel>, #tpu.dimension_semantics<parallel>, #tpu.dimension_semantics<arbitrary>], iteration_bounds = array<i64: 1, 1, 1>, scalar_prefetch = 0 : i64, scratch_operands = 1 : i64, tpu.core_type = #tpu.core_type<tc>, window_params = [{transform_indices = @transform_0, window_bounds = array<i64: 8, 144>}, {transform_indices = @transform_1, window_bounds = array<i64: 144, 16>}, {transform_indices = @transform_2, window_bounds = array<i64: 1, 16>}, {transform_indices = @transform_3, window_bounds = array<i64: 8, 16>}]} {
    %c0_i32 = arith.constant 0 : i32
    %0 = arith.cmpi eq, %arg2, %c0_i32 : i32
    %1 = arith.extui %0 : i1 to i32
    %c0_i32_0 = arith.constant 0 : i32
    %2 = arith.cmpi ne, %1, %c0_i32_0 : i32
    scf.if %2 {
      %cst_10 = arith.constant 0.000000e+00 : f32
      %12 = vector.broadcast %cst_10 : f32 to vector<8x16xf32>
      %c0_11 = arith.constant 0 : index
      %c0_12 = arith.constant 0 : index
      %13 = vector.load %arg7[%c0_11, %c0_12] : memref<8x16xf32, #tpu.memory_space<vmem>>, vector<8x16xf32>
      tpu.vector_store %arg7[%c0_11, %c0_12], %12 {strides = array<i32>} : memref<8x16xf32, #tpu.memory_space<vmem>>, vector<8x16xf32>,
    } else {
    }
    %c0 = arith.constant 0 : index
    %c0_1 = arith.constant 0 : index
    %3 = vector.load %arg7[%c0, %c0_1] : memref<8x16xf32, #tpu.memory_space<vmem>>, vector<8x16xf32>
    %c0_2 = arith.constant 0 : index
    %c0_3 = arith.constant 0 : index
    %4 = vector.load %arg3[%c0_2, %c0_3] : memref<8x144xbf16, #tpu.memory_space<vmem>>, vector<8x144xbf16>
    %c0_4 = arith.constant 0 : index
    %c0_5 = arith.constant 0 : index
    %5 = vector.load %arg4[%c0_4, %c0_5] : memref<144x16xbf16, #tpu.memory_space<vmem>>, vector<144x16xbf16>
    %cst = arith.constant dense<0.000000e+00> : vector<8x16xf32>
    %6 = tpu.matmul %4, %5, %cst {dimension_numbers = #tpu.dot_dimension_numbers<[1], [0], [0], [1], [0, 0, 1, 1], [], []>} : vector<8x144xbf16>, vector<144x16xbf16>, vector<8x16xf32> -> vector<8x16xf32>
    %7 = arith.addf %3, %6 : vector<8x16xf32>
    %c0_6 = arith.constant 0 : index
    %c0_7 = arith.constant 0 : index
    %8 = vector.load %arg7[%c0_6, %c0_7] : memref<8x16xf32, #tpu.memory_space<vmem>>, vector<8x16xf32>
    tpu.vector_store %arg7[%c0_6, %c0_7], %7 {strides = array<i32>} : memref<8x16xf32, #tpu.memory_space<vmem>>, vector<8x16xf32>,
    %c0_i32_8 = arith.constant 0 : i32
    %9 = arith.cmpi eq, %arg2, %c0_i32_8 : i32
    %10 = arith.extui %9 : i1 to i32
    %c0_i32_9 = arith.constant 0 : i32
    %11 = arith.cmpi ne, %10, %c0_i32_9 : i32
    scf.if %11 {
      %c0_10 = arith.constant 0 : index
      %c0_11 = arith.constant 0 : index
      %12 = vector.load %arg7[%c0_10, %c0_11] : memref<8x16xf32, #tpu.memory_space<vmem>>, vector<8x16xf32>
      %c0_12 = arith.constant 0 : index
      %c0_13 = arith.constant 0 : index
      %13 = vector.load %arg5[%c0_12, %c0_13] : memref<1x16xf32, #tpu.memory_space<vmem>>, vector<1x16xf32>
      %14 = vector.broadcast %13 : vector<1x16xf32> to vector<8x16xf32>
      %15 = arith.addf %12, %14 : vector<8x16xf32>
      %cst_14 = arith.constant 0.000000e+00 : f32
      %16 = vector.broadcast %cst_14 : f32 to vector<8x16xf32>
      %17 = arith.maximumf %15, %16 : vector<8x16xf32>
      %18 = arith.truncf %17 : vector<8x16xf32> to vector<8x16xbf16>
      %c0_15 = arith.constant 0 : index
      %c0_16 = arith.constant 0 : index
      %19 = vector.load %arg6[%c0_15, %c0_16] : memref<8x16xbf16, #tpu.memory_space<vmem>>, vector<8x16xbf16>
      tpu.vector_store %arg6[%c0_15, %c0_16], %18 {strides = array<i32>} : memref<8x16xbf16, #tpu.memory_space<vmem>>, vector<8x16xbf16>,
    } else {
    }
    return
  }
  func.func @transform_0(%arg0: i32, %arg1: i32, %arg2: i32) -> (i32, i32) {
    %c0_i32 = arith.constant 0 : i32
    return %arg0, %arg2 : i32, i32
  }
  func.func @transform_1(%arg0: i32, %arg1: i32, %arg2: i32) -> (i32, i32) {
    %c0_i32 = arith.constant 0 : i32
    return %arg2, %arg1 : i32, i32
  }
  func.func @transform_2(%arg0: i32, %arg1: i32, %arg2: i32) -> (i32, i32) {
    %c0_i32 = arith.constant 0 : i32
    %c0_i32_0 = arith.constant 0 : i32
    return %c0_i32, %arg1 : i32, i32
  }
  func.func @transform_3(%arg0: i32, %arg1: i32, %arg2: i32) -> (i32, i32) {
    %c0_i32 = arith.constant 0 : i32
    return %arg0, %arg1 : i32, i32
  }
}

module attributes {stable_mosaic.version = 11 : i64} {
  func.func @_gemm_bn_kernel(%arg0: i32, %arg1: i32, %arg2: i32, %arg3: memref<8x8xbf16, #tpu.memory_space<vmem>>, %arg4: memref<8x16xbf16, #tpu.memory_space<vmem>>, %arg5: memref<1x16xf32, #tpu.memory_space<vmem>>, %arg6: memref<8x16xbf16, #tpu.memory_space<vmem>>, %arg7: memref<8x16xf32, #tpu.memory_space<vmem>>) attributes {dimension_semantics = [#tpu.dimension_semantics<parallel>, #tpu.dimension_semantics<parallel>, #tpu.dimension_semantics<arbitrary>], iteration_bounds = array<i64: 1, 1, 1>, scalar_prefetch = 0 : i64, scratch_operands = 1 : i64, tpu.core_type = #tpu.core_type<tc>, window_params = [{transform_indices = @transform_0, window_bounds = array<i64: 8, 8>}, {transform_indices = @transform_1, window_bounds = array<i64: 8, 16>}, {transform_indices = @transform_2, window_bounds = array<i64: 1, 16>}, {transform_indices = @transform_3, window_bounds = array<i64: 8, 16>}]} {
    %c0_i32 = arith.constant 0 : i32
    %0 = arith.cmpi eq, %arg2, %c0_i32 : i32
    %1 = arith.extui %0 : i1 to i32
    %c0_i32_0 = arith.constant 0 : i32
    %2 = arith.cmpi ne, %1, %c0_i32_0 : i32
    scf.if %2 {
      %cst_10 = arith.constant 0.000000e+00 : f32
      %12 = vector.broadcast %cst_10 : f32 to vector<8x16xf32>
      %c0_11 = arith.constant 0 : index
      %c0_12 = arith.constant 0 : index
      %13 = vector.load %arg7[%c0_11, %c0_12] : memref<8x16xf32, #tpu.memory_space<vmem>>, vector<8x16xf32>
      tpu.vector_store %arg7[%c0_11, %c0_12], %12 {strides = array<i32>} : memref<8x16xf32, #tpu.memory_space<vmem>>, vector<8x16xf32>,
    } else {
    }
    %c0 = arith.constant 0 : index
    %c0_1 = arith.constant 0 : index
    %3 = vector.load %arg7[%c0, %c0_1] : memref<8x16xf32, #tpu.memory_space<vmem>>, vector<8x16xf32>
    %c0_2 = arith.constant 0 : index
    %c0_3 = arith.constant 0 : index
    %4 = vector.load %arg3[%c0_2, %c0_3] : memref<8x8xbf16, #tpu.memory_space<vmem>>, vector<8x8xbf16>
    %c0_4 = arith.constant 0 : index
    %c0_5 = arith.constant 0 : index
    %5 = vector.load %arg4[%c0_4, %c0_5] : memref<8x16xbf16, #tpu.memory_space<vmem>>, vector<8x16xbf16>
    %cst = arith.constant dense<0.000000e+00> : vector<8x16xf32>
    %6 = tpu.matmul %4, %5, %cst {dimension_numbers = #tpu.dot_dimension_numbers<[1], [0], [0], [1], [0, 0, 1, 1], [], []>} : vector<8x8xbf16>, vector<8x16xbf16>, vector<8x16xf32> -> vector<8x16xf32>
    %7 = arith.addf %3, %6 : vector<8x16xf32>
    %c0_6 = arith.constant 0 : index
    %c0_7 = arith.constant 0 : index
    %8 = vector.load %arg7[%c0_6, %c0_7] : memref<8x16xf32, #tpu.memory_space<vmem>>, vector<8x16xf32>
    tpu.vector_store %arg7[%c0_6, %c0_7], %7 {strides = array<i32>} : memref<8x16xf32, #tpu.memory_space<vmem>>, vector<8x16xf32>,
    %c0_i32_8 = arith.constant 0 : i32
    %9 = arith.cmpi eq, %arg2, %c0_i32_8 : i32
    %10 = arith.extui %9 : i1 to i32
    %c0_i32_9 = arith.constant 0 : i32
    %11 = arith.cmpi ne, %10, %c0_i32_9 : i32
    scf.if %11 {
      %c0_10 = arith.constant 0 : index
      %c0_11 = arith.constant 0 : index
      %12 = vector.load %arg7[%c0_10, %c0_11] : memref<8x16xf32, #tpu.memory_space<vmem>>, vector<8x16xf32>
      %c0_12 = arith.constant 0 : index
      %c0_13 = arith.constant 0 : index
      %13 = vector.load %arg5[%c0_12, %c0_13] : memref<1x16xf32, #tpu.memory_space<vmem>>, vector<1x16xf32>
      %14 = vector.broadcast %13 : vector<1x16xf32> to vector<8x16xf32>
      %15 = arith.addf %12, %14 : vector<8x16xf32>
      %16 = arith.truncf %15 : vector<8x16xf32> to vector<8x16xbf16>
      %c0_14 = arith.constant 0 : index
      %c0_15 = arith.constant 0 : index
      %17 = vector.load %arg6[%c0_14, %c0_15] : memref<8x16xbf16, #tpu.memory_space<vmem>>, vector<8x16xbf16>
      tpu.vector_store %arg6[%c0_14, %c0_15], %16 {strides = array<i32>} : memref<8x16xbf16, #tpu.memory_space<vmem>>, vector<8x16xbf16>,
    } else {
    }
    return
  }
  func.func @transform_0(%arg0: i32, %arg1: i32, %arg2: i32) -> (i32, i32) {
    %c0_i32 = arith.constant 0 : i32
    return %arg0, %arg2 : i32, i32
  }
  func.func @transform_1(%arg0: i32, %arg1: i32, %arg2: i32) -> (i32, i32) {
    %c0_i32 = arith.constant 0 : i32
    return %arg2, %arg1 : i32, i32
  }
  func.func @transform_2(%arg0: i32, %arg1: i32, %arg2: i32) -> (i32, i32) {
    %c0_i32 = arith.constant 0 : i32
    %c0_i32_0 = arith.constant 0 : i32
    return %c0_i32, %arg1 : i32, i32
  }
  func.func @transform_3(%arg0: i32, %arg1: i32, %arg2: i32) -> (i32, i32) {
    %c0_i32 = arith.constant 0 : i32
    return %arg0, %arg1 : i32, i32
  }
}

module attributes {stable_mosaic.version = 11 : i64} {
  func.func @_gemm_bn_kernel(%arg0: i32, %arg1: i32, %arg2: i32, %arg3: memref<2x144xbf16, #tpu.memory_space<vmem>>, %arg4: memref<144x32xbf16, #tpu.memory_space<vmem>>, %arg5: memref<1x32xf32, #tpu.memory_space<vmem>>, %arg6: memref<2x32xbf16, #tpu.memory_space<vmem>>, %arg7: memref<2x32xf32, #tpu.memory_space<vmem>>) attributes {dimension_semantics = [#tpu.dimension_semantics<parallel>, #tpu.dimension_semantics<parallel>, #tpu.dimension_semantics<arbitrary>], iteration_bounds = array<i64: 1, 1, 1>, scalar_prefetch = 0 : i64, scratch_operands = 1 : i64, tpu.core_type = #tpu.core_type<tc>, window_params = [{transform_indices = @transform_0, window_bounds = array<i64: 2, 144>}, {transform_indices = @transform_1, window_bounds = array<i64: 144, 32>}, {transform_indices = @transform_2, window_bounds = array<i64: 1, 32>}, {transform_indices = @transform_3, window_bounds = array<i64: 2, 32>}]} {
    %c0_i32 = arith.constant 0 : i32
    %0 = arith.cmpi eq, %arg2, %c0_i32 : i32
    %1 = arith.extui %0 : i1 to i32
    %c0_i32_0 = arith.constant 0 : i32
    %2 = arith.cmpi ne, %1, %c0_i32_0 : i32
    scf.if %2 {
      %cst_10 = arith.constant 0.000000e+00 : f32
      %12 = vector.broadcast %cst_10 : f32 to vector<2x32xf32>
      %c0_11 = arith.constant 0 : index
      %c0_12 = arith.constant 0 : index
      %13 = vector.load %arg7[%c0_11, %c0_12] : memref<2x32xf32, #tpu.memory_space<vmem>>, vector<2x32xf32>
      tpu.vector_store %arg7[%c0_11, %c0_12], %12 {strides = array<i32>} : memref<2x32xf32, #tpu.memory_space<vmem>>, vector<2x32xf32>,
    } else {
    }
    %c0 = arith.constant 0 : index
    %c0_1 = arith.constant 0 : index
    %3 = vector.load %arg7[%c0, %c0_1] : memref<2x32xf32, #tpu.memory_space<vmem>>, vector<2x32xf32>
    %c0_2 = arith.constant 0 : index
    %c0_3 = arith.constant 0 : index
    %4 = vector.load %arg3[%c0_2, %c0_3] : memref<2x144xbf16, #tpu.memory_space<vmem>>, vector<2x144xbf16>
    %c0_4 = arith.constant 0 : index
    %c0_5 = arith.constant 0 : index
    %5 = vector.load %arg4[%c0_4, %c0_5] : memref<144x32xbf16, #tpu.memory_space<vmem>>, vector<144x32xbf16>
    %cst = arith.constant dense<0.000000e+00> : vector<2x32xf32>
    %6 = tpu.matmul %4, %5, %cst {dimension_numbers = #tpu.dot_dimension_numbers<[1], [0], [0], [1], [0, 0, 1, 1], [], []>} : vector<2x144xbf16>, vector<144x32xbf16>, vector<2x32xf32> -> vector<2x32xf32>
    %7 = arith.addf %3, %6 : vector<2x32xf32>
    %c0_6 = arith.constant 0 : index
    %c0_7 = arith.constant 0 : index
    %8 = vector.load %arg7[%c0_6, %c0_7] : memref<2x32xf32, #tpu.memory_space<vmem>>, vector<2x32xf32>
    tpu.vector_store %arg7[%c0_6, %c0_7], %7 {strides = array<i32>} : memref<2x32xf32, #tpu.memory_space<vmem>>, vector<2x32xf32>,
    %c0_i32_8 = arith.constant 0 : i32
    %9 = arith.cmpi eq, %arg2, %c0_i32_8 : i32
    %10 = arith.extui %9 : i1 to i32
    %c0_i32_9 = arith.constant 0 : i32
    %11 = arith.cmpi ne, %10, %c0_i32_9 : i32
    scf.if %11 {
      %c0_10 = arith.constant 0 : index
      %c0_11 = arith.constant 0 : index
      %12 = vector.load %arg7[%c0_10, %c0_11] : memref<2x32xf32, #tpu.memory_space<vmem>>, vector<2x32xf32>
      %c0_12 = arith.constant 0 : index
      %c0_13 = arith.constant 0 : index
      %13 = vector.load %arg5[%c0_12, %c0_13] : memref<1x32xf32, #tpu.memory_space<vmem>>, vector<1x32xf32>
      %14 = vector.broadcast %13 : vector<1x32xf32> to vector<2x32xf32>
      %15 = arith.addf %12, %14 : vector<2x32xf32>
      %cst_14 = arith.constant 0.000000e+00 : f32
      %16 = vector.broadcast %cst_14 : f32 to vector<2x32xf32>
      %17 = arith.maximumf %15, %16 : vector<2x32xf32>
      %18 = arith.truncf %17 : vector<2x32xf32> to vector<2x32xbf16>
      %c0_15 = arith.constant 0 : index
      %c0_16 = arith.constant 0 : index
      %19 = vector.load %arg6[%c0_15, %c0_16] : memref<2x32xbf16, #tpu.memory_space<vmem>>, vector<2x32xbf16>
      tpu.vector_store %arg6[%c0_15, %c0_16], %18 {strides = array<i32>} : memref<2x32xbf16, #tpu.memory_space<vmem>>, vector<2x32xbf16>,
    } else {
    }
    return
  }
  func.func @transform_0(%arg0: i32, %arg1: i32, %arg2: i32) -> (i32, i32) {
    %c0_i32 = arith.constant 0 : i32
    return %arg0, %arg2 : i32, i32
  }
  func.func @transform_1(%arg0: i32, %arg1: i32, %arg2: i32) -> (i32, i32) {
    %c0_i32 = arith.constant 0 : i32
    return %arg2, %arg1 : i32, i32
  }
  func.func @transform_2(%arg0: i32, %arg1: i32, %arg2: i32) -> (i32, i32) {
    %c0_i32 = arith.constant 0 : i32
    %c0_i32_0 = arith.constant 0 : i32
    return %c0_i32, %arg1 : i32, i32
  }
  func.func @transform_3(%arg0: i32, %arg1: i32, %arg2: i32) -> (i32, i32) {
    %c0_i32 = arith.constant 0 : i32
    return %arg0, %arg1 : i32, i32
  }
}

module attributes {stable_mosaic.version = 11 : i64} {
  func.func @_gemm_bn_kernel(%arg0: i32, %arg1: i32, %arg2: i32, %arg3: memref<2x16xbf16, #tpu.memory_space<vmem>>, %arg4: memref<16x32xbf16, #tpu.memory_space<vmem>>, %arg5: memref<1x32xf32, #tpu.memory_space<vmem>>, %arg6: memref<2x32xbf16, #tpu.memory_space<vmem>>, %arg7: memref<2x32xf32, #tpu.memory_space<vmem>>) attributes {dimension_semantics = [#tpu.dimension_semantics<parallel>, #tpu.dimension_semantics<parallel>, #tpu.dimension_semantics<arbitrary>], iteration_bounds = array<i64: 1, 1, 1>, scalar_prefetch = 0 : i64, scratch_operands = 1 : i64, tpu.core_type = #tpu.core_type<tc>, window_params = [{transform_indices = @transform_0, window_bounds = array<i64: 2, 16>}, {transform_indices = @transform_1, window_bounds = array<i64: 16, 32>}, {transform_indices = @transform_2, window_bounds = array<i64: 1, 32>}, {transform_indices = @transform_3, window_bounds = array<i64: 2, 32>}]} {
    %c0_i32 = arith.constant 0 : i32
    %0 = arith.cmpi eq, %arg2, %c0_i32 : i32
    %1 = arith.extui %0 : i1 to i32
    %c0_i32_0 = arith.constant 0 : i32
    %2 = arith.cmpi ne, %1, %c0_i32_0 : i32
    scf.if %2 {
      %cst_10 = arith.constant 0.000000e+00 : f32
      %12 = vector.broadcast %cst_10 : f32 to vector<2x32xf32>
      %c0_11 = arith.constant 0 : index
      %c0_12 = arith.constant 0 : index
      %13 = vector.load %arg7[%c0_11, %c0_12] : memref<2x32xf32, #tpu.memory_space<vmem>>, vector<2x32xf32>
      tpu.vector_store %arg7[%c0_11, %c0_12], %12 {strides = array<i32>} : memref<2x32xf32, #tpu.memory_space<vmem>>, vector<2x32xf32>,
    } else {
    }
    %c0 = arith.constant 0 : index
    %c0_1 = arith.constant 0 : index
    %3 = vector.load %arg7[%c0, %c0_1] : memref<2x32xf32, #tpu.memory_space<vmem>>, vector<2x32xf32>
    %c0_2 = arith.constant 0 : index
    %c0_3 = arith.constant 0 : index
    %4 = vector.load %arg3[%c0_2, %c0_3] : memref<2x16xbf16, #tpu.memory_space<vmem>>, vector<2x16xbf16>
    %c0_4 = arith.constant 0 : index
    %c0_5 = arith.constant 0 : index
    %5 = vector.load %arg4[%c0_4, %c0_5] : memref<16x32xbf16, #tpu.memory_space<vmem>>, vector<16x32xbf16>
    %cst = arith.constant dense<0.000000e+00> : vector<2x32xf32>
    %6 = tpu.matmul %4, %5, %cst {dimension_numbers = #tpu.dot_dimension_numbers<[1], [0], [0], [1], [0, 0, 1, 1], [], []>} : vector<2x16xbf16>, vector<16x32xbf16>, vector<2x32xf32> -> vector<2x32xf32>
    %7 = arith.addf %3, %6 : vector<2x32xf32>
    %c0_6 = arith.constant 0 : index
    %c0_7 = arith.constant 0 : index
    %8 = vector.load %arg7[%c0_6, %c0_7] : memref<2x32xf32, #tpu.memory_space<vmem>>, vector<2x32xf32>
    tpu.vector_store %arg7[%c0_6, %c0_7], %7 {strides = array<i32>} : memref<2x32xf32, #tpu.memory_space<vmem>>, vector<2x32xf32>,
    %c0_i32_8 = arith.constant 0 : i32
    %9 = arith.cmpi eq, %arg2, %c0_i32_8 : i32
    %10 = arith.extui %9 : i1 to i32
    %c0_i32_9 = arith.constant 0 : i32
    %11 = arith.cmpi ne, %10, %c0_i32_9 : i32
    scf.if %11 {
      %c0_10 = arith.constant 0 : index
      %c0_11 = arith.constant 0 : index
      %12 = vector.load %arg7[%c0_10, %c0_11] : memref<2x32xf32, #tpu.memory_space<vmem>>, vector<2x32xf32>
      %c0_12 = arith.constant 0 : index
      %c0_13 = arith.constant 0 : index
      %13 = vector.load %arg5[%c0_12, %c0_13] : memref<1x32xf32, #tpu.memory_space<vmem>>, vector<1x32xf32>
      %14 = vector.broadcast %13 : vector<1x32xf32> to vector<2x32xf32>
      %15 = arith.addf %12, %14 : vector<2x32xf32>
      %16 = arith.truncf %15 : vector<2x32xf32> to vector<2x32xbf16>
      %c0_14 = arith.constant 0 : index
      %c0_15 = arith.constant 0 : index
      %17 = vector.load %arg6[%c0_14, %c0_15] : memref<2x32xbf16, #tpu.memory_space<vmem>>, vector<2x32xbf16>
      tpu.vector_store %arg6[%c0_14, %c0_15], %16 {strides = array<i32>} : memref<2x32xbf16, #tpu.memory_space<vmem>>, vector<2x32xbf16>,
    } else {
    }
    return
  }
  func.func @transform_0(%arg0: i32, %arg1: i32, %arg2: i32) -> (i32, i32) {
    %c0_i32 = arith.constant 0 : i32
    return %arg0, %arg2 : i32, i32
  }
  func.func @transform_1(%arg0: i32, %arg1: i32, %arg2: i32) -> (i32, i32) {
    %c0_i32 = arith.constant 0 : i32
    return %arg2, %arg1 : i32, i32
  }
  func.func @transform_2(%arg0: i32, %arg1: i32, %arg2: i32) -> (i32, i32) {
    %c0_i32 = arith.constant 0 : i32
    %c0_i32_0 = arith.constant 0 : i32
    return %c0_i32, %arg1 : i32, i32
  }
  func.func @transform_3(%arg0: i32, %arg1: i32, %arg2: i32) -> (i32, i32) {
    %c0_i32 = arith.constant 0 : i32
    return %arg0, %arg1 : i32, i32
  }
}

module attributes {stable_mosaic.version = 11 : i64} {
  func.func @_gemm_bn_res_kernel(%arg0: i32, %arg1: i32, %arg2: i32, %arg3: memref<2x288xbf16, #tpu.memory_space<vmem>>, %arg4: memref<288x32xbf16, #tpu.memory_space<vmem>>, %arg5: memref<1x32xf32, #tpu.memory_space<vmem>>, %arg6: memref<2x32xbf16, #tpu.memory_space<vmem>>, %arg7: memref<2x32xbf16, #tpu.memory_space<vmem>>, %arg8: memref<2x32xf32, #tpu.memory_space<vmem>>) attributes {dimension_semantics = [#tpu.dimension_semantics<parallel>, #tpu.dimension_semantics<parallel>, #tpu.dimension_semantics<arbitrary>], iteration_bounds = array<i64: 1, 1, 1>, scalar_prefetch = 0 : i64, scratch_operands = 1 : i64, tpu.core_type = #tpu.core_type<tc>, window_params = [{transform_indices = @transform_0, window_bounds = array<i64: 2, 288>}, {transform_indices = @transform_1, window_bounds = array<i64: 288, 32>}, {transform_indices = @transform_2, window_bounds = array<i64: 1, 32>}, {transform_indices = @transform_3, window_bounds = array<i64: 2, 32>}, {transform_indices = @transform_4, window_bounds = array<i64: 2, 32>}]} {
    %c0_i32 = arith.constant 0 : i32
    %0 = arith.cmpi eq, %arg2, %c0_i32 : i32
    %1 = arith.extui %0 : i1 to i32
    %c0_i32_0 = arith.constant 0 : i32
    %2 = arith.cmpi ne, %1, %c0_i32_0 : i32
    scf.if %2 {
      %cst_10 = arith.constant 0.000000e+00 : f32
      %12 = vector.broadcast %cst_10 : f32 to vector<2x32xf32>
      %c0_11 = arith.constant 0 : index
      %c0_12 = arith.constant 0 : index
      %13 = vector.load %arg8[%c0_11, %c0_12] : memref<2x32xf32, #tpu.memory_space<vmem>>, vector<2x32xf32>
      tpu.vector_store %arg8[%c0_11, %c0_12], %12 {strides = array<i32>} : memref<2x32xf32, #tpu.memory_space<vmem>>, vector<2x32xf32>,
    } else {
    }
    %c0 = arith.constant 0 : index
    %c0_1 = arith.constant 0 : index
    %3 = vector.load %arg8[%c0, %c0_1] : memref<2x32xf32, #tpu.memory_space<vmem>>, vector<2x32xf32>
    %c0_2 = arith.constant 0 : index
    %c0_3 = arith.constant 0 : index
    %4 = vector.load %arg3[%c0_2, %c0_3] : memref<2x288xbf16, #tpu.memory_space<vmem>>, vector<2x288xbf16>
    %c0_4 = arith.constant 0 : index
    %c0_5 = arith.constant 0 : index
    %5 = vector.load %arg4[%c0_4, %c0_5] : memref<288x32xbf16, #tpu.memory_space<vmem>>, vector<288x32xbf16>
    %cst = arith.constant dense<0.000000e+00> : vector<2x32xf32>
    %6 = tpu.matmul %4, %5, %cst {dimension_numbers = #tpu.dot_dimension_numbers<[1], [0], [0], [1], [0, 0, 1, 1], [], []>} : vector<2x288xbf16>, vector<288x32xbf16>, vector<2x32xf32> -> vector<2x32xf32>
    %7 = arith.addf %3, %6 : vector<2x32xf32>
    %c0_6 = arith.constant 0 : index
    %c0_7 = arith.constant 0 : index
    %8 = vector.load %arg8[%c0_6, %c0_7] : memref<2x32xf32, #tpu.memory_space<vmem>>, vector<2x32xf32>
    tpu.vector_store %arg8[%c0_6, %c0_7], %7 {strides = array<i32>} : memref<2x32xf32, #tpu.memory_space<vmem>>, vector<2x32xf32>,
    %c0_i32_8 = arith.constant 0 : i32
    %9 = arith.cmpi eq, %arg2, %c0_i32_8 : i32
    %10 = arith.extui %9 : i1 to i32
    %c0_i32_9 = arith.constant 0 : i32
    %11 = arith.cmpi ne, %10, %c0_i32_9 : i32
    scf.if %11 {
      %c0_10 = arith.constant 0 : index
      %c0_11 = arith.constant 0 : index
      %12 = vector.load %arg8[%c0_10, %c0_11] : memref<2x32xf32, #tpu.memory_space<vmem>>, vector<2x32xf32>
      %c0_12 = arith.constant 0 : index
      %c0_13 = arith.constant 0 : index
      %13 = vector.load %arg5[%c0_12, %c0_13] : memref<1x32xf32, #tpu.memory_space<vmem>>, vector<1x32xf32>
      %14 = vector.broadcast %13 : vector<1x32xf32> to vector<2x32xf32>
      %15 = arith.addf %12, %14 : vector<2x32xf32>
      %c0_14 = arith.constant 0 : index
      %c0_15 = arith.constant 0 : index
      %16 = vector.load %arg6[%c0_14, %c0_15] : memref<2x32xbf16, #tpu.memory_space<vmem>>, vector<2x32xbf16>
      %17 = arith.extf %16 : vector<2x32xbf16> to vector<2x32xf32>
      %18 = arith.addf %15, %17 : vector<2x32xf32>
      %cst_16 = arith.constant 0.000000e+00 : f32
      %19 = vector.broadcast %cst_16 : f32 to vector<2x32xf32>
      %20 = arith.maximumf %18, %19 : vector<2x32xf32>
      %21 = arith.truncf %20 : vector<2x32xf32> to vector<2x32xbf16>
      %c0_17 = arith.constant 0 : index
      %c0_18 = arith.constant 0 : index
      %22 = vector.load %arg7[%c0_17, %c0_18] : memref<2x32xbf16, #tpu.memory_space<vmem>>, vector<2x32xbf16>
      tpu.vector_store %arg7[%c0_17, %c0_18], %21 {strides = array<i32>} : memref<2x32xbf16, #tpu.memory_space<vmem>>, vector<2x32xbf16>,
    } else {
    }
    return
  }
  func.func @transform_0(%arg0: i32, %arg1: i32, %arg2: i32) -> (i32, i32) {
    %c0_i32 = arith.constant 0 : i32
    return %arg0, %arg2 : i32, i32
  }
  func.func @transform_1(%arg0: i32, %arg1: i32, %arg2: i32) -> (i32, i32) {
    %c0_i32 = arith.constant 0 : i32
    return %arg2, %arg1 : i32, i32
  }
  func.func @transform_2(%arg0: i32, %arg1: i32, %arg2: i32) -> (i32, i32) {
    %c0_i32 = arith.constant 0 : i32
    %c0_i32_0 = arith.constant 0 : i32
    return %c0_i32, %arg1 : i32, i32
  }
  func.func @transform_3(%arg0: i32, %arg1: i32, %arg2: i32) -> (i32, i32) {
    %c0_i32 = arith.constant 0 : i32
    return %arg0, %arg1 : i32, i32
  }
  func.func @transform_4(%arg0: i32, %arg1: i32, %arg2: i32) -> (i32, i32) {
    %c0_i32 = arith.constant 0 : i32
    return %arg0, %arg1 : i32, i32
  }
}

module attributes {stable_mosaic.version = 11 : i64} {
  func.func @_gemm_bn_kernel(%arg0: i32, %arg1: i32, %arg2: i32, %arg3: memref<2x288xbf16, #tpu.memory_space<vmem>>, %arg4: memref<288x32xbf16, #tpu.memory_space<vmem>>, %arg5: memref<1x32xf32, #tpu.memory_space<vmem>>, %arg6: memref<2x32xbf16, #tpu.memory_space<vmem>>, %arg7: memref<2x32xf32, #tpu.memory_space<vmem>>) attributes {dimension_semantics = [#tpu.dimension_semantics<parallel>, #tpu.dimension_semantics<parallel>, #tpu.dimension_semantics<arbitrary>], iteration_bounds = array<i64: 1, 1, 1>, scalar_prefetch = 0 : i64, scratch_operands = 1 : i64, tpu.core_type = #tpu.core_type<tc>, window_params = [{transform_indices = @transform_0, window_bounds = array<i64: 2, 288>}, {transform_indices = @transform_1, window_bounds = array<i64: 288, 32>}, {transform_indices = @transform_2, window_bounds = array<i64: 1, 32>}, {transform_indices = @transform_3, window_bounds = array<i64: 2, 32>}]} {
    %c0_i32 = arith.constant 0 : i32
    %0 = arith.cmpi eq, %arg2, %c0_i32 : i32
    %1 = arith.extui %0 : i1 to i32
    %c0_i32_0 = arith.constant 0 : i32
    %2 = arith.cmpi ne, %1, %c0_i32_0 : i32
    scf.if %2 {
      %cst_10 = arith.constant 0.000000e+00 : f32
      %12 = vector.broadcast %cst_10 : f32 to vector<2x32xf32>
      %c0_11 = arith.constant 0 : index
      %c0_12 = arith.constant 0 : index
      %13 = vector.load %arg7[%c0_11, %c0_12] : memref<2x32xf32, #tpu.memory_space<vmem>>, vector<2x32xf32>
      tpu.vector_store %arg7[%c0_11, %c0_12], %12 {strides = array<i32>} : memref<2x32xf32, #tpu.memory_space<vmem>>, vector<2x32xf32>,
    } else {
    }
    %c0 = arith.constant 0 : index
    %c0_1 = arith.constant 0 : index
    %3 = vector.load %arg7[%c0, %c0_1] : memref<2x32xf32, #tpu.memory_space<vmem>>, vector<2x32xf32>
    %c0_2 = arith.constant 0 : index
    %c0_3 = arith.constant 0 : index
    %4 = vector.load %arg3[%c0_2, %c0_3] : memref<2x288xbf16, #tpu.memory_space<vmem>>, vector<2x288xbf16>
    %c0_4 = arith.constant 0 : index
    %c0_5 = arith.constant 0 : index
    %5 = vector.load %arg4[%c0_4, %c0_5] : memref<288x32xbf16, #tpu.memory_space<vmem>>, vector<288x32xbf16>
    %cst = arith.constant dense<0.000000e+00> : vector<2x32xf32>
    %6 = tpu.matmul %4, %5, %cst {dimension_numbers = #tpu.dot_dimension_numbers<[1], [0], [0], [1], [0, 0, 1, 1], [], []>} : vector<2x288xbf16>, vector<288x32xbf16>, vector<2x32xf32> -> vector<2x32xf32>
    %7 = arith.addf %3, %6 : vector<2x32xf32>
    %c0_6 = arith.constant 0 : index
    %c0_7 = arith.constant 0 : index
    %8 = vector.load %arg7[%c0_6, %c0_7] : memref<2x32xf32, #tpu.memory_space<vmem>>, vector<2x32xf32>
    tpu.vector_store %arg7[%c0_6, %c0_7], %7 {strides = array<i32>} : memref<2x32xf32, #tpu.memory_space<vmem>>, vector<2x32xf32>,
    %c0_i32_8 = arith.constant 0 : i32
    %9 = arith.cmpi eq, %arg2, %c0_i32_8 : i32
    %10 = arith.extui %9 : i1 to i32
    %c0_i32_9 = arith.constant 0 : i32
    %11 = arith.cmpi ne, %10, %c0_i32_9 : i32
    scf.if %11 {
      %c0_10 = arith.constant 0 : index
      %c0_11 = arith.constant 0 : index
      %12 = vector.load %arg7[%c0_10, %c0_11] : memref<2x32xf32, #tpu.memory_space<vmem>>, vector<2x32xf32>
      %c0_12 = arith.constant 0 : index
      %c0_13 = arith.constant 0 : index
      %13 = vector.load %arg5[%c0_12, %c0_13] : memref<1x32xf32, #tpu.memory_space<vmem>>, vector<1x32xf32>
      %14 = vector.broadcast %13 : vector<1x32xf32> to vector<2x32xf32>
      %15 = arith.addf %12, %14 : vector<2x32xf32>
      %cst_14 = arith.constant 0.000000e+00 : f32
      %16 = vector.broadcast %cst_14 : f32 to vector<2x32xf32>
      %17 = arith.maximumf %15, %16 : vector<2x32xf32>
      %18 = arith.truncf %17 : vector<2x32xf32> to vector<2x32xbf16>
      %c0_15 = arith.constant 0 : index
      %c0_16 = arith.constant 0 : index
      %19 = vector.load %arg6[%c0_15, %c0_16] : memref<2x32xbf16, #tpu.memory_space<vmem>>, vector<2x32xbf16>
      tpu.vector_store %arg6[%c0_15, %c0_16], %18 {strides = array<i32>} : memref<2x32xbf16, #tpu.memory_space<vmem>>, vector<2x32xbf16>,
    } else {
    }
    return
  }
  func.func @transform_0(%arg0: i32, %arg1: i32, %arg2: i32) -> (i32, i32) {
    %c0_i32 = arith.constant 0 : i32
    return %arg0, %arg2 : i32, i32
  }
  func.func @transform_1(%arg0: i32, %arg1: i32, %arg2: i32) -> (i32, i32) {
    %c0_i32 = arith.constant 0 : i32
    return %arg2, %arg1 : i32, i32
  }
  func.func @transform_2(%arg0: i32, %arg1: i32, %arg2: i32) -> (i32, i32) {
    %c0_i32 = arith.constant 0 : i32
    %c0_i32_0 = arith.constant 0 : i32
    return %c0_i32, %arg1 : i32, i32
  }
  func.func @transform_3(%arg0: i32, %arg1: i32, %arg2: i32) -> (i32, i32) {
    %c0_i32 = arith.constant 0 : i32
    return %arg0, %arg1 : i32, i32
  }
}

module attributes {stable_mosaic.version = 11 : i64} {
  func.func @_gemm_bn_kernel(%arg0: i32, %arg1: i32, %arg2: i32, %arg3: memref<2x288xbf16, #tpu.memory_space<vmem>>, %arg4: memref<288x64xbf16, #tpu.memory_space<vmem>>, %arg5: memref<1x64xf32, #tpu.memory_space<vmem>>, %arg6: memref<2x64xbf16, #tpu.memory_space<vmem>>, %arg7: memref<2x64xf32, #tpu.memory_space<vmem>>) attributes {dimension_semantics = [#tpu.dimension_semantics<parallel>, #tpu.dimension_semantics<parallel>, #tpu.dimension_semantics<arbitrary>], iteration_bounds = array<i64: 1, 1, 1>, scalar_prefetch = 0 : i64, scratch_operands = 1 : i64, tpu.core_type = #tpu.core_type<tc>, window_params = [{transform_indices = @transform_0, window_bounds = array<i64: 2, 288>}, {transform_indices = @transform_1, window_bounds = array<i64: 288, 64>}, {transform_indices = @transform_2, window_bounds = array<i64: 1, 64>}, {transform_indices = @transform_3, window_bounds = array<i64: 2, 64>}]} {
    %c0_i32 = arith.constant 0 : i32
    %0 = arith.cmpi eq, %arg2, %c0_i32 : i32
    %1 = arith.extui %0 : i1 to i32
    %c0_i32_0 = arith.constant 0 : i32
    %2 = arith.cmpi ne, %1, %c0_i32_0 : i32
    scf.if %2 {
      %cst_10 = arith.constant 0.000000e+00 : f32
      %12 = vector.broadcast %cst_10 : f32 to vector<2x64xf32>
      %c0_11 = arith.constant 0 : index
      %c0_12 = arith.constant 0 : index
      %13 = vector.load %arg7[%c0_11, %c0_12] : memref<2x64xf32, #tpu.memory_space<vmem>>, vector<2x64xf32>
      tpu.vector_store %arg7[%c0_11, %c0_12], %12 {strides = array<i32>} : memref<2x64xf32, #tpu.memory_space<vmem>>, vector<2x64xf32>,
    } else {
    }
    %c0 = arith.constant 0 : index
    %c0_1 = arith.constant 0 : index
    %3 = vector.load %arg7[%c0, %c0_1] : memref<2x64xf32, #tpu.memory_space<vmem>>, vector<2x64xf32>
    %c0_2 = arith.constant 0 : index
    %c0_3 = arith.constant 0 : index
    %4 = vector.load %arg3[%c0_2, %c0_3] : memref<2x288xbf16, #tpu.memory_space<vmem>>, vector<2x288xbf16>
    %c0_4 = arith.constant 0 : index
    %c0_5 = arith.constant 0 : index
    %5 = vector.load %arg4[%c0_4, %c0_5] : memref<288x64xbf16, #tpu.memory_space<vmem>>, vector<288x64xbf16>
    %cst = arith.constant dense<0.000000e+00> : vector<2x64xf32>
    %6 = tpu.matmul %4, %5, %cst {dimension_numbers = #tpu.dot_dimension_numbers<[1], [0], [0], [1], [0, 0, 1, 1], [], []>} : vector<2x288xbf16>, vector<288x64xbf16>, vector<2x64xf32> -> vector<2x64xf32>
    %7 = arith.addf %3, %6 : vector<2x64xf32>
    %c0_6 = arith.constant 0 : index
    %c0_7 = arith.constant 0 : index
    %8 = vector.load %arg7[%c0_6, %c0_7] : memref<2x64xf32, #tpu.memory_space<vmem>>, vector<2x64xf32>
    tpu.vector_store %arg7[%c0_6, %c0_7], %7 {strides = array<i32>} : memref<2x64xf32, #tpu.memory_space<vmem>>, vector<2x64xf32>,
    %c0_i32_8 = arith.constant 0 : i32
    %9 = arith.cmpi eq, %arg2, %c0_i32_8 : i32
    %10 = arith.extui %9 : i1 to i32
    %c0_i32_9 = arith.constant 0 : i32
    %11 = arith.cmpi ne, %10, %c0_i32_9 : i32
    scf.if %11 {
      %c0_10 = arith.constant 0 : index
      %c0_11 = arith.constant 0 : index
      %12 = vector.load %arg7[%c0_10, %c0_11] : memref<2x64xf32, #tpu.memory_space<vmem>>, vector<2x64xf32>
      %c0_12 = arith.constant 0 : index
      %c0_13 = arith.constant 0 : index
      %13 = vector.load %arg5[%c0_12, %c0_13] : memref<1x64xf32, #tpu.memory_space<vmem>>, vector<1x64xf32>
      %14 = vector.broadcast %13 : vector<1x64xf32> to vector<2x64xf32>
      %15 = arith.addf %12, %14 : vector<2x64xf32>
      %cst_14 = arith.constant 0.000000e+00 : f32
      %16 = vector.broadcast %cst_14 : f32 to vector<2x64xf32>
      %17 = arith.maximumf %15, %16 : vector<2x64xf32>
      %18 = arith.truncf %17 : vector<2x64xf32> to vector<2x64xbf16>
      %c0_15 = arith.constant 0 : index
      %c0_16 = arith.constant 0 : index
      %19 = vector.load %arg6[%c0_15, %c0_16] : memref<2x64xbf16, #tpu.memory_space<vmem>>, vector<2x64xbf16>
      tpu.vector_store %arg6[%c0_15, %c0_16], %18 {strides = array<i32>} : memref<2x64xbf16, #tpu.memory_space<vmem>>, vector<2x64xbf16>,
    } else {
    }
    return
  }
  func.func @transform_0(%arg0: i32, %arg1: i32, %arg2: i32) -> (i32, i32) {
    %c0_i32 = arith.constant 0 : i32
    return %arg0, %arg2 : i32, i32
  }
  func.func @transform_1(%arg0: i32, %arg1: i32, %arg2: i32) -> (i32, i32) {
    %c0_i32 = arith.constant 0 : i32
    return %arg2, %arg1 : i32, i32
  }
  func.func @transform_2(%arg0: i32, %arg1: i32, %arg2: i32) -> (i32, i32) {
    %c0_i32 = arith.constant 0 : i32
    %c0_i32_0 = arith.constant 0 : i32
    return %c0_i32, %arg1 : i32, i32
  }
  func.func @transform_3(%arg0: i32, %arg1: i32, %arg2: i32) -> (i32, i32) {
    %c0_i32 = arith.constant 0 : i32
    return %arg0, %arg1 : i32, i32
  }
}

module attributes {stable_mosaic.version = 11 : i64} {
  func.func @_gemm_bn_kernel(%arg0: i32, %arg1: i32, %arg2: i32, %arg3: memref<2x32xbf16, #tpu.memory_space<vmem>>, %arg4: memref<32x64xbf16, #tpu.memory_space<vmem>>, %arg5: memref<1x64xf32, #tpu.memory_space<vmem>>, %arg6: memref<2x64xbf16, #tpu.memory_space<vmem>>, %arg7: memref<2x64xf32, #tpu.memory_space<vmem>>) attributes {dimension_semantics = [#tpu.dimension_semantics<parallel>, #tpu.dimension_semantics<parallel>, #tpu.dimension_semantics<arbitrary>], iteration_bounds = array<i64: 1, 1, 1>, scalar_prefetch = 0 : i64, scratch_operands = 1 : i64, tpu.core_type = #tpu.core_type<tc>, window_params = [{transform_indices = @transform_0, window_bounds = array<i64: 2, 32>}, {transform_indices = @transform_1, window_bounds = array<i64: 32, 64>}, {transform_indices = @transform_2, window_bounds = array<i64: 1, 64>}, {transform_indices = @transform_3, window_bounds = array<i64: 2, 64>}]} {
    %c0_i32 = arith.constant 0 : i32
    %0 = arith.cmpi eq, %arg2, %c0_i32 : i32
    %1 = arith.extui %0 : i1 to i32
    %c0_i32_0 = arith.constant 0 : i32
    %2 = arith.cmpi ne, %1, %c0_i32_0 : i32
    scf.if %2 {
      %cst_10 = arith.constant 0.000000e+00 : f32
      %12 = vector.broadcast %cst_10 : f32 to vector<2x64xf32>
      %c0_11 = arith.constant 0 : index
      %c0_12 = arith.constant 0 : index
      %13 = vector.load %arg7[%c0_11, %c0_12] : memref<2x64xf32, #tpu.memory_space<vmem>>, vector<2x64xf32>
      tpu.vector_store %arg7[%c0_11, %c0_12], %12 {strides = array<i32>} : memref<2x64xf32, #tpu.memory_space<vmem>>, vector<2x64xf32>,
    } else {
    }
    %c0 = arith.constant 0 : index
    %c0_1 = arith.constant 0 : index
    %3 = vector.load %arg7[%c0, %c0_1] : memref<2x64xf32, #tpu.memory_space<vmem>>, vector<2x64xf32>
    %c0_2 = arith.constant 0 : index
    %c0_3 = arith.constant 0 : index
    %4 = vector.load %arg3[%c0_2, %c0_3] : memref<2x32xbf16, #tpu.memory_space<vmem>>, vector<2x32xbf16>
    %c0_4 = arith.constant 0 : index
    %c0_5 = arith.constant 0 : index
    %5 = vector.load %arg4[%c0_4, %c0_5] : memref<32x64xbf16, #tpu.memory_space<vmem>>, vector<32x64xbf16>
    %cst = arith.constant dense<0.000000e+00> : vector<2x64xf32>
    %6 = tpu.matmul %4, %5, %cst {dimension_numbers = #tpu.dot_dimension_numbers<[1], [0], [0], [1], [0, 0, 1, 1], [], []>} : vector<2x32xbf16>, vector<32x64xbf16>, vector<2x64xf32> -> vector<2x64xf32>
    %7 = arith.addf %3, %6 : vector<2x64xf32>
    %c0_6 = arith.constant 0 : index
    %c0_7 = arith.constant 0 : index
    %8 = vector.load %arg7[%c0_6, %c0_7] : memref<2x64xf32, #tpu.memory_space<vmem>>, vector<2x64xf32>
    tpu.vector_store %arg7[%c0_6, %c0_7], %7 {strides = array<i32>} : memref<2x64xf32, #tpu.memory_space<vmem>>, vector<2x64xf32>,
    %c0_i32_8 = arith.constant 0 : i32
    %9 = arith.cmpi eq, %arg2, %c0_i32_8 : i32
    %10 = arith.extui %9 : i1 to i32
    %c0_i32_9 = arith.constant 0 : i32
    %11 = arith.cmpi ne, %10, %c0_i32_9 : i32
    scf.if %11 {
      %c0_10 = arith.constant 0 : index
      %c0_11 = arith.constant 0 : index
      %12 = vector.load %arg7[%c0_10, %c0_11] : memref<2x64xf32, #tpu.memory_space<vmem>>, vector<2x64xf32>
      %c0_12 = arith.constant 0 : index
      %c0_13 = arith.constant 0 : index
      %13 = vector.load %arg5[%c0_12, %c0_13] : memref<1x64xf32, #tpu.memory_space<vmem>>, vector<1x64xf32>
      %14 = vector.broadcast %13 : vector<1x64xf32> to vector<2x64xf32>
      %15 = arith.addf %12, %14 : vector<2x64xf32>
      %16 = arith.truncf %15 : vector<2x64xf32> to vector<2x64xbf16>
      %c0_14 = arith.constant 0 : index
      %c0_15 = arith.constant 0 : index
      %17 = vector.load %arg6[%c0_14, %c0_15] : memref<2x64xbf16, #tpu.memory_space<vmem>>, vector<2x64xbf16>
      tpu.vector_store %arg6[%c0_14, %c0_15], %16 {strides = array<i32>} : memref<2x64xbf16, #tpu.memory_space<vmem>>, vector<2x64xbf16>,
    } else {
    }
    return
  }
  func.func @transform_0(%arg0: i32, %arg1: i32, %arg2: i32) -> (i32, i32) {
    %c0_i32 = arith.constant 0 : i32
    return %arg0, %arg2 : i32, i32
  }
  func.func @transform_1(%arg0: i32, %arg1: i32, %arg2: i32) -> (i32, i32) {
    %c0_i32 = arith.constant 0 : i32
    return %arg2, %arg1 : i32, i32
  }
  func.func @transform_2(%arg0: i32, %arg1: i32, %arg2: i32) -> (i32, i32) {
    %c0_i32 = arith.constant 0 : i32
    %c0_i32_0 = arith.constant 0 : i32
    return %c0_i32, %arg1 : i32, i32
  }
  func.func @transform_3(%arg0: i32, %arg1: i32, %arg2: i32) -> (i32, i32) {
    %c0_i32 = arith.constant 0 : i32
    return %arg0, %arg1 : i32, i32
  }
}

module attributes {stable_mosaic.version = 11 : i64} {
  func.func @_gemm_bn_res_kernel(%arg0: i32, %arg1: i32, %arg2: i32, %arg3: memref<2x576xbf16, #tpu.memory_space<vmem>>, %arg4: memref<576x64xbf16, #tpu.memory_space<vmem>>, %arg5: memref<1x64xf32, #tpu.memory_space<vmem>>, %arg6: memref<2x64xbf16, #tpu.memory_space<vmem>>, %arg7: memref<2x64xbf16, #tpu.memory_space<vmem>>, %arg8: memref<2x64xf32, #tpu.memory_space<vmem>>) attributes {dimension_semantics = [#tpu.dimension_semantics<parallel>, #tpu.dimension_semantics<parallel>, #tpu.dimension_semantics<arbitrary>], iteration_bounds = array<i64: 1, 1, 1>, scalar_prefetch = 0 : i64, scratch_operands = 1 : i64, tpu.core_type = #tpu.core_type<tc>, window_params = [{transform_indices = @transform_0, window_bounds = array<i64: 2, 576>}, {transform_indices = @transform_1, window_bounds = array<i64: 576, 64>}, {transform_indices = @transform_2, window_bounds = array<i64: 1, 64>}, {transform_indices = @transform_3, window_bounds = array<i64: 2, 64>}, {transform_indices = @transform_4, window_bounds = array<i64: 2, 64>}]} {
    %c0_i32 = arith.constant 0 : i32
    %0 = arith.cmpi eq, %arg2, %c0_i32 : i32
    %1 = arith.extui %0 : i1 to i32
    %c0_i32_0 = arith.constant 0 : i32
    %2 = arith.cmpi ne, %1, %c0_i32_0 : i32
    scf.if %2 {
      %cst_10 = arith.constant 0.000000e+00 : f32
      %12 = vector.broadcast %cst_10 : f32 to vector<2x64xf32>
      %c0_11 = arith.constant 0 : index
      %c0_12 = arith.constant 0 : index
      %13 = vector.load %arg8[%c0_11, %c0_12] : memref<2x64xf32, #tpu.memory_space<vmem>>, vector<2x64xf32>
      tpu.vector_store %arg8[%c0_11, %c0_12], %12 {strides = array<i32>} : memref<2x64xf32, #tpu.memory_space<vmem>>, vector<2x64xf32>,
    } else {
    }
    %c0 = arith.constant 0 : index
    %c0_1 = arith.constant 0 : index
    %3 = vector.load %arg8[%c0, %c0_1] : memref<2x64xf32, #tpu.memory_space<vmem>>, vector<2x64xf32>
    %c0_2 = arith.constant 0 : index
    %c0_3 = arith.constant 0 : index
    %4 = vector.load %arg3[%c0_2, %c0_3] : memref<2x576xbf16, #tpu.memory_space<vmem>>, vector<2x576xbf16>
    %c0_4 = arith.constant 0 : index
    %c0_5 = arith.constant 0 : index
    %5 = vector.load %arg4[%c0_4, %c0_5] : memref<576x64xbf16, #tpu.memory_space<vmem>>, vector<576x64xbf16>
    %cst = arith.constant dense<0.000000e+00> : vector<2x64xf32>
    %6 = tpu.matmul %4, %5, %cst {dimension_numbers = #tpu.dot_dimension_numbers<[1], [0], [0], [1], [0, 0, 1, 1], [], []>} : vector<2x576xbf16>, vector<576x64xbf16>, vector<2x64xf32> -> vector<2x64xf32>
    %7 = arith.addf %3, %6 : vector<2x64xf32>
    %c0_6 = arith.constant 0 : index
    %c0_7 = arith.constant 0 : index
    %8 = vector.load %arg8[%c0_6, %c0_7] : memref<2x64xf32, #tpu.memory_space<vmem>>, vector<2x64xf32>
    tpu.vector_store %arg8[%c0_6, %c0_7], %7 {strides = array<i32>} : memref<2x64xf32, #tpu.memory_space<vmem>>, vector<2x64xf32>,
    %c0_i32_8 = arith.constant 0 : i32
    %9 = arith.cmpi eq, %arg2, %c0_i32_8 : i32
    %10 = arith.extui %9 : i1 to i32
    %c0_i32_9 = arith.constant 0 : i32
    %11 = arith.cmpi ne, %10, %c0_i32_9 : i32
    scf.if %11 {
      %c0_10 = arith.constant 0 : index
      %c0_11 = arith.constant 0 : index
      %12 = vector.load %arg8[%c0_10, %c0_11] : memref<2x64xf32, #tpu.memory_space<vmem>>, vector<2x64xf32>
      %c0_12 = arith.constant 0 : index
      %c0_13 = arith.constant 0 : index
      %13 = vector.load %arg5[%c0_12, %c0_13] : memref<1x64xf32, #tpu.memory_space<vmem>>, vector<1x64xf32>
      %14 = vector.broadcast %13 : vector<1x64xf32> to vector<2x64xf32>
      %15 = arith.addf %12, %14 : vector<2x64xf32>
      %c0_14 = arith.constant 0 : index
      %c0_15 = arith.constant 0 : index
      %16 = vector.load %arg6[%c0_14, %c0_15] : memref<2x64xbf16, #tpu.memory_space<vmem>>, vector<2x64xbf16>
      %17 = arith.extf %16 : vector<2x64xbf16> to vector<2x64xf32>
      %18 = arith.addf %15, %17 : vector<2x64xf32>
      %cst_16 = arith.constant 0.000000e+00 : f32
      %19 = vector.broadcast %cst_16 : f32 to vector<2x64xf32>
      %20 = arith.maximumf %18, %19 : vector<2x64xf32>
      %21 = arith.truncf %20 : vector<2x64xf32> to vector<2x64xbf16>
      %c0_17 = arith.constant 0 : index
      %c0_18 = arith.constant 0 : index
      %22 = vector.load %arg7[%c0_17, %c0_18] : memref<2x64xbf16, #tpu.memory_space<vmem>>, vector<2x64xbf16>
      tpu.vector_store %arg7[%c0_17, %c0_18], %21 {strides = array<i32>} : memref<2x64xbf16, #tpu.memory_space<vmem>>, vector<2x64xbf16>,
    } else {
    }
    return
  }
  func.func @transform_0(%arg0: i32, %arg1: i32, %arg2: i32) -> (i32, i32) {
    %c0_i32 = arith.constant 0 : i32
    return %arg0, %arg2 : i32, i32
  }
  func.func @transform_1(%arg0: i32, %arg1: i32, %arg2: i32) -> (i32, i32) {
    %c0_i32 = arith.constant 0 : i32
    return %arg2, %arg1 : i32, i32
  }
  func.func @transform_2(%arg0: i32, %arg1: i32, %arg2: i32) -> (i32, i32) {
    %c0_i32 = arith.constant 0 : i32
    %c0_i32_0 = arith.constant 0 : i32
    return %c0_i32, %arg1 : i32, i32
  }
  func.func @transform_3(%arg0: i32, %arg1: i32, %arg2: i32) -> (i32, i32) {
    %c0_i32 = arith.constant 0 : i32
    return %arg0, %arg1 : i32, i32
  }
  func.func @transform_4(%arg0: i32, %arg1: i32, %arg2: i32) -> (i32, i32) {
    %c0_i32 = arith.constant 0 : i32
    return %arg0, %arg1 : i32, i32
  }
}

module attributes {stable_mosaic.version = 11 : i64} {
  func.func @_gemm_bn_kernel(%arg0: i32, %arg1: i32, %arg2: i32, %arg3: memref<2x576xbf16, #tpu.memory_space<vmem>>, %arg4: memref<576x64xbf16, #tpu.memory_space<vmem>>, %arg5: memref<1x64xf32, #tpu.memory_space<vmem>>, %arg6: memref<2x64xbf16, #tpu.memory_space<vmem>>, %arg7: memref<2x64xf32, #tpu.memory_space<vmem>>) attributes {dimension_semantics = [#tpu.dimension_semantics<parallel>, #tpu.dimension_semantics<parallel>, #tpu.dimension_semantics<arbitrary>], iteration_bounds = array<i64: 1, 1, 1>, scalar_prefetch = 0 : i64, scratch_operands = 1 : i64, tpu.core_type = #tpu.core_type<tc>, window_params = [{transform_indices = @transform_0, window_bounds = array<i64: 2, 576>}, {transform_indices = @transform_1, window_bounds = array<i64: 576, 64>}, {transform_indices = @transform_2, window_bounds = array<i64: 1, 64>}, {transform_indices = @transform_3, window_bounds = array<i64: 2, 64>}]} {
    %c0_i32 = arith.constant 0 : i32
    %0 = arith.cmpi eq, %arg2, %c0_i32 : i32
    %1 = arith.extui %0 : i1 to i32
    %c0_i32_0 = arith.constant 0 : i32
    %2 = arith.cmpi ne, %1, %c0_i32_0 : i32
    scf.if %2 {
      %cst_10 = arith.constant 0.000000e+00 : f32
      %12 = vector.broadcast %cst_10 : f32 to vector<2x64xf32>
      %c0_11 = arith.constant 0 : index
      %c0_12 = arith.constant 0 : index
      %13 = vector.load %arg7[%c0_11, %c0_12] : memref<2x64xf32, #tpu.memory_space<vmem>>, vector<2x64xf32>
      tpu.vector_store %arg7[%c0_11, %c0_12], %12 {strides = array<i32>} : memref<2x64xf32, #tpu.memory_space<vmem>>, vector<2x64xf32>,
    } else {
    }
    %c0 = arith.constant 0 : index
    %c0_1 = arith.constant 0 : index
    %3 = vector.load %arg7[%c0, %c0_1] : memref<2x64xf32, #tpu.memory_space<vmem>>, vector<2x64xf32>
    %c0_2 = arith.constant 0 : index
    %c0_3 = arith.constant 0 : index
    %4 = vector.load %arg3[%c0_2, %c0_3] : memref<2x576xbf16, #tpu.memory_space<vmem>>, vector<2x576xbf16>
    %c0_4 = arith.constant 0 : index
    %c0_5 = arith.constant 0 : index
    %5 = vector.load %arg4[%c0_4, %c0_5] : memref<576x64xbf16, #tpu.memory_space<vmem>>, vector<576x64xbf16>
    %cst = arith.constant dense<0.000000e+00> : vector<2x64xf32>
    %6 = tpu.matmul %4, %5, %cst {dimension_numbers = #tpu.dot_dimension_numbers<[1], [0], [0], [1], [0, 0, 1, 1], [], []>} : vector<2x576xbf16>, vector<576x64xbf16>, vector<2x64xf32> -> vector<2x64xf32>
    %7 = arith.addf %3, %6 : vector<2x64xf32>
    %c0_6 = arith.constant 0 : index
    %c0_7 = arith.constant 0 : index
    %8 = vector.load %arg7[%c0_6, %c0_7] : memref<2x64xf32, #tpu.memory_space<vmem>>, vector<2x64xf32>
    tpu.vector_store %arg7[%c0_6, %c0_7], %7 {strides = array<i32>} : memref<2x64xf32, #tpu.memory_space<vmem>>, vector<2x64xf32>,
    %c0_i32_8 = arith.constant 0 : i32
    %9 = arith.cmpi eq, %arg2, %c0_i32_8 : i32
    %10 = arith.extui %9 : i1 to i32
    %c0_i32_9 = arith.constant 0 : i32
    %11 = arith.cmpi ne, %10, %c0_i32_9 : i32
    scf.if %11 {
      %c0_10 = arith.constant 0 : index
      %c0_11 = arith.constant 0 : index
      %12 = vector.load %arg7[%c0_10, %c0_11] : memref<2x64xf32, #tpu.memory_space<vmem>>, vector<2x64xf32>
      %c0_12 = arith.constant 0 : index
      %c0_13 = arith.constant 0 : index
      %13 = vector.load %arg5[%c0_12, %c0_13] : memref<1x64xf32, #tpu.memory_space<vmem>>, vector<1x64xf32>
      %14 = vector.broadcast %13 : vector<1x64xf32> to vector<2x64xf32>
      %15 = arith.addf %12, %14 : vector<2x64xf32>
      %cst_14 = arith.constant 0.000000e+00 : f32
      %16 = vector.broadcast %cst_14 : f32 to vector<2x64xf32>
      %17 = arith.maximumf %15, %16 : vector<2x64xf32>
      %18 = arith.truncf %17 : vector<2x64xf32> to vector<2x64xbf16>
      %c0_15 = arith.constant 0 : index
      %c0_16 = arith.constant 0 : index
      %19 = vector.load %arg6[%c0_15, %c0_16] : memref<2x64xbf16, #tpu.memory_space<vmem>>, vector<2x64xbf16>
      tpu.vector_store %arg6[%c0_15, %c0_16], %18 {strides = array<i32>} : memref<2x64xbf16, #tpu.memory_space<vmem>>, vector<2x64xbf16>,
    } else {
    }
    return
  }
  func.func @transform_0(%arg0: i32, %arg1: i32, %arg2: i32) -> (i32, i32) {
    %c0_i32 = arith.constant 0 : i32
    return %arg0, %arg2 : i32, i32
  }
  func.func @transform_1(%arg0: i32, %arg1: i32, %arg2: i32) -> (i32, i32) {
    %c0_i32 = arith.constant 0 : i32
    return %arg2, %arg1 : i32, i32
  }
  func.func @transform_2(%arg0: i32, %arg1: i32, %arg2: i32) -> (i32, i32) {
    %c0_i32 = arith.constant 0 : i32
    %c0_i32_0 = arith.constant 0 : i32
    return %c0_i32, %arg1 : i32, i32
  }
  func.func @transform_3(%arg0: i32, %arg1: i32, %arg2: i32) -> (i32, i32) {
    %c0_i32 = arith.constant 0 : i32
    return %arg0, %arg1 : i32, i32
  }
}

</mosaic_0001>

<llo_original>
// kernel: resnet_forward.22
$region0: #{resnet_forward.22}
  #allocation0 [shape = 'u32[]', space=smem, size = 0x4, offset = 0x4, fixed_abs, tag = 'smem constant byte address 0x4 - core index']
  #allocation1 [shape = 'u32[144,128]{1,0:T(1,128)}', space=vmem, size = 0x12000, scoped, tag = 'internal scratch']
  %s0 = inlined_call_operand.vmem [shape: bf16[2,5,5,8], index: 0, kind: input, shape index: {}]
  %s1 = inlined_call_operand.vmem [shape: bf16[2,5,4,8], index: 1, kind: input, shape index: {}]
  %s2 = inlined_call_operand.vmem [shape: bf16[2,4,5,8], index: 2, kind: input, shape index: {}]
  %s3 = inlined_call_operand.vmem [shape: bf16[2,4,4,8], index: 3, kind: input, shape index: {}]
  %s4 = inlined_call_operand.vmem [shape: bf16[2,4,4,8], index: 4, kind: output, shape index: {}]
  %s5 = sld [smem:[#allocation0]]
  $region49: #{resnet_forward.22} parent=0
    _
  %s7 = ssub.s32 1, %s5
  %s8 = scalar_select 0, %s7, %s5
  loop: start=0, step=1, limit=4
  $region2: #{resnet_forward.22} parent=0 // loop_pre_header
    _
  $region3: #{resnet_forward.22} parent=0 // loop_header
    %s10 = sphi 0, %s14
    %p11 = scmp.ge.s32.totalorder %s10, 4
    %s20 = sphi 0, %s22
    %s23 = sphi 0, %s20
    %s24 = sphi 0, %s23
    %s40 = sphi 0, %s24
    %s46 = sphi 0, %s48
    %s49 = sphi 0, %s46
    %s50 = sphi 0, %s49
    %s66 = sphi 0, %s50
    %s72 = sphi 0, %s74
    %s75 = sphi 0, %s72
    %s76 = sphi 0, %s75
    %s92 = sphi 0, %s76
    %s98 = sphi 0, %s100
    %s101 = sphi 0, %s98
    %s102 = sphi 0, %s101
    %s118 = sphi 0, %s102
    %s124 = sphi 0, %s126
    %s127 = sphi 0, %s124
    %s128 = sphi 0, %s127
    %s144 = sphi 0, %s128
  $region4: #{resnet_forward.22} parent=0 // loop_header_branch
    %13 = sbr.rel (%p11) target = $region8
  $region5: #{resnet_forward.22} parent=0 // loop_body
    %s15 = ssub.s32 %s10, 1
    %s16 = ssub.s32 %s10, 2
    %s17 = sadd.s32 %s10, 1
    %s18 = ssub.s32 %s10, %s17
    %p19 = scmp.eq.s32.totalorder %s18, 0
    %s21 = sadd.s32 %s20, 1
    %s22 = scalar_select %p19, %s20, %s21
    %p25 = pneg %p19
    %p26 = scmp.eq.s32.totalorder %s10, 1
    %p27 = por %p25, %p26
    %p28 = scmp.ne.s32.totalorder %s20, %s23
    %p29 = scmp.eq.s32.totalorder %s10, 0
    %p30 = por %p28, %p29
    %p31 = scmp.ne.s32.totalorder %s20, %s23
    %p32 = scmp.eq.s32.totalorder %s15, 1
    %p33 = por %p31, %p32
    %p34 = scmp.ne.s32.totalorder %s23, %s24
    %p35 = scmp.eq.s32.totalorder %s15, 0
    %p36 = por %p34, %p35
    %p37 = scmp.ne.s32.totalorder %s23, %s24
    %p38 = scmp.eq.s32.totalorder %s16, 1
    %p39 = por %p37, %p38
    %p41 = scmp.ne.s32.totalorder %s24, %s40
    %p42 = scmp.eq.s32.totalorder %s16, 0
    %p43 = por %p41, %p42
    %s44 = ssub.s32 %s10, %s17
    %p45 = scmp.eq.s32.totalorder %s44, 0
    %s47 = sadd.s32 %s46, 1
    %s48 = scalar_select %p45, %s46, %s47
    %p51 = pneg %p45
    %p52 = scmp.eq.s32.totalorder %s10, 1
    %p53 = por %p51, %p52
    %p54 = scmp.ne.s32.totalorder %s46, %s49
    %p55 = scmp.eq.s32.totalorder %s10, 0
    %p56 = por %p54, %p55
    %p57 = scmp.ne.s32.totalorder %s46, %s49
    %p58 = scmp.eq.s32.totalorder %s15, 1
    %p59 = por %p57, %p58
    %p60 = scmp.ne.s32.totalorder %s49, %s50
    %p61 = scmp.eq.s32.totalorder %s15, 0
    %p62 = por %p60, %p61
    %p63 = scmp.ne.s32.totalorder %s49, %s50
    %p64 = scmp.eq.s32.totalorder %s16, 1
    %p65 = por %p63, %p64
    %p67 = scmp.ne.s32.totalorder %s50, %s66
    %p68 = scmp.eq.s32.totalorder %s16, 0
    %p69 = por %p67, %p68
    %s70 = ssub.s32 %s10, %s17
    %p71 = scmp.eq.s32.totalorder %s70, 0
    %s73 = sadd.s32 %s72, 1
    %s74 = scalar_select %p71, %s72, %s73
    %p77 = pneg %p71
    %p78 = scmp.eq.s32.totalorder %s10, 1
    %p79 = por %p77, %p78
    %p80 = scmp.ne.s32.totalorder %s72, %s75
    %p81 = scmp.eq.s32.totalorder %s10, 0
    %p82 = por %p80, %p81
    %p83 = scmp.ne.s32.totalorder %s72, %s75
    %p84 = scmp.eq.s32.totalorder %s15, 1
    %p85 = por %p83, %p84
    %p86 = scmp.ne.s32.totalorder %s75, %s76
    %p87 = scmp.eq.s32.totalorder %s15, 0
    %p88 = por %p86, %p87
    %p89 = scmp.ne.s32.totalorder %s75, %s76
    %p90 = scmp.eq.s32.totalorder %s16, 1
    %p91 = por %p89, %p90
    %p93 = scmp.ne.s32.totalorder %s76, %s92
    %p94 = scmp.eq.s32.totalorder %s16, 0
    %p95 = por %p93, %p94
    %s96 = ssub.s32 %s10, %s17
    %p97 = scmp.eq.s32.totalorder %s96, 0
    %s99 = sadd.s32 %s98, 1
    %s100 = scalar_select %p97, %s98, %s99
    %p103 = pneg %p97
    %p104 = scmp.eq.s32.totalorder %s10, 1
    %p105 = por %p103, %p104
    %p106 = scmp.ne.s32.totalorder %s98, %s101
    %p107 = scmp.eq.s32.totalorder %s10, 0
    %p108 = por %p106, %p107
    %p109 = scmp.ne.s32.totalorder %s98, %s101
    %p110 = scmp.eq.s32.totalorder %s15, 1
    %p111 = por %p109, %p110
    %p112 = scmp.ne.s32.totalorder %s101, %s102
    %p113 = scmp.eq.s32.totalorder %s15, 0
    %p114 = por %p112, %p113
    %p115 = scmp.ne.s32.totalorder %s101, %s102
    %p116 = scmp.eq.s32.totalorder %s16, 1
    %p117 = por %p115, %p116
    %p119 = scmp.ne.s32.totalorder %s102, %s118
    %p120 = scmp.eq.s32.totalorder %s16, 0
    %p121 = por %p119, %p120
    %s122 = ssub.s32 %s10, %s17
    %p123 = scmp.eq.s32.totalorder %s122, 0
    %s125 = sadd.s32 %s124, 1
    %s126 = scalar_select %p123, %s124, %s125
    %p129 = pneg %p123
    %p130 = scmp.eq.s32.totalorder %s10, 1
    %p131 = por %p129, %p130
    %p132 = scmp.ne.s32.totalorder %s124, %s127
    %p133 = scmp.eq.s32.totalorder %s10, 0
    %p134 = por %p132, %p133
    %p135 = scmp.ne.s32.totalorder %s124, %s127
    %p136 = scmp.eq.s32.totalorder %s15, 1
    %p137 = por %p135, %p136
    %p138 = scmp.ne.s32.totalorder %s127, %s128
    %p139 = scmp.eq.s32.totalorder %s15, 0
    %p140 = por %p138, %p139
    %p141 = scmp.ne.s32.totalorder %s127, %s128
    %p142 = scmp.eq.s32.totalorder %s16, 1
    %p143 = por %p141, %p142
    %p145 = scmp.ne.s32.totalorder %s128, %s144
    %p146 = scmp.eq.s32.totalorder %s16, 0
    %p147 = por %p145, %p146
    %p148 = scmp.le.s32.totalorder 1, %s10
    %p149 = scmp.lt.s32.totalorder %s10, 3
    %p150 = pnand %p148, %p149
    %p151 = pneg %p150
    // Predicated region
    $region9: #{resnet_forward.22} parent=5 // pred_check
      _
    $region10: #{resnet_forward.22} parent=5 // pred_check_branch
      %153 = sbr.rel (%p150) target = $region12
    $region11: #{resnet_forward.22} parent=5 // pred_region
      %s154 = ssub.s32 %s10, 1
    $region12: #{resnet_forward.22} parent=5 // pred_fallthru
      _
    %p155 = scmp.lt.s32.totalorder %s10, 2
    // Predicated region
    $region13: #{resnet_forward.22} parent=5 // pred_check
      %p156 = pneg %p155
    $region14: #{resnet_forward.22} parent=5 // pred_check_branch
      %158 = sbr.rel (%p156) target = $region16
    $region15: #{resnet_forward.22} parent=5 // pred_region
      // Predicated region
      $region17: #{resnet_forward.22} parent=15 // pred_check
        %p159 = pneg %p30
      $region18: #{resnet_forward.22} parent=15 // pred_check_branch
        %161 = sbr.rel (%p159) target = $region20
      $region19: #{resnet_forward.22} parent=15 // pred_region
        %p162 = scmp.lt.s32.totalorder %s10, 1
        %s163 = scalar_select %p162, %s10, 1
        %s164 = smul.addr %s163, 5
        %s165 = smul.addr %s164, 4
        %s166 = scalar_lea.vmem %s0, %s165
      $region20: #{resnet_forward.22} parent=15 // pred_fallthru
        _
      // Predicated region
      $region21: #{resnet_forward.22} parent=15 // pred_check
        %p167 = pneg %p56
      $region22: #{resnet_forward.22} parent=15 // pred_check_branch
        %169 = sbr.rel (%p167) target = $region24
      $region23: #{resnet_forward.22} parent=15 // pred_region
        %p170 = scmp.lt.s32.totalorder %s10, 1
        %s171 = scalar_select %p170, %s10, 1
        %s172 = smul.addr %s171, 5
        %s173 = smul.addr %s172, 2
        %s174 = scalar_lea.vmem %s1, %s173
      $region24: #{resnet_forward.22} parent=15 // pred_fallthru
        _
      // Predicated region
      $region25: #{resnet_forward.22} parent=15 // pred_check
        %p175 = pneg %p82
      $region26: #{resnet_forward.22} parent=15 // pred_check_branch
        %177 = sbr.rel (%p175) target = $region28
      $region27: #{resnet_forward.22} parent=15 // pred_region
        %p178 = scmp.lt.s32.totalorder %s10, 1
        %s179 = scalar_select %p178, %s10, 1
        %s180 = smul.addr %s179, 4
        %s181 = smul.addr %s180, 4
        %s182 = scalar_lea.vmem %s2, %s181
      $region28: #{resnet_forward.22} parent=15 // pred_fallthru
        _
      // Predicated region
      $region29: #{resnet_forward.22} parent=15 // pred_check
        %p183 = pneg %p108
      $region30: #{resnet_forward.22} parent=15 // pred_check_branch
        %185 = sbr.rel (%p183) target = $region32
      $region31: #{resnet_forward.22} parent=15 // pred_region
        %p186 = scmp.lt.s32.totalorder %s10, 1
        %s187 = scalar_select %p186, %s10, 1
        %s188 = smul.addr %s187, 4
        %s189 = smul.addr %s188, 2
        %s190 = scalar_lea.vmem %s3, %s189
      $region32: #{resnet_forward.22} parent=15 // pred_fallthru
        _
    $region16: #{resnet_forward.22} parent=5 // pred_fallthru
      _
    %p191 = scmp.le.s32.totalorder 1, %s10
    %p192 = scmp.lt.s32.totalorder %s10, 3
    %p193 = pnand %p191, %p192
    %p194 = pneg %p193
    // Predicated region
    $region33: #{resnet_forward.22} parent=5 // pred_check
      _
    $region34: #{resnet_forward.22} parent=5 // pred_check_branch
      %196 = sbr.rel (%p193) target = $region36
    $region35: #{resnet_forward.22} parent=5 // pred_region
      %s197 = ssub.s32 %s10, 1
      %p198 = scmp.lt.s32.totalorder %s15, 1
      %s199 = scalar_select %p198, %s15, 1
      %s200 = smul.addr %s199, 5
      %s201 = smul.addr %s200, 4
      %s202 = scalar_lea.vmem %s0, %s201
      %p203 = pneg %p36
      %p204 = pneg %p33
      %p205 = scmp.lt.s32.totalorder %s15, 1
      %s206 = scalar_select %p205, %s15, 1
      %s207 = smul.addr %s206, 5
      %s208 = smul.addr %s207, 2
      %s209 = scalar_lea.vmem %s1, %s208
      %p210 = pneg %p62
      %p211 = pneg %p59
      %p212 = scmp.lt.s32.totalorder %s15, 1
      %s213 = scalar_select %p212, %s15, 1
      %s214 = smul.addr %s213, 4
      %s215 = smul.addr %s214, 4
      %s216 = scalar_lea.vmem %s2, %s215
      %p217 = pneg %p88
      %p218 = pneg %p85
      %p219 = scmp.lt.s32.totalorder %s15, 1
      %s220 = scalar_select %p219, %s15, 1
      %s221 = smul.addr %s220, 4
      %s222 = smul.addr %s221, 2
      %s223 = scalar_lea.vmem %s3, %s222
      %p224 = pneg %p114
      %p225 = pneg %p111
      %p226 = pneg %p140
      %p227 = pneg %p137
      %p228 = scmp.lt.s32.totalorder %s15, 1
      %s229 = scalar_select %p228, %s15, 1
      %s230 = smul.addr %s229, 4
      %s231 = smul.addr %s230, 2
      %s232 = scalar_lea.vmem %s4, %s231
      %p233 = scmp.lt.s32.totalorder %s15, 1
      %s234 = scalar_select %p233, %s15, 1
      %s235 = smul.addr %s234, 5
      %s236 = smul.addr %s235, 4
      %s237 = scalar_lea.vmem %s0, %s236
      %p238 = scmp.lt.s32.totalorder %s15, 1
      %s239 = scalar_select %p238, %s15, 1
      %s240 = smul.addr %s239, 5
      %s241 = smul.addr %s240, 2
      %s242 = scalar_lea.vmem %s1, %s241
      %p243 = scmp.lt.s32.totalorder %s15, 1
      %s244 = scalar_select %p243, %s15, 1
      %s245 = smul.addr %s244, 4
      %s246 = smul.addr %s245, 4
      %s247 = scalar_lea.vmem %s2, %s246
      %p248 = scmp.lt.s32.totalorder %s15, 1
      %s249 = scalar_select %p248, %s15, 1
      %s250 = smul.addr %s249, 4
      %s251 = smul.addr %s250, 2
      %s252 = scalar_lea.vmem %s3, %s251
      %p253 = scmp.lt.s32.totalorder %s15, 1
      %s254 = scalar_select %p253, %s15, 1
      %s255 = smul.addr %s254, 4
      %s256 = smul.addr %s255, 2
      %s257 = scalar_lea.vmem %s4, %s256
      %v258 = vld [vmem:[%s237] sm:$0x7]
      %v259 = vld [vmem:[%s237 + $0x4] sm:$0x7]
      %v260 = vld [vmem:[%s237 + $0x8] sm:$0x7]
      %v261 = vld [vmem:[%s237 + $0xc] sm:$0x7]
      %v262 = vld [vmem:[%s237 + $0x10] sm:$0x7]
      %v263 = vld [vmem:[%s242] sm:$0x3]
      %v264 = vld [vmem:[%s242 + $0x2] sm:$0x3]
      %v265 = vld [vmem:[%s242 + $0x4] sm:$0x3]
      %v266 = vld [vmem:[%s242 + $0x6] sm:$0x3]
      %v267 = vld [vmem:[%s242 + $0x8] sm:$0x3]
      %v268 = vld [vmem:[%s247] sm:$0x7]
      %v269 = vld [vmem:[%s247 + $0x4] sm:$0x7]
      %v270 = vld [vmem:[%s247 + $0x8] sm:$0x7]
      %v271 = vld [vmem:[%s247 + $0xc] sm:$0x7]
      %v272 = vld [vmem:[%s252] sm:$0x3]
      %v273 = vld [vmem:[%s252 + $0x2] sm:$0x3]
      %v274 = vld [vmem:[%s252 + $0x4] sm:$0x3]
      %v275 = vld [vmem:[%s252 + $0x6] sm:$0x3]
      %v276 = vmax.bf16 %v272, %v258
      %v277 = vmax.bf16 %v273, %v259
      %v278 = vmax.bf16 %v274, %v260
      %v279 = vmax.bf16 %v275, %v261
      %v285 = vunpack.c.l.s4 1983009808
      %v286 = vunpack.c.0.s8 %v285
      %v287 = vlaneseq
      %v288 = vshrl.u32 %v287, 7
      %v289 = vsub.s32 %v286, %v288
      %v290 = vrot.slane %v258, %v289
      %v291 = vcombine.high %v290, %v290
      %v293 = vunpack.c.l.s4 1983009808
      %v294 = vunpack.c.0.s8 %v293
      %v295 = vlaneseq
      %v296 = vshrl.u32 %v295, 7
      %v297 = vsub.s32 %v294, %v296
      %v298 = vrot.slane %v259, %v297
      %v299 = vcombine.high %v298, %v298
      %v301 = vunpack.c.l.s4 1983009808
      %v302 = vunpack.c.0.s8 %v301
      %v303 = vlaneseq
      %v304 = vshrl.u32 %v303, 7
      %v305 = vsub.s32 %v302, %v304
      %v306 = vrot.slane %v260, %v305
      %v307 = vcombine.high %v306, %v306
      %v309 = vunpack.c.l.s4 1983009808
      %v310 = vunpack.c.0.s8 %v309
      %v311 = vlaneseq
      %v312 = vshrl.u32 %v311, 7
      %v313 = vsub.s32 %v310, %v312
      %v314 = vrot.slane %v261, %v313
      %v315 = vcombine.high %v314, %v314
      %vm316 = vsmask.f32 1280
      %vm317 = vsmask.f32 3336
      %vm318 = vmor %vm316, %vm317
      %vm319 = vsmask.f32 5392
      %vm320 = vmor %vm318, %vm319
      %vm321 = vsmask.f32 7448
      %vm322 = vmor %vm320, %vm321
      %v324 = vshrl.u32 %v290, 16
      %v326 = vrot.slane %v324, 6
      %v327 = vshll.u32 %v290, 16
      %v329 = vrot.slane %v327, 7
      %v330 = vor.u32 %v326, %v329
      %v331 = vrot.slane %v330, 2
      %v333 = vshll.u32 %v291, 16
      %v335 = vrot.slane %v333, 7
      %v336 = vsel %vm322, %v331, %v335
      %v338 = vshrl.u32 %v298, 16
      %v340 = vrot.slane %v338, 6
      %v341 = vshll.u32 %v298, 16
      %v343 = vrot.slane %v341, 7
      %v344 = vor.u32 %v340, %v343
      %v345 = vrot.slane %v344, 2
      %v347 = vshll.u32 %v299, 16
      %v349 = vrot.slane %v347, 7
      %v350 = vsel %vm322, %v345, %v349
      %v352 = vshrl.u32 %v306, 16
      %v354 = vrot.slane %v352, 6
      %v355 = vshll.u32 %v306, 16
      %v357 = vrot.slane %v355, 7
      %v358 = vor.u32 %v354, %v357
      %v359 = vrot.slane %v358, 2
      %v361 = vshll.u32 %v307, 16
      %v363 = vrot.slane %v361, 7
      %v364 = vsel %vm322, %v359, %v363
      %v366 = vshrl.u32 %v314, 16
      %v368 = vrot.slane %v366, 6
      %v369 = vshll.u32 %v314, 16
      %v371 = vrot.slane %v369, 7
      %v372 = vor.u32 %v368, %v371
      %v373 = vrot.slane %v372, 2
      %v375 = vshll.u32 %v315, 16
      %v377 = vrot.slane %v375, 7
      %v378 = vsel %vm322, %v373, %v377
      %v383 = vmax.bf16 %v276, %v336
      %v384 = vmax.bf16 %v277, %v350
      %v385 = vmax.bf16 %v278, %v364
      %v386 = vmax.bf16 %v279, %v378
      %v387 = vmax.bf16 %v383, %v259
      %v388 = vmax.bf16 %v384, %v260
      %v389 = vmax.bf16 %v385, %v261
      %v390 = vmax.bf16 %v386, %v262
      %v393 = vunpack.c.l.s4 1983009808
      %v394 = vunpack.c.0.s8 %v393
      %v395 = vlaneseq
      %v396 = vshrl.u32 %v395, 7
      %v397 = vsub.s32 %v394, %v396
      %v398 = vrot.slane %v262, %v397
      %v399 = vcombine.high %v398, %v398
      %v401 = vshrl.u32 %v398, 16
      %v403 = vrot.slane %v401, 6
      %v404 = vshll.u32 %v398, 16
      %v406 = vrot.slane %v404, 7
      %v407 = vor.u32 %v403, %v406
      %v408 = vrot.slane %v407, 2
      %v410 = vshll.u32 %v399, 16
      %v412 = vrot.slane %v410, 7
      %v413 = vsel %vm322, %v408, %v412
      %v415 = vmax.bf16 %v387, %v350
      %v416 = vmax.bf16 %v388, %v364
      %v417 = vmax.bf16 %v389, %v378
      %v418 = vmax.bf16 %v390, %v413
      %v419 = vmax.bf16 %v415, %v263
      %v420 = vmax.bf16 %v416, %v264
      %v421 = vmax.bf16 %v417, %v265
      %v422 = vmax.bf16 %v418, %v266
      %v423 = vmax.bf16 %v419, %v264
      %v424 = vmax.bf16 %v420, %v265
      %v425 = vmax.bf16 %v421, %v266
      %v426 = vmax.bf16 %v422, %v267
      %v427 = vmax.bf16 %v423, %v268
      %v428 = vmax.bf16 %v424, %v269
      %v429 = vmax.bf16 %v425, %v270
      %v430 = vmax.bf16 %v426, %v271
      %v436 = vunpack.c.l.s4 1983009808
      %v437 = vunpack.c.0.s8 %v436
      %v438 = vlaneseq
      %v439 = vshrl.u32 %v438, 7
      %v440 = vsub.s32 %v437, %v439
      %v441 = vrot.slane %v268, %v440
      %v442 = vcombine.high %v441, %v441
      %v444 = vunpack.c.l.s4 1983009808
      %v445 = vunpack.c.0.s8 %v444
      %v446 = vlaneseq
      %v447 = vshrl.u32 %v446, 7
      %v448 = vsub.s32 %v445, %v447
      %v449 = vrot.slane %v269, %v448
      %v450 = vcombine.high %v449, %v449
      %v452 = vunpack.c.l.s4 1983009808
      %v453 = vunpack.c.0.s8 %v452
      %v454 = vlaneseq
      %v455 = vshrl.u32 %v454, 7
      %v456 = vsub.s32 %v453, %v455
      %v457 = vrot.slane %v270, %v456
      %v458 = vcombine.high %v457, %v457
      %v460 = vunpack.c.l.s4 1983009808
      %v461 = vunpack.c.0.s8 %v460
      %v462 = vlaneseq
      %v463 = vshrl.u32 %v462, 7
      %v464 = vsub.s32 %v461, %v463
      %v465 = vrot.slane %v271, %v464
      %v466 = vcombine.high %v465, %v465
      %v468 = vshrl.u32 %v441, 16
      %v470 = vrot.slane %v468, 6
      %v471 = vshll.u32 %v441, 16
      %v473 = vrot.slane %v471, 7
      %v474 = vor.u32 %v470, %v473
      %v475 = vrot.slane %v474, 2
      %v477 = vshll.u32 %v442, 16
      %v479 = vrot.slane %v477, 7
      %v480 = vsel %vm322, %v475, %v479
      %v482 = vshrl.u32 %v449, 16
      %v484 = vrot.slane %v482, 6
      %v485 = vshll.u32 %v449, 16
      %v487 = vrot.slane %v485, 7
      %v488 = vor.u32 %v484, %v487
      %v489 = vrot.slane %v488, 2
      %v491 = vshll.u32 %v450, 16
      %v493 = vrot.slane %v491, 7
      %v494 = vsel %vm322, %v489, %v493
      %v496 = vshrl.u32 %v457, 16
      %v498 = vrot.slane %v496, 6
      %v499 = vshll.u32 %v457, 16
      %v501 = vrot.slane %v499, 7
      %v502 = vor.u32 %v498, %v501
      %v503 = vrot.slane %v502, 2
      %v505 = vshll.u32 %v458, 16
      %v507 = vrot.slane %v505, 7
      %v508 = vsel %vm322, %v503, %v507
      %v510 = vshrl.u32 %v465, 16
      %v512 = vrot.slane %v510, 6
      %v513 = vshll.u32 %v465, 16
      %v515 = vrot.slane %v513, 7
      %v516 = vor.u32 %v512, %v515
      %v517 = vrot.slane %v516, 2
      %v519 = vshll.u32 %v466, 16
      %v521 = vrot.slane %v519, 7
      %v522 = vsel %vm322, %v517, %v521
      %v527 = vmax.bf16 %v427, %v480
      %v528 = vmax.bf16 %v428, %v494
      %v529 = vmax.bf16 %v429, %v508
      %v530 = vmax.bf16 %v430, %v522
      %vm531 = vcmask 58368
      %532 = vst.msk [vmem:[%s257] sm:$0x3] %vm531, %v527
      %533 = vst.msk [vmem:[%s257 + $0x2] sm:$0x3] %vm531, %v528
      %534 = vst.msk [vmem:[%s257 + $0x4] sm:$0x3] %vm531, %v529
      %535 = vst.msk [vmem:[%s257 + $0x6] sm:$0x3] %vm531, %v530
      %p536 = scmp.lt.s32.totalorder %s15, 1
      %s537 = scalar_select %p536, %s15, 1
      %s538 = smul.addr %s537, 4
      %s539 = smul.addr %s538, 2
      %s540 = scalar_lea.vmem %s4, %s539
      // Predicated region
      $region37: #{resnet_forward.22} parent=35 // pred_check
        %p541 = pneg %p137
      $region38: #{resnet_forward.22} parent=35 // pred_check_branch
        %543 = sbr.rel (%p541) target = $region40
      $region39: #{resnet_forward.22} parent=35 // pred_region
        _
      $region40: #{resnet_forward.22} parent=35 // pred_fallthru
        _
    $region36: #{resnet_forward.22} parent=5 // pred_fallthru
      _
    %p544 = scmp.le.s32.totalorder 2, %s10
    // Predicated region
    $region41: #{resnet_forward.22} parent=5 // pred_check
      %p545 = pneg %p544
    $region42: #{resnet_forward.22} parent=5 // pred_check_branch
      %547 = sbr.rel (%p545) target = $region44
    $region43: #{resnet_forward.22} parent=5 // pred_region
      %s548 = ssub.s32 %s10, 2
      // Predicated region
      $region45: #{resnet_forward.22} parent=43 // pred_check
        %p549 = pneg %p143
      $region46: #{resnet_forward.22} parent=43 // pred_check_branch
        %551 = sbr.rel (%p549) target = $region48
      $region47: #{resnet_forward.22} parent=43 // pred_region
        %p552 = scmp.lt.s32.totalorder %s16, 1
        %s553 = scalar_select %p552, %s16, 1
        %s554 = smul.addr %s553, 4
        %s555 = smul.addr %s554, 2
        %s556 = scalar_lea.vmem %s4, %s555
      $region48: #{resnet_forward.22} parent=43 // pred_fallthru
        _
    $region44: #{resnet_forward.22} parent=5 // pred_fallthru
      _
  $region6: #{resnet_forward.22} parent=0 // loop_footer
    %s14 = sadd.s32 1, %s10
  $region7: #{resnet_forward.22} parent=0 // loop_footer_branch
    %9 = sbr.rel target = $region3
  $region8: #{resnet_forward.22} parent=0 // loop_exit
    _

// kernel: resnet_forward.21
$region0: #{resnet_forward.21}
  #allocation0 [shape = 'u32[]', space=smem, size = 0x4, offset = 0x4, fixed_abs, tag = 'smem constant byte address 0x4 - core index']
  #allocation1 [shape = 'u32[144,128]{1,0:T(1,128)}', space=vmem, size = 0x12000, scoped, tag = 'internal scratch']
  #allocation2 [shape = 'f32[128,8]{1,0:T(8,128)}', space=vmem, size = 0x10000, scoped, tag = 'scratch operand']
  %s0 = inlined_call_operand.vmem [shape: bf16[128,196], index: 0, kind: input, shape index: {}]
  %s1 = inlined_call_operand.vmem [shape: bf16[196,8], index: 1, kind: input, shape index: {}]
  %s2 = inlined_call_operand.vmem [shape: f32[1,8], index: 2, kind: input, shape index: {}]
  %s3 = inlined_call_operand.vmem [shape: bf16[128,8], index: 3, kind: output, shape index: {}]
  %s4 = sld [smem:[#allocation0]]
  $region30: #{resnet_forward.21} parent=0
    _
  %s6 = ssub.s32 1, %s4
  %s7 = scalar_select 0, %s6, %s4
  // Predicated region
  $region2: #{resnet_forward.21} parent=0 // pred_check
    _
  $region3: #{resnet_forward.21} parent=0 // pred_check_branch
    %9 = sbr.rel (0) target = $region5
  $region4: #{resnet_forward.21} parent=0 // pred_region
    _
  $region5: #{resnet_forward.21} parent=0 // pred_fallthru
    _
  // Predicated region
  $region6: #{resnet_forward.21} parent=0 // pred_check
    _
  $region7: #{resnet_forward.21} parent=0 // pred_check_branch
    %11 = sbr.rel (0) target = $region9
  $region8: #{resnet_forward.21} parent=0 // pred_region
    _
  $region9: #{resnet_forward.21} parent=0 // pred_fallthru
    _
  // Predicated region
  $region10: #{resnet_forward.21} parent=0 // pred_check
    _
  $region11: #{resnet_forward.21} parent=0 // pred_check_branch
    %13 = sbr.rel (0) target = $region13
  $region12: #{resnet_forward.21} parent=0 // pred_region
    _
  $region13: #{resnet_forward.21} parent=0 // pred_fallthru
    _
  %p15 = scmp.eq.s32.totalorder 0, 0
  // Predicated region
  $region14: #{resnet_forward.21} parent=0 // pred_check
    %p16 = pneg %p15
  $region15: #{resnet_forward.21} parent=0 // pred_check_branch
    %18 = sbr.rel (%p16) target = $region17
  $region16: #{resnet_forward.21} parent=0 // pred_region
    %vm19 = vcmask 64512
    %20 = vst.msk [vmem:[#allocation2] sm:$0xff] %vm19, 0.0
    %21 = vst.msk [vmem:[#allocation2 + $0x8] sm:$0xff] %vm19, 0.0
    %22 = vst.msk [vmem:[#allocation2 + $0x10] sm:$0xff] %vm19, 0.0
    %23 = vst.msk [vmem:[#allocation2 + $0x18] sm:$0xff] %vm19, 0.0
    %24 = vst.msk [vmem:[#allocation2 + $0x20] sm:$0xff] %vm19, 0.0
    %25 = vst.msk [vmem:[#allocation2 + $0x28] sm:$0xff] %vm19, 0.0
    %26 = vst.msk [vmem:[#allocation2 + $0x30] sm:$0xff] %vm19, 0.0
    %27 = vst.msk [vmem:[#allocation2 + $0x38] sm:$0xff] %vm19, 0.0
    %28 = vst.msk [vmem:[#allocation2 + $0x40] sm:$0xff] %vm19, 0.0
    %29 = vst.msk [vmem:[#allocation2 + $0x48] sm:$0xff] %vm19, 0.0
    %30 = vst.msk [vmem:[#allocation2 + $0x50] sm:$0xff] %vm19, 0.0
    %31 = vst.msk [vmem:[#allocation2 + $0x58] sm:$0xff] %vm19, 0.0
    %32 = vst.msk [vmem:[#allocation2 + $0x60] sm:$0xff] %vm19, 0.0
    %33 = vst.msk [vmem:[#allocation2 + $0x68] sm:$0xff] %vm19, 0.0
    %34 = vst.msk [vmem:[#allocation2 + $0x70] sm:$0xff] %vm19, 0.0
    %35 = vst.msk [vmem:[#allocation2 + $0x78] sm:$0xff] %vm19, 0.0
  $region17: #{resnet_forward.21} parent=0 // pred_fallthru
    _
  %v36 = vld [vmem:[#allocation2] sm:$0xff]
  %v37 = vld [vmem:[#allocation2 + $0x8] sm:$0xff]
  %v38 = vld [vmem:[#allocation2 + $0x10] sm:$0xff]
  %v39 = vld [vmem:[#allocation2 + $0x18] sm:$0xff]
  %v40 = vld [vmem:[#allocation2 + $0x20] sm:$0xff]
  %v41 = vld [vmem:[#allocation2 + $0x28] sm:$0xff]
  %v42 = vld [vmem:[#allocation2 + $0x30] sm:$0xff]
  %v43 = vld [vmem:[#allocation2 + $0x38] sm:$0xff]
  %v44 = vld [vmem:[#allocation2 + $0x40] sm:$0xff]
  %v45 = vld [vmem:[#allocation2 + $0x48] sm:$0xff]
  %v46 = vld [vmem:[#allocation2 + $0x50] sm:$0xff]
  %v47 = vld [vmem:[#allocation2 + $0x58] sm:$0xff]
  %v48 = vld [vmem:[#allocation2 + $0x60] sm:$0xff]
  %v49 = vld [vmem:[#allocation2 + $0x68] sm:$0xff]
  %v50 = vld [vmem:[#allocation2 + $0x70] sm:$0xff]
  %v51 = vld [vmem:[#allocation2 + $0x78] sm:$0xff]
  %v52 = vld [vmem:[%s0] sm:$0xff]
  %v53 = vld [vmem:[%s0 + $0x8] sm:$0xff]
  %v54 = vld [vmem:[%s0 + $0x10] sm:$0xff]
  %v55 = vld [vmem:[%s0 + $0x18] sm:$0xff]
  %v56 = vld [vmem:[%s0 + $0x20] sm:$0xff]
  %v57 = vld [vmem:[%s0 + $0x28] sm:$0xff]
  %v58 = vld [vmem:[%s0 + $0x30] sm:$0xff]
  %v59 = vld [vmem:[%s0 + $0x38] sm:$0xff]
  %v60 = vld [vmem:[%s0 + $0x40] sm:$0xff]
  %v61 = vld [vmem:[%s0 + $0x48] sm:$0xff]
  %v62 = vld [vmem:[%s0 + $0x50] sm:$0xff]
  %v63 = vld [vmem:[%s0 + $0x58] sm:$0xff]
  %v64 = vld [vmem:[%s0 + $0x60] sm:$0xff]
  %v65 = vld [vmem:[%s0 + $0x68] sm:$0xff]
  %v66 = vld [vmem:[%s0 + $0x70] sm:$0xff]
  %v67 = vld [vmem:[%s0 + $0x78] sm:$0xff]
  %v68 = vld [vmem:[%s1] sm:$0xf]
  %v69 = vld [vmem:[%s1 + $0x4] sm:$0xf]
  %v70 = vld [vmem:[%s1 + $0x8] sm:$0xf]
  %v71 = vld [vmem:[%s1 + $0xc] sm:$0xf]
  %v72 = vld [vmem:[%s1 + $0x10] sm:$0xf]
  %v73 = vld [vmem:[%s1 + $0x14] sm:$0xf]
  %v74 = vld [vmem:[%s1 + $0x18] sm:$0xf]
  %v75 = vld [vmem:[%s1 + $0x1c] sm:$0xf]
  %v76 = vld [vmem:[%s1 + $0x20] sm:$0xf]
  %v77 = vld [vmem:[%s1 + $0x24] sm:$0xf]
  %v78 = vld [vmem:[%s1 + $0x28] sm:$0xf]
  %v79 = vld [vmem:[%s1 + $0x2c] sm:$0xf]
  %v80 = vld [vmem:[%s1 + $0x30] sm:$0xf]
  %v81 = vld [vmem:[%s1 + $0x34] sm:$0xf]
  %v82 = vld [vmem:[%s1 + $0x38] sm:$0xf]
  %v83 = vld [vmem:[%s1 + $0x3c] sm:$0xf]
  %v84 = vld [vmem:[%s1 + $0x40] sm:$0xf]
  %v85 = vld [vmem:[%s1 + $0x44] sm:$0xf]
  %v86 = vld [vmem:[%s1 + $0x48] sm:$0xf]
  %v87 = vld [vmem:[%s1 + $0x4c] sm:$0xf]
  %v88 = vld [vmem:[%s1 + $0x50] sm:$0xf]
  %v89 = vld [vmem:[%s1 + $0x54] sm:$0xf]
  %v90 = vld [vmem:[%s1 + $0x58] sm:$0xf]
  %v91 = vld [vmem:[%s1 + $0x5c] sm:$0xf]
  %v92 = vld [vmem:[%s1 + $0x60] sm:$0x3]
  %v109 = vunpack.c.l.b16 %v52
  %v110 = vunpack.c.h.b16 %v52
  %v111 = vunpack.c.l.b16 %v53
  %v112 = vunpack.c.h.b16 %v53
  %v113 = vunpack.c.l.b16 %v54
  %v114 = vunpack.c.h.b16 %v54
  %v115 = vunpack.c.l.b16 %v55
  %v116 = vunpack.c.h.b16 %v55
  %v117 = vunpack.c.l.b16 %v56
  %v118 = vunpack.c.h.b16 %v56
  %v119 = vunpack.c.l.b16 %v57
  %v120 = vunpack.c.h.b16 %v57
  %v121 = vunpack.c.l.b16 %v58
  %v122 = vunpack.c.h.b16 %v58
  %v123 = vunpack.c.l.b16 %v59
  %v124 = vunpack.c.h.b16 %v59
  %v125 = vunpack.c.l.b16 %v60
  %v126 = vunpack.c.h.b16 %v60
  %v127 = vunpack.c.l.b16 %v61
  %v128 = vunpack.c.h.b16 %v61
  %v129 = vunpack.c.l.b16 %v62
  %v130 = vunpack.c.h.b16 %v62
  %v131 = vunpack.c.l.b16 %v63
  %v132 = vunpack.c.h.b16 %v63
  %v133 = vunpack.c.l.b16 %v64
  %v134 = vunpack.c.h.b16 %v64
  %v135 = vunpack.c.l.b16 %v65
  %v136 = vunpack.c.h.b16 %v65
  %v137 = vunpack.c.l.b16 %v66
  %v138 = vunpack.c.h.b16 %v66
  %v139 = vunpack.c.l.b16 %v67
  %v140 = vunpack.c.h.b16 %v67
  %v141 = vpack.c.b16 %v111, %v109
  %v142 = vpack.c.b16 %v112, %v110
  %v143 = vpack.c.b16 %v115, %v113
  %v144 = vpack.c.b16 %v116, %v114
  %v145 = vpack.c.b16 %v119, %v117
  %v146 = vpack.c.b16 %v120, %v118
  %v147 = vpack.c.b16 %v123, %v121
  %v148 = vpack.c.b16 %v124, %v122
  %v149 = vpack.c.b16 %v127, %v125
  %v150 = vpack.c.b16 %v128, %v126
  %v151 = vpack.c.b16 %v131, %v129
  %v152 = vpack.c.b16 %v132, %v130
  %v153 = vpack.c.b16 %v135, %v133
  %v154 = vpack.c.b16 %v136, %v134
  %v155 = vpack.c.b16 %v139, %v137
  %v156 = vpack.c.b16 %v140, %v138
  %v190 = vunpack.c.l.b16 %v68
  %v191 = vunpack.c.l.b16 %v69
  %v192 = vunpack.c.l.b16 %v70
  %v193 = vunpack.c.l.b16 %v71
  %v194 = vunpack.c.l.b16 %v72
  %v195 = vunpack.c.l.b16 %v73
  %v196 = vunpack.c.l.b16 %v74
  %v197 = vunpack.c.l.b16 %v75
  %v198 = vunpack.c.l.b16 %v76
  %v199 = vunpack.c.l.b16 %v77
  %v200 = vunpack.c.l.b16 %v78
  %v201 = vunpack.c.l.b16 %v79
  %v202 = vunpack.c.l.b16 %v80
  %v203 = vunpack.c.l.b16 %v81
  %v204 = vunpack.c.l.b16 %v82
  %v205 = vunpack.c.l.b16 %v83
  %v206 = vunpack.c.l.b16 %v84
  %v207 = vunpack.c.l.b16 %v85
  %v208 = vunpack.c.l.b16 %v86
  %v209 = vunpack.c.l.b16 %v87
  %v210 = vunpack.c.l.b16 %v88
  %v211 = vunpack.c.l.b16 %v89
  %v212 = vunpack.c.l.b16 %v90
  %v213 = vunpack.c.l.b16 %v91
  %v214 = vunpack.c.l.b16 %v92
  %v215 = vpack.c.b16 %v191, %v190
  %v216 = vpack.c.b16 %v193, %v192
  %v217 = vpack.c.b16 %v195, %v194
  %v218 = vpack.c.b16 %v197, %v196
  %v219 = vpack.c.b16 %v199, %v198
  %v220 = vpack.c.b16 %v201, %v200
  %v221 = vpack.c.b16 %v203, %v202
  %v222 = vpack.c.b16 %v205, %v204
  %v223 = vpack.c.b16 %v207, %v206
  %v224 = vpack.c.b16 %v209, %v208
  %v225 = vpack.c.b16 %v211, %v210
  %v226 = vpack.c.b16 %v213, %v212
  %v227 = vpack.c.b16 %v214, %v214
  %vm240 = vcmask 556032
  %v242 = vsel %vm240, %v142, 0
  %v245 = vsel %vm240, %v144, 0
  %v248 = vsel %vm240, %v146, 0
  %v251 = vsel %vm240, %v148, 0
  %v254 = vsel %vm240, %v150, 0
  %v257 = vsel %vm240, %v152, 0
  %v260 = vsel %vm240, %v154, 0
  %v263 = vsel %vm240, %v156, 0
  %vm265 = vcmask 1041408
  %v267 = vsel %vm265, %v227, 0
  %269 = vmatprep.subr.bf16.mxu0 0
  %270 = vmatpush1.bf16.msra.mxu0 %v222
  %271 = vmatprep.subr.bf16.mxu0 0
  %272 = vmatpush1.bf16.msra.mxu0 %v221
  %273 = vmatprep.subr.bf16.mxu0 0
  %274 = vmatpush1.bf16.msra.mxu0 %v220
  %275 = vmatprep.subr.bf16.mxu0 0
  %276 = vmatpush1.bf16.msra.mxu0 %v219
  %277 = vmatprep.subr.bf16.mxu0 0
  %278 = vmatpush1.bf16.msra.mxu0 %v218
  %279 = vmatprep.subr.bf16.mxu0 0
  %280 = vmatpush1.bf16.msra.mxu0 %v217
  %281 = vmatprep.subr.bf16.mxu0 0
  %282 = vmatpush1.bf16.msra.mxu0 %v216
  %283 = vmatprep.subr.bf16.mxu0 0
  %284 = vmatpush1.bf16.msra.mxu0 %v215
  %285 = vmatprep.subr.bf16.mxu0 0
  %286 = vmatpush2.bf16.msra.mxu0 0
  %287 = vmatprep.subr.bf16.mxu0 0
  %288 = vmatpush2.bf16.msra.mxu0 0
  %289 = vmatprep.subr.bf16.mxu0 0
  %290 = vmatpush2.bf16.msra.mxu0 0
  %291 = vmatprep.subr.bf16.mxu0 0
  %292 = vmatpush2.bf16.msra.mxu0 %v267
  %293 = vmatprep.subr.bf16.mxu0 0
  %294 = vmatpush2.bf16.msra.mxu0 %v226
  %295 = vmatprep.subr.bf16.mxu0 0
  %296 = vmatpush2.bf16.msra.mxu0 %v225
  %297 = vmatprep.subr.bf16.mxu0 0
  %298 = vmatpush2.bf16.msra.mxu0 %v224
  %299 = vmatprep.subr.bf16.mxu0 0
  %300 = vmatpush2.bf16.msra.mxu0 %v223
  %301 = vmatprep.mubr.bf16.mxu0 %v242
  %302 = vmatmul.mubr.bf16.gmra.mxu0 %v141
  %v303 = vpop.f32.mrf.mxu0
  %v304 = vadd.f32 0.0, %v303
  %v305 = vpop.f32.mrf.mxu0
  %v306 = vpop.f32.mrf.mxu0
  %v307 = vadd.f32 0.0, %v306
  %v308 = vpop.f32.mrf.mxu0
  %309 = vmatprep.mubr.bf16.mxu0 %v245
  %310 = vmatmul.mubr.bf16.gmra.mxu0 %v143
  %v311 = vpop.f32.mrf.mxu0
  %v312 = vadd.f32 0.0, %v311
  %v313 = vpop.f32.mrf.mxu0
  %v314 = vpop.f32.mrf.mxu0
  %v315 = vadd.f32 0.0, %v314
  %v316 = vpop.f32.mrf.mxu0
  %317 = vmatprep.mubr.bf16.mxu0 %v248
  %318 = vmatmul.mubr.bf16.gmra.mxu0 %v145
  %v319 = vpop.f32.mrf.mxu0
  %v320 = vadd.f32 0.0, %v319
  %v321 = vpop.f32.mrf.mxu0
  %v322 = vpop.f32.mrf.mxu0
  %v323 = vadd.f32 0.0, %v322
  %v324 = vpop.f32.mrf.mxu0
  %325 = vmatprep.mubr.bf16.mxu0 %v251
  %326 = vmatmul.mubr.bf16.gmra.mxu0 %v147
  %v327 = vpop.f32.mrf.mxu0
  %v328 = vadd.f32 0.0, %v327
  %v329 = vpop.f32.mrf.mxu0
  %v330 = vpop.f32.mrf.mxu0
  %v331 = vadd.f32 0.0, %v330
  %v332 = vpop.f32.mrf.mxu0
  %333 = vmatprep.mubr.bf16.mxu0 %v254
  %334 = vmatmul.mubr.bf16.gmra.mxu0 %v149
  %v335 = vpop.f32.mrf.mxu0
  %v336 = vadd.f32 0.0, %v335
  %v337 = vpop.f32.mrf.mxu0
  %v338 = vpop.f32.mrf.mxu0
  %v339 = vadd.f32 0.0, %v338
  %v340 = vpop.f32.mrf.mxu0
  %341 = vmatprep.mubr.bf16.mxu0 %v257
  %342 = vmatmul.mubr.bf16.gmra.mxu0 %v151
  %v343 = vpop.f32.mrf.mxu0
  %v344 = vadd.f32 0.0, %v343
  %v345 = vpop.f32.mrf.mxu0
  %v346 = vpop.f32.mrf.mxu0
  %v347 = vadd.f32 0.0, %v346
  %v348 = vpop.f32.mrf.mxu0
  %349 = vmatprep.mubr.bf16.mxu0 %v260
  %350 = vmatmul.mubr.bf16.gmra.mxu0 %v153
  %v351 = vpop.f32.mrf.mxu0
  %v352 = vadd.f32 0.0, %v351
  %v353 = vpop.f32.mrf.mxu0
  %v354 = vpop.f32.mrf.mxu0
  %v355 = vadd.f32 0.0, %v354
  %v356 = vpop.f32.mrf.mxu0
  %357 = vmatprep.mubr.bf16.mxu0 %v263
  %358 = vmatmul.mubr.bf16.gmra.mxu0 %v155
  %v359 = vpop.f32.mrf.mxu0
  %v360 = vadd.f32 0.0, %v359
  %v361 = vpop.f32.mrf.mxu0
  %v362 = vpop.f32.mrf.mxu0
  %v363 = vadd.f32 0.0, %v362
  %v364 = vpop.f32.mrf.mxu0
  %365 = vdwg.mxu0
  %v366 = vadd.f32 %v36, %v304
  %v367 = vadd.f32 %v37, %v307
  %v368 = vadd.f32 %v38, %v312
  %v369 = vadd.f32 %v39, %v315
  %v370 = vadd.f32 %v40, %v320
  %v371 = vadd.f32 %v41, %v323
  %v372 = vadd.f32 %v42, %v328
  %v373 = vadd.f32 %v43, %v331
  %v374 = vadd.f32 %v44, %v336
  %v375 = vadd.f32 %v45, %v339
  %v376 = vadd.f32 %v46, %v344
  %v377 = vadd.f32 %v47, %v347
  %v378 = vadd.f32 %v48, %v352
  %v379 = vadd.f32 %v49, %v355
  %v380 = vadd.f32 %v50, %v360
  %v381 = vadd.f32 %v51, %v363
  %vm382 = vcmask 64512
  %383 = vst.msk [vmem:[#allocation2] sm:$0xff] %vm382, %v366
  %384 = vst.msk [vmem:[#allocation2 + $0x8] sm:$0xff] %vm382, %v367
  %385 = vst.msk [vmem:[#allocation2 + $0x10] sm:$0xff] %vm382, %v368
  %386 = vst.msk [vmem:[#allocation2 + $0x18] sm:$0xff] %vm382, %v369
  %387 = vst.msk [vmem:[#allocation2 + $0x20] sm:$0xff] %vm382, %v370
  %388 = vst.msk [vmem:[#allocation2 + $0x28] sm:$0xff] %vm382, %v371
  %389 = vst.msk [vmem:[#allocation2 + $0x30] sm:$0xff] %vm382, %v372
  %390 = vst.msk [vmem:[#allocation2 + $0x38] sm:$0xff] %vm382, %v373
  %391 = vst.msk [vmem:[#allocation2 + $0x40] sm:$0xff] %vm382, %v374
  %392 = vst.msk [vmem:[#allocation2 + $0x48] sm:$0xff] %vm382, %v375
  %393 = vst.msk [vmem:[#allocation2 + $0x50] sm:$0xff] %vm382, %v376
  %394 = vst.msk [vmem:[#allocation2 + $0x58] sm:$0xff] %vm382, %v377
  %395 = vst.msk [vmem:[#allocation2 + $0x60] sm:$0xff] %vm382, %v378
  %396 = vst.msk [vmem:[#allocation2 + $0x68] sm:$0xff] %vm382, %v379
  %397 = vst.msk [vmem:[#allocation2 + $0x70] sm:$0xff] %vm382, %v380
  %398 = vst.msk [vmem:[#allocation2 + $0x78] sm:$0xff] %vm382, %v381
  // Predicated region
  $region18: #{resnet_forward.21} parent=0 // pred_check
    %p399 = pneg %p15
  $region19: #{resnet_forward.21} parent=0 // pred_check_branch
    %401 = sbr.rel (%p399) target = $region21
  $region20: #{resnet_forward.21} parent=0 // pred_region
    %v402 = vld [vmem:[#allocation2] sm:$0xff]
    %v403 = vld [vmem:[#allocation2 + $0x8] sm:$0xff]
    %v404 = vld [vmem:[#allocation2 + $0x10] sm:$0xff]
    %v405 = vld [vmem:[#allocation2 + $0x18] sm:$0xff]
    %v406 = vld [vmem:[#allocation2 + $0x20] sm:$0xff]
    %v407 = vld [vmem:[#allocation2 + $0x28] sm:$0xff]
    %v408 = vld [vmem:[#allocation2 + $0x30] sm:$0xff]
    %v409 = vld [vmem:[#allocation2 + $0x38] sm:$0xff]
    %v410 = vld [vmem:[#allocation2 + $0x40] sm:$0xff]
    %v411 = vld [vmem:[#allocation2 + $0x48] sm:$0xff]
    %v412 = vld [vmem:[#allocation2 + $0x50] sm:$0xff]
    %v413 = vld [vmem:[#allocation2 + $0x58] sm:$0xff]
    %v414 = vld [vmem:[#allocation2 + $0x60] sm:$0xff]
    %v415 = vld [vmem:[#allocation2 + $0x68] sm:$0xff]
    %v416 = vld [vmem:[#allocation2 + $0x70] sm:$0xff]
    %v417 = vld [vmem:[#allocation2 + $0x78] sm:$0xff]
    %v418 = vld [vmem:[%s2] sm:$0x1]
    %v420 = vlaneseq
    %v421 = vshrl.u32 %v420, 7
    %v422 = vsub.s32 0, %v421
    %v423 = vrot.slane %v418, %v422
    %v425 = vadd.f32 %v402, %v423
    %v426 = vadd.f32 %v403, %v423
    %v427 = vadd.f32 %v404, %v423
    %v428 = vadd.f32 %v405, %v423
    %v429 = vadd.f32 %v406, %v423
    %v430 = vadd.f32 %v407, %v423
    %v431 = vadd.f32 %v408, %v423
    %v432 = vadd.f32 %v409, %v423
    %v433 = vadd.f32 %v410, %v423
    %v434 = vadd.f32 %v411, %v423
    %v435 = vadd.f32 %v412, %v423
    %v436 = vadd.f32 %v413, %v423
    %v437 = vadd.f32 %v414, %v423
    %v438 = vadd.f32 %v415, %v423
    %v439 = vadd.f32 %v416, %v423
    %v440 = vadd.f32 %v417, %v423
    %v441 = vmax.f32 %v425, 0.0
    %v442 = vmax.f32 %v426, 0.0
    %v443 = vmax.f32 %v427, 0.0
    %v444 = vmax.f32 %v428, 0.0
    %v445 = vmax.f32 %v429, 0.0
    %v446 = vmax.f32 %v430, 0.0
    %v447 = vmax.f32 %v431, 0.0
    %v448 = vmax.f32 %v432, 0.0
    %v449 = vmax.f32 %v433, 0.0
    %v450 = vmax.f32 %v434, 0.0
    %v451 = vmax.f32 %v435, 0.0
    %v452 = vmax.f32 %v436, 0.0
    %v453 = vmax.f32 %v437, 0.0
    %v454 = vmax.f32 %v438, 0.0
    %v455 = vmax.f32 %v439, 0.0
    %v456 = vmax.f32 %v440, 0.0
    %v457 = vpack.c.bf16 %v442, %v441
    %v458 = vpack.c.bf16 %v444, %v443
    %v459 = vpack.c.bf16 %v446, %v445
    %v460 = vpack.c.bf16 %v448, %v447
    %v461 = vpack.c.bf16 %v450, %v449
    %v462 = vpack.c.bf16 %v452, %v451
    %v463 = vpack.c.bf16 %v454, %v453
    %v464 = vpack.c.bf16 %v456, %v455
    %v473 = vunpack.c.l.b16 %v457
    %v474 = vunpack.c.h.b16 %v457
    %v475 = vunpack.c.l.b16 %v458
    %v476 = vunpack.c.h.b16 %v458
    %v477 = vunpack.c.l.b16 %v459
    %v478 = vunpack.c.h.b16 %v459
    %v479 = vunpack.c.l.b16 %v460
    %v480 = vunpack.c.h.b16 %v460
    %v481 = vunpack.c.l.b16 %v461
    %v482 = vunpack.c.h.b16 %v461
    %v483 = vunpack.c.l.b16 %v462
    %v484 = vunpack.c.h.b16 %v462
    %v485 = vunpack.c.l.b16 %v463
    %v486 = vunpack.c.h.b16 %v463
    %v487 = vunpack.c.l.b16 %v464
    %v488 = vunpack.c.h.b16 %v464
    %v489 = vpack.c.b16 %v473, %v473
    %v490 = vpack.c.b16 %v474, %v474
    %v491 = vpack.c.b16 %v475, %v475
    %v492 = vpack.c.b16 %v476, %v476
    %v493 = vpack.c.b16 %v477, %v477
    %v494 = vpack.c.b16 %v478, %v478
    %v495 = vpack.c.b16 %v479, %v479
    %v496 = vpack.c.b16 %v480, %v480
    %v497 = vpack.c.b16 %v481, %v481
    %v498 = vpack.c.b16 %v482, %v482
    %v499 = vpack.c.b16 %v483, %v483
    %v500 = vpack.c.b16 %v484, %v484
    %v501 = vpack.c.b16 %v485, %v485
    %v502 = vpack.c.b16 %v486, %v486
    %v503 = vpack.c.b16 %v487, %v487
    %v504 = vpack.c.b16 %v488, %v488
    %vm521 = vcmask 60416
    %522 = vst.msk [vmem:[%s3] sm:$0xf] %vm521, %v489
    %523 = vst.msk [vmem:[%s3 + $0x4] sm:$0xf] %vm521, %v490
    %524 = vst.msk [vmem:[%s3 + $0x8] sm:$0xf] %vm521, %v491
    %525 = vst.msk [vmem:[%s3 + $0xc] sm:$0xf] %vm521, %v492
    %526 = vst.msk [vmem:[%s3 + $0x10] sm:$0xf] %vm521, %v493
    %527 = vst.msk [vmem:[%s3 + $0x14] sm:$0xf] %vm521, %v494
    %528 = vst.msk [vmem:[%s3 + $0x18] sm:$0xf] %vm521, %v495
    %529 = vst.msk [vmem:[%s3 + $0x1c] sm:$0xf] %vm521, %v496
    %530 = vst.msk [vmem:[%s3 + $0x20] sm:$0xf] %vm521, %v497
    %531 = vst.msk [vmem:[%s3 + $0x24] sm:$0xf] %vm521, %v498
    %532 = vst.msk [vmem:[%s3 + $0x28] sm:$0xf] %vm521, %v499
    %533 = vst.msk [vmem:[%s3 + $0x2c] sm:$0xf] %vm521, %v500
    %534 = vst.msk [vmem:[%s3 + $0x30] sm:$0xf] %vm521, %v501
    %535 = vst.msk [vmem:[%s3 + $0x34] sm:$0xf] %vm521, %v502
    %536 = vst.msk [vmem:[%s3 + $0x38] sm:$0xf] %vm521, %v503
    %537 = vst.msk [vmem:[%s3 + $0x3c] sm:$0xf] %vm521, %v504
  $region21: #{resnet_forward.21} parent=0 // pred_fallthru
    _
  // Predicated region
  $region22: #{resnet_forward.21} parent=0 // pred_check
    _
  $region23: #{resnet_forward.21} parent=0 // pred_check_branch
    %539 = sbr.rel (0) target = $region25
  $region24: #{resnet_forward.21} parent=0 // pred_region
    _
  $region25: #{resnet_forward.21} parent=0 // pred_fallthru
    _
  // Predicated region
  $region26: #{resnet_forward.21} parent=0 // pred_check
    _
  $region27: #{resnet_forward.21} parent=0 // pred_check_branch
    %541 = sbr.rel (0) target = $region29
  $region28: #{resnet_forward.21} parent=0 // pred_region
    _
  $region29: #{resnet_forward.21} parent=0 // pred_fallthru
    _

// kernel: resnet_forward.23
$region0: #{resnet_forward.23}
  #allocation0 [shape = 'u32[]', space=smem, size = 0x4, offset = 0x4, fixed_abs, tag = 'smem constant byte address 0x4 - core index']
  #allocation1 [shape = 'u32[144,128]{1,0:T(1,128)}', space=vmem, size = 0x12000, scoped, tag = 'internal scratch']
  #allocation2 [shape = 'f32[32,8]{1,0:T(8,128)}', space=vmem, size = 0x4000, scoped, tag = 'scratch operand']
  %s0 = inlined_call_operand.vmem [shape: bf16[32,72], index: 0, kind: input, shape index: {}]
  %s1 = inlined_call_operand.vmem [shape: bf16[72,8], index: 1, kind: input, shape index: {}]
  %s2 = inlined_call_operand.vmem [shape: f32[1,8], index: 2, kind: input, shape index: {}]
  %s3 = inlined_call_operand.vmem [shape: bf16[32,8], index: 3, kind: output, shape index: {}]
  %s4 = sld [smem:[#allocation0]]
  $region30: #{resnet_forward.23} parent=0
    _
  %s6 = ssub.s32 1, %s4
  %s7 = scalar_select 0, %s6, %s4
  // Predicated region
  $region2: #{resnet_forward.23} parent=0 // pred_check
    _
  $region3: #{resnet_forward.23} parent=0 // pred_check_branch
    %9 = sbr.rel (0) target = $region5
  $region4: #{resnet_forward.23} parent=0 // pred_region
    _
  $region5: #{resnet_forward.23} parent=0 // pred_fallthru
    _
  // Predicated region
  $region6: #{resnet_forward.23} parent=0 // pred_check
    _
  $region7: #{resnet_forward.23} parent=0 // pred_check_branch
    %11 = sbr.rel (0) target = $region9
  $region8: #{resnet_forward.23} parent=0 // pred_region
    _
  $region9: #{resnet_forward.23} parent=0 // pred_fallthru
    _
  // Predicated region
  $region10: #{resnet_forward.23} parent=0 // pred_check
    _
  $region11: #{resnet_forward.23} parent=0 // pred_check_branch
    %13 = sbr.rel (0) target = $region13
  $region12: #{resnet_forward.23} parent=0 // pred_region
    _
  $region13: #{resnet_forward.23} parent=0 // pred_fallthru
    _
  %p15 = scmp.eq.s32.totalorder 0, 0
  // Predicated region
  $region14: #{resnet_forward.23} parent=0 // pred_check
    %p16 = pneg %p15
  $region15: #{resnet_forward.23} parent=0 // pred_check_branch
    %18 = sbr.rel (%p16) target = $region17
  $region16: #{resnet_forward.23} parent=0 // pred_region
    %vm19 = vcmask 64512
    %20 = vst.msk [vmem:[#allocation2] sm:$0xff] %vm19, 0.0
    %21 = vst.msk [vmem:[#allocation2 + $0x8] sm:$0xff] %vm19, 0.0
    %22 = vst.msk [vmem:[#allocation2 + $0x10] sm:$0xff] %vm19, 0.0
    %23 = vst.msk [vmem:[#allocation2 + $0x18] sm:$0xff] %vm19, 0.0
  $region17: #{resnet_forward.23} parent=0 // pred_fallthru
    _
  %v24 = vld [vmem:[#allocation2] sm:$0xff]
  %v25 = vld [vmem:[#allocation2 + $0x8] sm:$0xff]
  %v26 = vld [vmem:[#allocation2 + $0x10] sm:$0xff]
  %v27 = vld [vmem:[#allocation2 + $0x18] sm:$0xff]
  %v28 = vld [vmem:[%s0] sm:$0xf]
  %v29 = vld [vmem:[%s0 + $0x4] sm:$0xf]
  %v30 = vld [vmem:[%s0 + $0x8] sm:$0xf]
  %v31 = vld [vmem:[%s0 + $0xc] sm:$0xf]
  %v32 = vld [vmem:[%s1] sm:$0xf]
  %v33 = vld [vmem:[%s1 + $0x4] sm:$0xf]
  %v34 = vld [vmem:[%s1 + $0x8] sm:$0xf]
  %v35 = vld [vmem:[%s1 + $0xc] sm:$0xf]
  %v36 = vld [vmem:[%s1 + $0x10] sm:$0xf]
  %v37 = vld [vmem:[%s1 + $0x14] sm:$0xf]
  %v38 = vld [vmem:[%s1 + $0x18] sm:$0xf]
  %v39 = vld [vmem:[%s1 + $0x1c] sm:$0xf]
  %v40 = vld [vmem:[%s1 + $0x20] sm:$0xf]
  %v45 = vunpack.c.l.b16 %v28
  %v46 = vunpack.c.l.b16 %v29
  %v47 = vunpack.c.l.b16 %v30
  %v48 = vunpack.c.l.b16 %v31
  %v49 = vpack.c.b16 %v46, %v45
  %v50 = vpack.c.b16 %v48, %v47
  %v60 = vunpack.c.l.b16 %v32
  %v61 = vunpack.c.l.b16 %v33
  %v62 = vunpack.c.l.b16 %v34
  %v63 = vunpack.c.l.b16 %v35
  %v64 = vunpack.c.l.b16 %v36
  %v65 = vunpack.c.l.b16 %v37
  %v66 = vunpack.c.l.b16 %v38
  %v67 = vunpack.c.l.b16 %v39
  %v68 = vunpack.c.l.b16 %v40
  %v69 = vpack.c.b16 %v61, %v60
  %v70 = vpack.c.b16 %v63, %v62
  %v71 = vpack.c.b16 %v65, %v64
  %v72 = vpack.c.b16 %v67, %v66
  %v73 = vpack.c.b16 %v68, %v68
  %vm78 = vcmask 588800
  %v80 = vsel %vm78, %v49, 0
  %v83 = vsel %vm78, %v50, 0
  %vm85 = vcmask 1043456
  %v87 = vsel %vm85, %v73, 0
  %89 = vmatprep.subr.bf16.mxu0 0
  %90 = vmatpush1.bf16.msra.mxu0 0
  %91 = vmatprep.subr.bf16.mxu0 0
  %92 = vmatpush1.bf16.msra.mxu0 0
  %93 = vmatprep.subr.bf16.mxu0 0
  %94 = vmatpush1.bf16.msra.mxu0 0
  %95 = vmatprep.subr.bf16.mxu0 0
  %96 = vmatpush1.bf16.msra.mxu0 %v87
  %97 = vmatprep.subr.bf16.mxu0 0
  %98 = vmatpush1.bf16.msra.mxu0 %v72
  %99 = vmatprep.subr.bf16.mxu0 0
  %100 = vmatpush1.bf16.msra.mxu0 %v71
  %101 = vmatprep.subr.bf16.mxu0 0
  %102 = vmatpush1.bf16.msra.mxu0 %v70
  %103 = vmatprep.subr.bf16.mxu0 0
  %104 = vmatpush1.bf16.msra.mxu0 %v69
  %105 = vmatprep.subr.bf16.mxu0 0
  %106 = vmatpush2.bf16.msra.mxu0 0
  %107 = vmatprep.subr.bf16.mxu0 0
  %108 = vmatpush2.bf16.msra.mxu0 0
  %109 = vmatprep.subr.bf16.mxu0 0
  %110 = vmatpush2.bf16.msra.mxu0 0
  %111 = vmatprep.subr.bf16.mxu0 0
  %112 = vmatpush2.bf16.msra.mxu0 0
  %113 = vmatprep.subr.bf16.mxu0 0
  %114 = vmatpush2.bf16.msra.mxu0 0
  %115 = vmatprep.subr.bf16.mxu0 0
  %116 = vmatpush2.bf16.msra.mxu0 0
  %117 = vmatprep.subr.bf16.mxu0 0
  %118 = vmatpush2.bf16.msra.mxu0 0
  %119 = vmatprep.subr.bf16.mxu0 0
  %120 = vmatpush2.bf16.msra.mxu0 0
  %121 = vmatprep.mubr.bf16.mxu0 0
  %122 = vmatmul.mubr.bf16.gmra.mxu0 %v80
  %v123 = vpop.f32.mrf.mxu0
  %v124 = vadd.f32 0.0, %v123
  %v125 = vpop.f32.mrf.mxu0
  %v126 = vpop.f32.mrf.mxu0
  %v127 = vadd.f32 0.0, %v126
  %v128 = vpop.f32.mrf.mxu0
  %129 = vmatprep.mubr.bf16.mxu0 0
  %130 = vmatmul.mubr.bf16.gmra.mxu0 %v83
  %v131 = vpop.f32.mrf.mxu0
  %v132 = vadd.f32 0.0, %v131
  %v133 = vpop.f32.mrf.mxu0
  %v134 = vpop.f32.mrf.mxu0
  %v135 = vadd.f32 0.0, %v134
  %v136 = vpop.f32.mrf.mxu0
  %137 = vdwg.mxu0
  %v138 = vadd.f32 %v24, %v124
  %v139 = vadd.f32 %v25, %v127
  %v140 = vadd.f32 %v26, %v132
  %v141 = vadd.f32 %v27, %v135
  %vm142 = vcmask 64512
  %143 = vst.msk [vmem:[#allocation2] sm:$0xff] %vm142, %v138
  %144 = vst.msk [vmem:[#allocation2 + $0x8] sm:$0xff] %vm142, %v139
  %145 = vst.msk [vmem:[#allocation2 + $0x10] sm:$0xff] %vm142, %v140
  %146 = vst.msk [vmem:[#allocation2 + $0x18] sm:$0xff] %vm142, %v141
  // Predicated region
  $region18: #{resnet_forward.23} parent=0 // pred_check
    %p147 = pneg %p15
  $region19: #{resnet_forward.23} parent=0 // pred_check_branch
    %149 = sbr.rel (%p147) target = $region21
  $region20: #{resnet_forward.23} parent=0 // pred_region
    %v150 = vld [vmem:[#allocation2] sm:$0xff]
    %v151 = vld [vmem:[#allocation2 + $0x8] sm:$0xff]
    %v152 = vld [vmem:[#allocation2 + $0x10] sm:$0xff]
    %v153 = vld [vmem:[#allocation2 + $0x18] sm:$0xff]
    %v154 = vld [vmem:[%s2] sm:$0x1]
    %v156 = vlaneseq
    %v157 = vshrl.u32 %v156, 7
    %v158 = vsub.s32 0, %v157
    %v159 = vrot.slane %v154, %v158
    %v161 = vadd.f32 %v150, %v159
    %v162 = vadd.f32 %v151, %v159
    %v163 = vadd.f32 %v152, %v159
    %v164 = vadd.f32 %v153, %v159
    %v165 = vmax.f32 %v161, 0.0
    %v166 = vmax.f32 %v162, 0.0
    %v167 = vmax.f32 %v163, 0.0
    %v168 = vmax.f32 %v164, 0.0
    %v169 = vpack.c.bf16 %v166, %v165
    %v170 = vpack.c.bf16 %v168, %v167
    %v173 = vunpack.c.l.b16 %v169
    %v174 = vunpack.c.h.b16 %v169
    %v175 = vunpack.c.l.b16 %v170
    %v176 = vunpack.c.h.b16 %v170
    %v177 = vpack.c.b16 %v173, %v173
    %v178 = vpack.c.b16 %v174, %v174
    %v179 = vpack.c.b16 %v175, %v175
    %v180 = vpack.c.b16 %v176, %v176
    %vm185 = vcmask 60416
    %186 = vst.msk [vmem:[%s3] sm:$0xf] %vm185, %v177
    %187 = vst.msk [vmem:[%s3 + $0x4] sm:$0xf] %vm185, %v178
    %188 = vst.msk [vmem:[%s3 + $0x8] sm:$0xf] %vm185, %v179
    %189 = vst.msk [vmem:[%s3 + $0xc] sm:$0xf] %vm185, %v180
  $region21: #{resnet_forward.23} parent=0 // pred_fallthru
    _
  // Predicated region
  $region22: #{resnet_forward.23} parent=0 // pred_check
    _
  $region23: #{resnet_forward.23} parent=0 // pred_check_branch
    %191 = sbr.rel (0) target = $region25
  $region24: #{resnet_forward.23} parent=0 // pred_region
    _
  $region25: #{resnet_forward.23} parent=0 // pred_fallthru
    _
  // Predicated region
  $region26: #{resnet_forward.23} parent=0 // pred_check
    _
  $region27: #{resnet_forward.23} parent=0 // pred_check_branch
    %193 = sbr.rel (0) target = $region29
  $region28: #{resnet_forward.23} parent=0 // pred_region
    _
  $region29: #{resnet_forward.23} parent=0 // pred_fallthru
    _

// kernel: resnet_forward.24
$region0: #{resnet_forward.24}
  #allocation0 [shape = 'u32[]', space=smem, size = 0x4, offset = 0x4, fixed_abs, tag = 'smem constant byte address 0x4 - core index']
  #allocation1 [shape = 'u32[144,128]{1,0:T(1,128)}', space=vmem, size = 0x12000, scoped, tag = 'internal scratch']
  #allocation2 [shape = 'f32[32,8]{1,0:T(8,128)}', space=vmem, size = 0x4000, scoped, tag = 'scratch operand']
  %s0 = inlined_call_operand.vmem [shape: bf16[32,72], index: 0, kind: input, shape index: {}]
  %s1 = inlined_call_operand.vmem [shape: bf16[72,8], index: 1, kind: input, shape index: {}]
  %s2 = inlined_call_operand.vmem [shape: f32[1,8], index: 2, kind: input, shape index: {}]
  %s3 = inlined_call_operand.vmem [shape: bf16[32,8], index: 3, kind: input, shape index: {}]
  %s4 = inlined_call_operand.vmem [shape: bf16[32,8], index: 4, kind: output, shape index: {}]
  %s5 = sld [smem:[#allocation0]]
  $region34: #{resnet_forward.24} parent=0
    _
  %s7 = ssub.s32 1, %s5
  %s8 = scalar_select 0, %s7, %s5
  // Predicated region
  $region2: #{resnet_forward.24} parent=0 // pred_check
    _
  $region3: #{resnet_forward.24} parent=0 // pred_check_branch
    %10 = sbr.rel (0) target = $region5
  $region4: #{resnet_forward.24} parent=0 // pred_region
    _
  $region5: #{resnet_forward.24} parent=0 // pred_fallthru
    _
  // Predicated region
  $region6: #{resnet_forward.24} parent=0 // pred_check
    _
  $region7: #{resnet_forward.24} parent=0 // pred_check_branch
    %12 = sbr.rel (0) target = $region9
  $region8: #{resnet_forward.24} parent=0 // pred_region
    _
  $region9: #{resnet_forward.24} parent=0 // pred_fallthru
    _
  // Predicated region
  $region10: #{resnet_forward.24} parent=0 // pred_check
    _
  $region11: #{resnet_forward.24} parent=0 // pred_check_branch
    %14 = sbr.rel (0) target = $region13
  $region12: #{resnet_forward.24} parent=0 // pred_region
    _
  $region13: #{resnet_forward.24} parent=0 // pred_fallthru
    _
  // Predicated region
  $region14: #{resnet_forward.24} parent=0 // pred_check
    _
  $region15: #{resnet_forward.24} parent=0 // pred_check_branch
    %16 = sbr.rel (0) target = $region17
  $region16: #{resnet_forward.24} parent=0 // pred_region
    _
  $region17: #{resnet_forward.24} parent=0 // pred_fallthru
    _
  %p18 = scmp.eq.s32.totalorder 0, 0
  // Predicated region
  $region18: #{resnet_forward.24} parent=0 // pred_check
    %p19 = pneg %p18
  $region19: #{resnet_forward.24} parent=0 // pred_check_branch
    %21 = sbr.rel (%p19) target = $region21
  $region20: #{resnet_forward.24} parent=0 // pred_region
    %vm22 = vcmask 64512
    %23 = vst.msk [vmem:[#allocation2] sm:$0xff] %vm22, 0.0
    %24 = vst.msk [vmem:[#allocation2 + $0x8] sm:$0xff] %vm22, 0.0
    %25 = vst.msk [vmem:[#allocation2 + $0x10] sm:$0xff] %vm22, 0.0
    %26 = vst.msk [vmem:[#allocation2 + $0x18] sm:$0xff] %vm22, 0.0
  $region21: #{resnet_forward.24} parent=0 // pred_fallthru
    _
  %v27 = vld [vmem:[#allocation2] sm:$0xff]
  %v28 = vld [vmem:[#allocation2 + $0x8] sm:$0xff]
  %v29 = vld [vmem:[#allocation2 + $0x10] sm:$0xff]
  %v30 = vld [vmem:[#allocation2 + $0x18] sm:$0xff]
  %v31 = vld [vmem:[%s0] sm:$0xf]
  %v32 = vld [vmem:[%s0 + $0x4] sm:$0xf]
  %v33 = vld [vmem:[%s0 + $0x8] sm:$0xf]
  %v34 = vld [vmem:[%s0 + $0xc] sm:$0xf]
  %v35 = vld [vmem:[%s1] sm:$0xf]
  %v36 = vld [vmem:[%s1 + $0x4] sm:$0xf]
  %v37 = vld [vmem:[%s1 + $0x8] sm:$0xf]
  %v38 = vld [vmem:[%s1 + $0xc] sm:$0xf]
  %v39 = vld [vmem:[%s1 + $0x10] sm:$0xf]
  %v40 = vld [vmem:[%s1 + $0x14] sm:$0xf]
  %v41 = vld [vmem:[%s1 + $0x18] sm:$0xf]
  %v42 = vld [vmem:[%s1 + $0x1c] sm:$0xf]
  %v43 = vld [vmem:[%s1 + $0x20] sm:$0xf]
  %v48 = vunpack.c.l.b16 %v31
  %v49 = vunpack.c.l.b16 %v32
  %v50 = vunpack.c.l.b16 %v33
  %v51 = vunpack.c.l.b16 %v34
  %v52 = vpack.c.b16 %v49, %v48
  %v53 = vpack.c.b16 %v51, %v50
  %v63 = vunpack.c.l.b16 %v35
  %v64 = vunpack.c.l.b16 %v36
  %v65 = vunpack.c.l.b16 %v37
  %v66 = vunpack.c.l.b16 %v38
  %v67 = vunpack.c.l.b16 %v39
  %v68 = vunpack.c.l.b16 %v40
  %v69 = vunpack.c.l.b16 %v41
  %v70 = vunpack.c.l.b16 %v42
  %v71 = vunpack.c.l.b16 %v43
  %v72 = vpack.c.b16 %v64, %v63
  %v73 = vpack.c.b16 %v66, %v65
  %v74 = vpack.c.b16 %v68, %v67
  %v75 = vpack.c.b16 %v70, %v69
  %v76 = vpack.c.b16 %v71, %v71
  %vm81 = vcmask 588800
  %v83 = vsel %vm81, %v52, 0
  %v86 = vsel %vm81, %v53, 0
  %vm88 = vcmask 1043456
  %v90 = vsel %vm88, %v76, 0
  %92 = vmatprep.subr.bf16.mxu0 0
  %93 = vmatpush1.bf16.msra.mxu0 0
  %94 = vmatprep.subr.bf16.mxu0 0
  %95 = vmatpush1.bf16.msra.mxu0 0
  %96 = vmatprep.subr.bf16.mxu0 0
  %97 = vmatpush1.bf16.msra.mxu0 0
  %98 = vmatprep.subr.bf16.mxu0 0
  %99 = vmatpush1.bf16.msra.mxu0 %v90
  %100 = vmatprep.subr.bf16.mxu0 0
  %101 = vmatpush1.bf16.msra.mxu0 %v75
  %102 = vmatprep.subr.bf16.mxu0 0
  %103 = vmatpush1.bf16.msra.mxu0 %v74
  %104 = vmatprep.subr.bf16.mxu0 0
  %105 = vmatpush1.bf16.msra.mxu0 %v73
  %106 = vmatprep.subr.bf16.mxu0 0
  %107 = vmatpush1.bf16.msra.mxu0 %v72
  %108 = vmatprep.subr.bf16.mxu0 0
  %109 = vmatpush2.bf16.msra.mxu0 0
  %110 = vmatprep.subr.bf16.mxu0 0
  %111 = vmatpush2.bf16.msra.mxu0 0
  %112 = vmatprep.subr.bf16.mxu0 0
  %113 = vmatpush2.bf16.msra.mxu0 0
  %114 = vmatprep.subr.bf16.mxu0 0
  %115 = vmatpush2.bf16.msra.mxu0 0
  %116 = vmatprep.subr.bf16.mxu0 0
  %117 = vmatpush2.bf16.msra.mxu0 0
  %118 = vmatprep.subr.bf16.mxu0 0
  %119 = vmatpush2.bf16.msra.mxu0 0
  %120 = vmatprep.subr.bf16.mxu0 0
  %121 = vmatpush2.bf16.msra.mxu0 0
  %122 = vmatprep.subr.bf16.mxu0 0
  %123 = vmatpush2.bf16.msra.mxu0 0
  %124 = vmatprep.mubr.bf16.mxu0 0
  %125 = vmatmul.mubr.bf16.gmra.mxu0 %v83
  %v126 = vpop.f32.mrf.mxu0
  %v127 = vadd.f32 0.0, %v126
  %v128 = vpop.f32.mrf.mxu0
  %v129 = vpop.f32.mrf.mxu0
  %v130 = vadd.f32 0.0, %v129
  %v131 = vpop.f32.mrf.mxu0
  %132 = vmatprep.mubr.bf16.mxu0 0
  %133 = vmatmul.mubr.bf16.gmra.mxu0 %v86
  %v134 = vpop.f32.mrf.mxu0
  %v135 = vadd.f32 0.0, %v134
  %v136 = vpop.f32.mrf.mxu0
  %v137 = vpop.f32.mrf.mxu0
  %v138 = vadd.f32 0.0, %v137
  %v139 = vpop.f32.mrf.mxu0
  %140 = vdwg.mxu0
  %v141 = vadd.f32 %v27, %v127
  %v142 = vadd.f32 %v28, %v130
  %v143 = vadd.f32 %v29, %v135
  %v144 = vadd.f32 %v30, %v138
  %vm145 = vcmask 64512
  %146 = vst.msk [vmem:[#allocation2] sm:$0xff] %vm145, %v141
  %147 = vst.msk [vmem:[#allocation2 + $0x8] sm:$0xff] %vm145, %v142
  %148 = vst.msk [vmem:[#allocation2 + $0x10] sm:$0xff] %vm145, %v143
  %149 = vst.msk [vmem:[#allocation2 + $0x18] sm:$0xff] %vm145, %v144
  // Predicated region
  $region22: #{resnet_forward.24} parent=0 // pred_check
    %p150 = pneg %p18
  $region23: #{resnet_forward.24} parent=0 // pred_check_branch
    %152 = sbr.rel (%p150) target = $region25
  $region24: #{resnet_forward.24} parent=0 // pred_region
    %v153 = vld [vmem:[#allocation2] sm:$0xff]
    %v154 = vld [vmem:[#allocation2 + $0x8] sm:$0xff]
    %v155 = vld [vmem:[#allocation2 + $0x10] sm:$0xff]
    %v156 = vld [vmem:[#allocation2 + $0x18] sm:$0xff]
    %v157 = vld [vmem:[%s2] sm:$0x1]
    %v159 = vlaneseq
    %v160 = vshrl.u32 %v159, 7
    %v161 = vsub.s32 0, %v160
    %v162 = vrot.slane %v157, %v161
    %v164 = vadd.f32 %v153, %v162
    %v165 = vadd.f32 %v154, %v162
    %v166 = vadd.f32 %v155, %v162
    %v167 = vadd.f32 %v156, %v162
    %v168 = vld [vmem:[%s3] sm:$0xf]
    %v169 = vld [vmem:[%s3 + $0x4] sm:$0xf]
    %v170 = vld [vmem:[%s3 + $0x8] sm:$0xf]
    %v171 = vld [vmem:[%s3 + $0xc] sm:$0xf]
    %v172 = vunpack.c.l.bf16 %v168
    %v173 = vunpack.c.l.bf16 %v169
    %v174 = vunpack.c.l.bf16 %v170
    %v175 = vunpack.c.l.bf16 %v171
    %v176 = vadd.f32 %v164, %v172
    %v177 = vadd.f32 %v165, %v173
    %v178 = vadd.f32 %v166, %v174
    %v179 = vadd.f32 %v167, %v175
    %v180 = vmax.f32 %v176, 0.0
    %v181 = vmax.f32 %v177, 0.0
    %v182 = vmax.f32 %v178, 0.0
    %v183 = vmax.f32 %v179, 0.0
    %v184 = vpack.c.bf16 %v181, %v180
    %v185 = vpack.c.bf16 %v183, %v182
    %v188 = vunpack.c.l.b16 %v184
    %v189 = vunpack.c.h.b16 %v184
    %v190 = vunpack.c.l.b16 %v185
    %v191 = vunpack.c.h.b16 %v185
    %v192 = vpack.c.b16 %v188, %v188
    %v193 = vpack.c.b16 %v189, %v189
    %v194 = vpack.c.b16 %v190, %v190
    %v195 = vpack.c.b16 %v191, %v191
    %vm200 = vcmask 60416
    %201 = vst.msk [vmem:[%s4] sm:$0xf] %vm200, %v192
    %202 = vst.msk [vmem:[%s4 + $0x4] sm:$0xf] %vm200, %v193
    %203 = vst.msk [vmem:[%s4 + $0x8] sm:$0xf] %vm200, %v194
    %204 = vst.msk [vmem:[%s4 + $0xc] sm:$0xf] %vm200, %v195
  $region25: #{resnet_forward.24} parent=0 // pred_fallthru
    _
  // Predicated region
  $region26: #{resnet_forward.24} parent=0 // pred_check
    _
  $region27: #{resnet_forward.24} parent=0 // pred_check_branch
    %206 = sbr.rel (0) target = $region29
  $region28: #{resnet_forward.24} parent=0 // pred_region
    _
  $region29: #{resnet_forward.24} parent=0 // pred_fallthru
    _
  // Predicated region
  $region30: #{resnet_forward.24} parent=0 // pred_check
    _
  $region31: #{resnet_forward.24} parent=0 // pred_check_branch
    %208 = sbr.rel (0) target = $region33
  $region32: #{resnet_forward.24} parent=0 // pred_region
    _
  $region33: #{resnet_forward.24} parent=0 // pred_fallthru
    _

// kernel: resnet_forward.27
$region0: #{resnet_forward.27}
  #allocation0 [shape = 'u32[]', space=smem, size = 0x4, offset = 0x4, fixed_abs, tag = 'smem constant byte address 0x4 - core index']
  #allocation1 [shape = 'u32[144,128]{1,0:T(1,128)}', space=vmem, size = 0x12000, scoped, tag = 'internal scratch']
  #allocation2 [shape = 'f32[8,16]{1,0:T(8,128)}', space=vmem, size = 0x1000, scoped, tag = 'scratch operand']
  %s0 = inlined_call_operand.vmem [shape: bf16[8,72], index: 0, kind: input, shape index: {}]
  %s1 = inlined_call_operand.vmem [shape: bf16[72,16], index: 1, kind: input, shape index: {}]
  %s2 = inlined_call_operand.vmem [shape: f32[1,16], index: 2, kind: input, shape index: {}]
  %s3 = inlined_call_operand.vmem [shape: bf16[8,16], index: 3, kind: output, shape index: {}]
  %s4 = sld [smem:[#allocation0]]
  $region30: #{resnet_forward.27} parent=0
    _
  %s6 = ssub.s32 1, %s4
  %s7 = scalar_select 0, %s6, %s4
  // Predicated region
  $region2: #{resnet_forward.27} parent=0 // pred_check
    _
  $region3: #{resnet_forward.27} parent=0 // pred_check_branch
    %9 = sbr.rel (0) target = $region5
  $region4: #{resnet_forward.27} parent=0 // pred_region
    _
  $region5: #{resnet_forward.27} parent=0 // pred_fallthru
    _
  // Predicated region
  $region6: #{resnet_forward.27} parent=0 // pred_check
    _
  $region7: #{resnet_forward.27} parent=0 // pred_check_branch
    %11 = sbr.rel (0) target = $region9
  $region8: #{resnet_forward.27} parent=0 // pred_region
    _
  $region9: #{resnet_forward.27} parent=0 // pred_fallthru
    _
  // Predicated region
  $region10: #{resnet_forward.27} parent=0 // pred_check
    _
  $region11: #{resnet_forward.27} parent=0 // pred_check_branch
    %13 = sbr.rel (0) target = $region13
  $region12: #{resnet_forward.27} parent=0 // pred_region
    _
  $region13: #{resnet_forward.27} parent=0 // pred_fallthru
    _
  %p15 = scmp.eq.s32.totalorder 0, 0
  // Predicated region
  $region14: #{resnet_forward.27} parent=0 // pred_check
    %p16 = pneg %p15
  $region15: #{resnet_forward.27} parent=0 // pred_check_branch
    %18 = sbr.rel (%p16) target = $region17
  $region16: #{resnet_forward.27} parent=0 // pred_region
    %vm19 = vcmask 130048
    %20 = vst.msk [vmem:[#allocation2] sm:$0xff] %vm19, 0.0
  $region17: #{resnet_forward.27} parent=0 // pred_fallthru
    _
  %v21 = vld [vmem:[#allocation2] sm:$0xff]
  %v22 = vld [vmem:[%s0] sm:$0xf]
  %v23 = vld [vmem:[%s1] sm:$0xf]
  %v24 = vld [vmem:[%s1 + $0x4] sm:$0xf]
  %v25 = vld [vmem:[%s1 + $0x8] sm:$0xf]
  %v26 = vld [vmem:[%s1 + $0xc] sm:$0xf]
  %v27 = vld [vmem:[%s1 + $0x10] sm:$0xf]
  %v28 = vld [vmem:[%s1 + $0x14] sm:$0xf]
  %v29 = vld [vmem:[%s1 + $0x18] sm:$0xf]
  %v30 = vld [vmem:[%s1 + $0x1c] sm:$0xf]
  %v31 = vld [vmem:[%s1 + $0x20] sm:$0xf]
  %v41 = vunpack.c.l.b16 %v23
  %v42 = vunpack.c.l.b16 %v24
  %v43 = vunpack.c.l.b16 %v25
  %v44 = vunpack.c.l.b16 %v26
  %v45 = vunpack.c.l.b16 %v27
  %v46 = vunpack.c.l.b16 %v28
  %v47 = vunpack.c.l.b16 %v29
  %v48 = vunpack.c.l.b16 %v30
  %v49 = vunpack.c.l.b16 %v31
  %v50 = vpack.c.b16 %v42, %v41
  %v51 = vpack.c.b16 %v44, %v43
  %v52 = vpack.c.b16 %v46, %v45
  %v53 = vpack.c.b16 %v48, %v47
  %v54 = vpack.c.b16 %v49, %v49
  %vm59 = vcmask 588800
  %v61 = vsel %vm59, %v22, 0
  %vm63 = vcmask 1043456
  %v65 = vsel %vm63, %v54, 0
  %67 = vmatprep.subr.bf16.mxu0 0
  %68 = vmatpush1.bf16.msra.mxu0 0
  %69 = vmatprep.subr.bf16.mxu0 0
  %70 = vmatpush1.bf16.msra.mxu0 0
  %71 = vmatprep.subr.bf16.mxu0 0
  %72 = vmatpush1.bf16.msra.mxu0 0
  %73 = vmatprep.subr.bf16.mxu0 0
  %74 = vmatpush1.bf16.msra.mxu0 %v65
  %75 = vmatprep.subr.bf16.mxu0 0
  %76 = vmatpush1.bf16.msra.mxu0 %v53
  %77 = vmatprep.subr.bf16.mxu0 0
  %78 = vmatpush1.bf16.msra.mxu0 %v52
  %79 = vmatprep.subr.bf16.mxu0 0
  %80 = vmatpush1.bf16.msra.mxu0 %v51
  %81 = vmatprep.subr.bf16.mxu0 0
  %82 = vmatpush1.bf16.msra.mxu0 %v50
  %83 = vmatprep.subr.bf16.mxu0 0
  %84 = vmatpush2.bf16.msra.mxu0 0
  %85 = vmatprep.subr.bf16.mxu0 0
  %86 = vmatpush2.bf16.msra.mxu0 0
  %87 = vmatprep.subr.bf16.mxu0 0
  %88 = vmatpush2.bf16.msra.mxu0 0
  %89 = vmatprep.subr.bf16.mxu0 0
  %90 = vmatpush2.bf16.msra.mxu0 0
  %91 = vmatprep.subr.bf16.mxu0 0
  %92 = vmatpush2.bf16.msra.mxu0 0
  %93 = vmatprep.subr.bf16.mxu0 0
  %94 = vmatpush2.bf16.msra.mxu0 0
  %95 = vmatprep.subr.bf16.mxu0 0
  %96 = vmatpush2.bf16.msra.mxu0 0
  %97 = vmatprep.subr.bf16.mxu0 0
  %98 = vmatpush2.bf16.msra.mxu0 0
  %99 = vmatprep.mubr.bf16.mxu0 0
  %100 = vmatmul.mubr.bf16.gmra.mxu0 %v61
  %v101 = vpop.f32.mrf.mxu0
  %v102 = vadd.f32 0.0, %v101
  %v103 = vpop.f32.mrf.mxu0
  %v104 = vpop.f32.mrf.mxu0
  %v105 = vpop.f32.mrf.mxu0
  %106 = vdwg.mxu0
  %v107 = vadd.f32 %v21, %v102
  %vm108 = vcmask 130048
  %109 = vst.msk [vmem:[#allocation2] sm:$0xff] %vm108, %v107
  // Predicated region
  $region18: #{resnet_forward.27} parent=0 // pred_check
    %p110 = pneg %p15
  $region19: #{resnet_forward.27} parent=0 // pred_check_branch
    %112 = sbr.rel (%p110) target = $region21
  $region20: #{resnet_forward.27} parent=0 // pred_region
    %v113 = vld [vmem:[#allocation2] sm:$0xff]
    %v114 = vld [vmem:[%s2] sm:$0x1]
    %v116 = vlaneseq
    %v117 = vshrl.u32 %v116, 7
    %v118 = vsub.s32 0, %v117
    %v119 = vrot.slane %v114, %v118
    %v121 = vadd.f32 %v113, %v119
    %v122 = vmax.f32 %v121, 0.0
    %v123 = vpack.c.bf16 %v122, %v122
    %vm124 = vcmask 125952
    %125 = vst.msk [vmem:[%s3] sm:$0xf] %vm124, %v123
  $region21: #{resnet_forward.27} parent=0 // pred_fallthru
    _
  // Predicated region
  $region22: #{resnet_forward.27} parent=0 // pred_check
    _
  $region23: #{resnet_forward.27} parent=0 // pred_check_branch
    %127 = sbr.rel (0) target = $region25
  $region24: #{resnet_forward.27} parent=0 // pred_region
    _
  $region25: #{resnet_forward.27} parent=0 // pred_fallthru
    _
  // Predicated region
  $region26: #{resnet_forward.27} parent=0 // pred_check
    _
  $region27: #{resnet_forward.27} parent=0 // pred_check_branch
    %129 = sbr.rel (0) target = $region29
  $region28: #{resnet_forward.27} parent=0 // pred_region
    _
  $region29: #{resnet_forward.27} parent=0 // pred_fallthru
    _

// kernel: resnet_forward.29
$region0: #{resnet_forward.29}
  #allocation0 [shape = 'u32[]', space=smem, size = 0x4, offset = 0x4, fixed_abs, tag = 'smem constant byte address 0x4 - core index']
  #allocation1 [shape = 'u32[144,128]{1,0:T(1,128)}', space=vmem, size = 0x12000, scoped, tag = 'internal scratch']
  #allocation2 [shape = 'f32[8,16]{1,0:T(8,128)}', space=vmem, size = 0x1000, scoped, tag = 'scratch operand']
  %s0 = inlined_call_operand.vmem [shape: bf16[8,144], index: 0, kind: input, shape index: {}]
  %s1 = inlined_call_operand.vmem [shape: bf16[144,16], index: 1, kind: input, shape index: {}]
  %s2 = inlined_call_operand.vmem [shape: f32[1,16], index: 2, kind: input, shape index: {}]
  %s3 = inlined_call_operand.vmem [shape: bf16[8,16], index: 3, kind: input, shape index: {}]
  %s4 = inlined_call_operand.vmem [shape: bf16[8,16], index: 4, kind: output, shape index: {}]
  %s5 = sld [smem:[#allocation0]]
  $region34: #{resnet_forward.29} parent=0
    _
  %s7 = ssub.s32 1, %s5
  %s8 = scalar_select 0, %s7, %s5
  // Predicated region
  $region2: #{resnet_forward.29} parent=0 // pred_check
    _
  $region3: #{resnet_forward.29} parent=0 // pred_check_branch
    %10 = sbr.rel (0) target = $region5
  $region4: #{resnet_forward.29} parent=0 // pred_region
    _
  $region5: #{resnet_forward.29} parent=0 // pred_fallthru
    _
  // Predicated region
  $region6: #{resnet_forward.29} parent=0 // pred_check
    _
  $region7: #{resnet_forward.29} parent=0 // pred_check_branch
    %12 = sbr.rel (0) target = $region9
  $region8: #{resnet_forward.29} parent=0 // pred_region
    _
  $region9: #{resnet_forward.29} parent=0 // pred_fallthru
    _
  // Predicated region
  $region10: #{resnet_forward.29} parent=0 // pred_check
    _
  $region11: #{resnet_forward.29} parent=0 // pred_check_branch
    %14 = sbr.rel (0) target = $region13
  $region12: #{resnet_forward.29} parent=0 // pred_region
    _
  $region13: #{resnet_forward.29} parent=0 // pred_fallthru
    _
  // Predicated region
  $region14: #{resnet_forward.29} parent=0 // pred_check
    _
  $region15: #{resnet_forward.29} parent=0 // pred_check_branch
    %16 = sbr.rel (0) target = $region17
  $region16: #{resnet_forward.29} parent=0 // pred_region
    _
  $region17: #{resnet_forward.29} parent=0 // pred_fallthru
    _
  %p18 = scmp.eq.s32.totalorder 0, 0
  // Predicated region
  $region18: #{resnet_forward.29} parent=0 // pred_check
    %p19 = pneg %p18
  $region19: #{resnet_forward.29} parent=0 // pred_check_branch
    %21 = sbr.rel (%p19) target = $region21
  $region20: #{resnet_forward.29} parent=0 // pred_region
    %vm22 = vcmask 130048
    %23 = vst.msk [vmem:[#allocation2] sm:$0xff] %vm22, 0.0
  $region21: #{resnet_forward.29} parent=0 // pred_fallthru
    _
  %v24 = vld [vmem:[#allocation2] sm:$0xff]
  %v25 = vld [vmem:[%s0] sm:$0xff]
  %v26 = vld [vmem:[%s1] sm:$0xf]
  %v27 = vld [vmem:[%s1 + $0x4] sm:$0xf]
  %v28 = vld [vmem:[%s1 + $0x8] sm:$0xf]
  %v29 = vld [vmem:[%s1 + $0xc] sm:$0xf]
  %v30 = vld [vmem:[%s1 + $0x10] sm:$0xf]
  %v31 = vld [vmem:[%s1 + $0x14] sm:$0xf]
  %v32 = vld [vmem:[%s1 + $0x18] sm:$0xf]
  %v33 = vld [vmem:[%s1 + $0x1c] sm:$0xf]
  %v34 = vld [vmem:[%s1 + $0x20] sm:$0xf]
  %v35 = vld [vmem:[%s1 + $0x24] sm:$0xf]
  %v36 = vld [vmem:[%s1 + $0x28] sm:$0xf]
  %v37 = vld [vmem:[%s1 + $0x2c] sm:$0xf]
  %v38 = vld [vmem:[%s1 + $0x30] sm:$0xf]
  %v39 = vld [vmem:[%s1 + $0x34] sm:$0xf]
  %v40 = vld [vmem:[%s1 + $0x38] sm:$0xf]
  %v41 = vld [vmem:[%s1 + $0x3c] sm:$0xf]
  %v42 = vld [vmem:[%s1 + $0x40] sm:$0xf]
  %v43 = vld [vmem:[%s1 + $0x44] sm:$0xf]
  %v45 = vunpack.c.l.b16 %v25
  %v46 = vunpack.c.h.b16 %v25
  %v47 = vpack.c.b16 %v45, %v45
  %v48 = vpack.c.b16 %v46, %v46
  %v68 = vunpack.c.l.b16 %v26
  %v69 = vunpack.c.l.b16 %v27
  %v70 = vunpack.c.l.b16 %v28
  %v71 = vunpack.c.l.b16 %v29
  %v72 = vunpack.c.l.b16 %v30
  %v73 = vunpack.c.l.b16 %v31
  %v74 = vunpack.c.l.b16 %v32
  %v75 = vunpack.c.l.b16 %v33
  %v76 = vunpack.c.l.b16 %v34
  %v77 = vunpack.c.l.b16 %v35
  %v78 = vunpack.c.l.b16 %v36
  %v79 = vunpack.c.l.b16 %v37
  %v80 = vunpack.c.l.b16 %v38
  %v81 = vunpack.c.l.b16 %v39
  %v82 = vunpack.c.l.b16 %v40
  %v83 = vunpack.c.l.b16 %v41
  %v84 = vunpack.c.l.b16 %v42
  %v85 = vunpack.c.l.b16 %v43
  %v86 = vpack.c.b16 %v69, %v68
  %v87 = vpack.c.b16 %v71, %v70
  %v88 = vpack.c.b16 %v73, %v72
  %v89 = vpack.c.b16 %v75, %v74
  %v90 = vpack.c.b16 %v77, %v76
  %v91 = vpack.c.b16 %v79, %v78
  %v92 = vpack.c.b16 %v81, %v80
  %v93 = vpack.c.b16 %v83, %v82
  %v94 = vpack.c.b16 %v85, %v84
  %vm104 = vcmask 130048
  %v106 = vsel %vm104, %v48, 0
  %108 = vmatprep.subr.bf16.mxu0 0
  %109 = vmatpush1.bf16.msra.mxu0 %v93
  %110 = vmatprep.subr.bf16.mxu0 0
  %111 = vmatpush1.bf16.msra.mxu0 %v92
  %112 = vmatprep.subr.bf16.mxu0 0
  %113 = vmatpush1.bf16.msra.mxu0 %v91
  %114 = vmatprep.subr.bf16.mxu0 0
  %115 = vmatpush1.bf16.msra.mxu0 %v90
  %116 = vmatprep.subr.bf16.mxu0 0
  %117 = vmatpush1.bf16.msra.mxu0 %v89
  %118 = vmatprep.subr.bf16.mxu0 0
  %119 = vmatpush1.bf16.msra.mxu0 %v88
  %120 = vmatprep.subr.bf16.mxu0 0
  %121 = vmatpush1.bf16.msra.mxu0 %v87
  %122 = vmatprep.subr.bf16.mxu0 0
  %123 = vmatpush1.bf16.msra.mxu0 %v86
  %124 = vmatprep.subr.bf16.mxu0 0
  %125 = vmatpush2.bf16.msra.mxu0 0
  %126 = vmatprep.subr.bf16.mxu0 0
  %127 = vmatpush2.bf16.msra.mxu0 0
  %128 = vmatprep.subr.bf16.mxu0 0
  %129 = vmatpush2.bf16.msra.mxu0 0
  %130 = vmatprep.subr.bf16.mxu0 0
  %131 = vmatpush2.bf16.msra.mxu0 0
  %132 = vmatprep.subr.bf16.mxu0 0
  %133 = vmatpush2.bf16.msra.mxu0 0
  %134 = vmatprep.subr.bf16.mxu0 0
  %135 = vmatpush2.bf16.msra.mxu0 0
  %136 = vmatprep.subr.bf16.mxu0 0
  %137 = vmatpush2.bf16.msra.mxu0 0
  %138 = vmatprep.subr.bf16.mxu0 0
  %139 = vmatpush2.bf16.msra.mxu0 %v94
  %140 = vmatprep.mubr.bf16.mxu0 %v106
  %141 = vmatmul.mubr.bf16.gmra.mxu0 %v47
  %v142 = vpop.f32.mrf.mxu0
  %v143 = vadd.f32 0.0, %v142
  %v144 = vpop.f32.mrf.mxu0
  %v145 = vpop.f32.mrf.mxu0
  %v146 = vpop.f32.mrf.mxu0
  %147 = vdwg.mxu0
  %v148 = vadd.f32 %v24, %v143
  %149 = vst.msk [vmem:[#allocation2] sm:$0xff] %vm104, %v148
  // Predicated region
  $region22: #{resnet_forward.29} parent=0 // pred_check
    %p150 = pneg %p18
  $region23: #{resnet_forward.29} parent=0 // pred_check_branch
    %152 = sbr.rel (%p150) target = $region25
  $region24: #{resnet_forward.29} parent=0 // pred_region
    %v153 = vld [vmem:[#allocation2] sm:$0xff]
    %v154 = vld [vmem:[%s2] sm:$0x1]
    %v156 = vlaneseq
    %v157 = vshrl.u32 %v156, 7
    %v158 = vsub.s32 0, %v157
    %v159 = vrot.slane %v154, %v158
    %v161 = vadd.f32 %v153, %v159
    %v162 = vld [vmem:[%s3] sm:$0xf]
    %v163 = vunpack.c.l.bf16 %v162
    %v164 = vadd.f32 %v161, %v163
    %v165 = vmax.f32 %v164, 0.0
    %v166 = vpack.c.bf16 %v165, %v165
    %vm167 = vcmask 125952
    %168 = vst.msk [vmem:[%s4] sm:$0xf] %vm167, %v166
  $region25: #{resnet_forward.29} parent=0 // pred_fallthru
    _
  // Predicated region
  $region26: #{resnet_forward.29} parent=0 // pred_check
    _
  $region27: #{resnet_forward.29} parent=0 // pred_check_branch
    %170 = sbr.rel (0) target = $region29
  $region28: #{resnet_forward.29} parent=0 // pred_region
    _
  $region29: #{resnet_forward.29} parent=0 // pred_fallthru
    _
  // Predicated region
  $region30: #{resnet_forward.29} parent=0 // pred_check
    _
  $region31: #{resnet_forward.29} parent=0 // pred_check_branch
    %172 = sbr.rel (0) target = $region33
  $region32: #{resnet_forward.29} parent=0 // pred_region
    _
  $region33: #{resnet_forward.29} parent=0 // pred_fallthru
    _

// kernel: resnet_forward.30
$region0: #{resnet_forward.30}
  #allocation0 [shape = 'u32[]', space=smem, size = 0x4, offset = 0x4, fixed_abs, tag = 'smem constant byte address 0x4 - core index']
  #allocation1 [shape = 'u32[144,128]{1,0:T(1,128)}', space=vmem, size = 0x12000, scoped, tag = 'internal scratch']
  #allocation2 [shape = 'f32[8,16]{1,0:T(8,128)}', space=vmem, size = 0x1000, scoped, tag = 'scratch operand']
  %s0 = inlined_call_operand.vmem [shape: bf16[8,144], index: 0, kind: input, shape index: {}]
  %s1 = inlined_call_operand.vmem [shape: bf16[144,16], index: 1, kind: input, shape index: {}]
  %s2 = inlined_call_operand.vmem [shape: f32[1,16], index: 2, kind: input, shape index: {}]
  %s3 = inlined_call_operand.vmem [shape: bf16[8,16], index: 3, kind: output, shape index: {}]
  %s4 = sld [smem:[#allocation0]]
  $region30: #{resnet_forward.30} parent=0
    _
  %s6 = ssub.s32 1, %s4
  %s7 = scalar_select 0, %s6, %s4
  // Predicated region
  $region2: #{resnet_forward.30} parent=0 // pred_check
    _
  $region3: #{resnet_forward.30} parent=0 // pred_check_branch
    %9 = sbr.rel (0) target = $region5
  $region4: #{resnet_forward.30} parent=0 // pred_region
    _
  $region5: #{resnet_forward.30} parent=0 // pred_fallthru
    _
  // Predicated region
  $region6: #{resnet_forward.30} parent=0 // pred_check
    _
  $region7: #{resnet_forward.30} parent=0 // pred_check_branch
    %11 = sbr.rel (0) target = $region9
  $region8: #{resnet_forward.30} parent=0 // pred_region
    _
  $region9: #{resnet_forward.30} parent=0 // pred_fallthru
    _
  // Predicated region
  $region10: #{resnet_forward.30} parent=0 // pred_check
    _
  $region11: #{resnet_forward.30} parent=0 // pred_check_branch
    %13 = sbr.rel (0) target = $region13
  $region12: #{resnet_forward.30} parent=0 // pred_region
    _
  $region13: #{resnet_forward.30} parent=0 // pred_fallthru
    _
  %p15 = scmp.eq.s32.totalorder 0, 0
  // Predicated region
  $region14: #{resnet_forward.30} parent=0 // pred_check
    %p16 = pneg %p15
  $region15: #{resnet_forward.30} parent=0 // pred_check_branch
    %18 = sbr.rel (%p16) target = $region17
  $region16: #{resnet_forward.30} parent=0 // pred_region
    %vm19 = vcmask 130048
    %20 = vst.msk [vmem:[#allocation2] sm:$0xff] %vm19, 0.0
  $region17: #{resnet_forward.30} parent=0 // pred_fallthru
    _
  %v21 = vld [vmem:[#allocation2] sm:$0xff]
  %v22 = vld [vmem:[%s0] sm:$0xff]
  %v23 = vld [vmem:[%s1] sm:$0xf]
  %v24 = vld [vmem:[%s1 + $0x4] sm:$0xf]
  %v25 = vld [vmem:[%s1 + $0x8] sm:$0xf]
  %v26 = vld [vmem:[%s1 + $0xc] sm:$0xf]
  %v27 = vld [vmem:[%s1 + $0x10] sm:$0xf]
  %v28 = vld [vmem:[%s1 + $0x14] sm:$0xf]
  %v29 = vld [vmem:[%s1 + $0x18] sm:$0xf]
  %v30 = vld [vmem:[%s1 + $0x1c] sm:$0xf]
  %v31 = vld [vmem:[%s1 + $0x20] sm:$0xf]
  %v32 = vld [vmem:[%s1 + $0x24] sm:$0xf]
  %v33 = vld [vmem:[%s1 + $0x28] sm:$0xf]
  %v34 = vld [vmem:[%s1 + $0x2c] sm:$0xf]
  %v35 = vld [vmem:[%s1 + $0x30] sm:$0xf]
  %v36 = vld [vmem:[%s1 + $0x34] sm:$0xf]
  %v37 = vld [vmem:[%s1 + $0x38] sm:$0xf]
  %v38 = vld [vmem:[%s1 + $0x3c] sm:$0xf]
  %v39 = vld [vmem:[%s1 + $0x40] sm:$0xf]
  %v40 = vld [vmem:[%s1 + $0x44] sm:$0xf]
  %v42 = vunpack.c.l.b16 %v22
  %v43 = vunpack.c.h.b16 %v22
  %v44 = vpack.c.b16 %v42, %v42
  %v45 = vpack.c.b16 %v43, %v43
  %v65 = vunpack.c.l.b16 %v23
  %v66 = vunpack.c.l.b16 %v24
  %v67 = vunpack.c.l.b16 %v25
  %v68 = vunpack.c.l.b16 %v26
  %v69 = vunpack.c.l.b16 %v27
  %v70 = vunpack.c.l.b16 %v28
  %v71 = vunpack.c.l.b16 %v29
  %v72 = vunpack.c.l.b16 %v30
  %v73 = vunpack.c.l.b16 %v31
  %v74 = vunpack.c.l.b16 %v32
  %v75 = vunpack.c.l.b16 %v33
  %v76 = vunpack.c.l.b16 %v34
  %v77 = vunpack.c.l.b16 %v35
  %v78 = vunpack.c.l.b16 %v36
  %v79 = vunpack.c.l.b16 %v37
  %v80 = vunpack.c.l.b16 %v38
  %v81 = vunpack.c.l.b16 %v39
  %v82 = vunpack.c.l.b16 %v40
  %v83 = vpack.c.b16 %v66, %v65
  %v84 = vpack.c.b16 %v68, %v67
  %v85 = vpack.c.b16 %v70, %v69
  %v86 = vpack.c.b16 %v72, %v71
  %v87 = vpack.c.b16 %v74, %v73
  %v88 = vpack.c.b16 %v76, %v75
  %v89 = vpack.c.b16 %v78, %v77
  %v90 = vpack.c.b16 %v80, %v79
  %v91 = vpack.c.b16 %v82, %v81
  %vm101 = vcmask 130048
  %v103 = vsel %vm101, %v45, 0
  %105 = vmatprep.subr.bf16.mxu0 0
  %106 = vmatpush1.bf16.msra.mxu0 %v90
  %107 = vmatprep.subr.bf16.mxu0 0
  %108 = vmatpush1.bf16.msra.mxu0 %v89
  %109 = vmatprep.subr.bf16.mxu0 0
  %110 = vmatpush1.bf16.msra.mxu0 %v88
  %111 = vmatprep.subr.bf16.mxu0 0
  %112 = vmatpush1.bf16.msra.mxu0 %v87
  %113 = vmatprep.subr.bf16.mxu0 0
  %114 = vmatpush1.bf16.msra.mxu0 %v86
  %115 = vmatprep.subr.bf16.mxu0 0
  %116 = vmatpush1.bf16.msra.mxu0 %v85
  %117 = vmatprep.subr.bf16.mxu0 0
  %118 = vmatpush1.bf16.msra.mxu0 %v84
  %119 = vmatprep.subr.bf16.mxu0 0
  %120 = vmatpush1.bf16.msra.mxu0 %v83
  %121 = vmatprep.subr.bf16.mxu0 0
  %122 = vmatpush2.bf16.msra.mxu0 0
  %123 = vmatprep.subr.bf16.mxu0 0
  %124 = vmatpush2.bf16.msra.mxu0 0
  %125 = vmatprep.subr.bf16.mxu0 0
  %126 = vmatpush2.bf16.msra.mxu0 0
  %127 = vmatprep.subr.bf16.mxu0 0
  %128 = vmatpush2.bf16.msra.mxu0 0
  %129 = vmatprep.subr.bf16.mxu0 0
  %130 = vmatpush2.bf16.msra.mxu0 0
  %131 = vmatprep.subr.bf16.mxu0 0
  %132 = vmatpush2.bf16.msra.mxu0 0
  %133 = vmatprep.subr.bf16.mxu0 0
  %134 = vmatpush2.bf16.msra.mxu0 0
  %135 = vmatprep.subr.bf16.mxu0 0
  %136 = vmatpush2.bf16.msra.mxu0 %v91
  %137 = vmatprep.mubr.bf16.mxu0 %v103
  %138 = vmatmul.mubr.bf16.gmra.mxu0 %v44
  %v139 = vpop.f32.mrf.mxu0
  %v140 = vadd.f32 0.0, %v139
  %v141 = vpop.f32.mrf.mxu0
  %v142 = vpop.f32.mrf.mxu0
  %v143 = vpop.f32.mrf.mxu0
  %144 = vdwg.mxu0
  %v145 = vadd.f32 %v21, %v140
  %146 = vst.msk [vmem:[#allocation2] sm:$0xff] %vm101, %v145
  // Predicated region
  $region18: #{resnet_forward.30} parent=0 // pred_check
    %p147 = pneg %p15
  $region19: #{resnet_forward.30} parent=0 // pred_check_branch
    %149 = sbr.rel (%p147) target = $region21
  $region20: #{resnet_forward.30} parent=0 // pred_region
    %v150 = vld [vmem:[#allocation2] sm:$0xff]
    %v151 = vld [vmem:[%s2] sm:$0x1]
    %v153 = vlaneseq
    %v154 = vshrl.u32 %v153, 7
    %v155 = vsub.s32 0, %v154
    %v156 = vrot.slane %v151, %v155
    %v158 = vadd.f32 %v150, %v156
    %v159 = vmax.f32 %v158, 0.0
    %v160 = vpack.c.bf16 %v159, %v159
    %vm161 = vcmask 125952
    %162 = vst.msk [vmem:[%s3] sm:$0xf] %vm161, %v160
  $region21: #{resnet_forward.30} parent=0 // pred_fallthru
    _
  // Predicated region
  $region22: #{resnet_forward.30} parent=0 // pred_check
    _
  $region23: #{resnet_forward.30} parent=0 // pred_check_branch
    %164 = sbr.rel (0) target = $region25
  $region24: #{resnet_forward.30} parent=0 // pred_region
    _
  $region25: #{resnet_forward.30} parent=0 // pred_fallthru
    _
  // Predicated region
  $region26: #{resnet_forward.30} parent=0 // pred_check
    _
  $region27: #{resnet_forward.30} parent=0 // pred_check_branch
    %166 = sbr.rel (0) target = $region29
  $region28: #{resnet_forward.30} parent=0 // pred_region
    _
  $region29: #{resnet_forward.30} parent=0 // pred_fallthru
    _

// kernel: resnet_forward.28
$region0: #{resnet_forward.28}
  #allocation0 [shape = 'u32[]', space=smem, size = 0x4, offset = 0x4, fixed_abs, tag = 'smem constant byte address 0x4 - core index']
  #allocation1 [shape = 'u32[144,128]{1,0:T(1,128)}', space=vmem, size = 0x12000, scoped, tag = 'internal scratch']
  #allocation2 [shape = 'f32[8,16]{1,0:T(8,128)}', space=vmem, size = 0x1000, scoped, tag = 'scratch operand']
  %s0 = inlined_call_operand.vmem [shape: bf16[8,8], index: 0, kind: input, shape index: {}]
  %s1 = inlined_call_operand.vmem [shape: bf16[8,16], index: 1, kind: input, shape index: {}]
  %s2 = inlined_call_operand.vmem [shape: f32[1,16], index: 2, kind: input, shape index: {}]
  %s3 = inlined_call_operand.vmem [shape: bf16[8,16], index: 3, kind: output, shape index: {}]
  %s4 = sld [smem:[#allocation0]]
  $region30: #{resnet_forward.28} parent=0
    _
  %s6 = ssub.s32 1, %s4
  %s7 = scalar_select 0, %s6, %s4
  // Predicated region
  $region2: #{resnet_forward.28} parent=0 // pred_check
    _
  $region3: #{resnet_forward.28} parent=0 // pred_check_branch
    %9 = sbr.rel (0) target = $region5
  $region4: #{resnet_forward.28} parent=0 // pred_region
    _
  $region5: #{resnet_forward.28} parent=0 // pred_fallthru
    _
  // Predicated region
  $region6: #{resnet_forward.28} parent=0 // pred_check
    _
  $region7: #{resnet_forward.28} parent=0 // pred_check_branch
    %11 = sbr.rel (0) target = $region9
  $region8: #{resnet_forward.28} parent=0 // pred_region
    _
  $region9: #{resnet_forward.28} parent=0 // pred_fallthru
    _
  // Predicated region
  $region10: #{resnet_forward.28} parent=0 // pred_check
    _
  $region11: #{resnet_forward.28} parent=0 // pred_check_branch
    %13 = sbr.rel (0) target = $region13
  $region12: #{resnet_forward.28} parent=0 // pred_region
    _
  $region13: #{resnet_forward.28} parent=0 // pred_fallthru
    _
  %p15 = scmp.eq.s32.totalorder 0, 0
  // Predicated region
  $region14: #{resnet_forward.28} parent=0 // pred_check
    %p16 = pneg %p15
  $region15: #{resnet_forward.28} parent=0 // pred_check_branch
    %18 = sbr.rel (%p16) target = $region17
  $region16: #{resnet_forward.28} parent=0 // pred_region
    %vm19 = vcmask 130048
    %20 = vst.msk [vmem:[#allocation2] sm:$0xff] %vm19, 0.0
  $region17: #{resnet_forward.28} parent=0 // pred_fallthru
    _
  %v21 = vld [vmem:[#allocation2] sm:$0xff]
  %v22 = vld [vmem:[%s0] sm:$0xf]
  %v23 = vld [vmem:[%s1] sm:$0xf]
  %vm24 = vcmask 64512
  %v26 = vsel %vm24, %v22, 0
  %vm28 = vcmask 1043456
  %v30 = vsel %vm28, %v23, 0
  %32 = vmatprep.subr.bf16.mxu0 0
  %33 = vmatpush1.bf16.msra.mxu0 0
  %34 = vmatprep.subr.bf16.mxu0 0
  %35 = vmatpush1.bf16.msra.mxu0 0
  %36 = vmatprep.subr.bf16.mxu0 0
  %37 = vmatpush1.bf16.msra.mxu0 0
  %38 = vmatprep.subr.bf16.mxu0 0
  %39 = vmatpush1.bf16.msra.mxu0 0
  %40 = vmatprep.subr.bf16.mxu0 0
  %41 = vmatpush1.bf16.msra.mxu0 0
  %42 = vmatprep.subr.bf16.mxu0 0
  %43 = vmatpush1.bf16.msra.mxu0 0
  %44 = vmatprep.subr.bf16.mxu0 0
  %45 = vmatpush1.bf16.msra.mxu0 0
  %46 = vmatprep.subr.bf16.mxu0 0
  %47 = vmatpush1.bf16.msra.mxu0 %v30
  %48 = vmatprep.subr.bf16.mxu0 0
  %49 = vmatpush2.bf16.msra.mxu0 0
  %50 = vmatprep.subr.bf16.mxu0 0
  %51 = vmatpush2.bf16.msra.mxu0 0
  %52 = vmatprep.subr.bf16.mxu0 0
  %53 = vmatpush2.bf16.msra.mxu0 0
  %54 = vmatprep.subr.bf16.mxu0 0
  %55 = vmatpush2.bf16.msra.mxu0 0
  %56 = vmatprep.subr.bf16.mxu0 0
  %57 = vmatpush2.bf16.msra.mxu0 0
  %58 = vmatprep.subr.bf16.mxu0 0
  %59 = vmatpush2.bf16.msra.mxu0 0
  %60 = vmatprep.subr.bf16.mxu0 0
  %61 = vmatpush2.bf16.msra.mxu0 0
  %62 = vmatprep.subr.bf16.mxu0 0
  %63 = vmatpush2.bf16.msra.mxu0 0
  %64 = vmatprep.mubr.bf16.mxu0 0
  %65 = vmatmul.mubr.bf16.gmra.mxu0 %v26
  %v66 = vpop.f32.mrf.mxu0
  %v67 = vadd.f32 0.0, %v66
  %v68 = vpop.f32.mrf.mxu0
  %v69 = vpop.f32.mrf.mxu0
  %v70 = vpop.f32.mrf.mxu0
  %71 = vdwg.mxu0
  %v72 = vadd.f32 %v21, %v67
  %vm73 = vcmask 130048
  %74 = vst.msk [vmem:[#allocation2] sm:$0xff] %vm73, %v72
  // Predicated region
  $region18: #{resnet_forward.28} parent=0 // pred_check
    %p75 = pneg %p15
  $region19: #{resnet_forward.28} parent=0 // pred_check_branch
    %77 = sbr.rel (%p75) target = $region21
  $region20: #{resnet_forward.28} parent=0 // pred_region
    %v78 = vld [vmem:[#allocation2] sm:$0xff]
    %v79 = vld [vmem:[%s2] sm:$0x1]
    %v81 = vlaneseq
    %v82 = vshrl.u32 %v81, 7
    %v83 = vsub.s32 0, %v82
    %v84 = vrot.slane %v79, %v83
    %v86 = vadd.f32 %v78, %v84
    %v87 = vpack.c.bf16 %v86, %v86
    %vm88 = vcmask 125952
    %89 = vst.msk [vmem:[%s3] sm:$0xf] %vm88, %v87
  $region21: #{resnet_forward.28} parent=0 // pred_fallthru
    _
  // Predicated region
  $region22: #{resnet_forward.28} parent=0 // pred_check
    _
  $region23: #{resnet_forward.28} parent=0 // pred_check_branch
    %91 = sbr.rel (0) target = $region25
  $region24: #{resnet_forward.28} parent=0 // pred_region
    _
  $region25: #{resnet_forward.28} parent=0 // pred_fallthru
    _
  // Predicated region
  $region26: #{resnet_forward.28} parent=0 // pred_check
    _
  $region27: #{resnet_forward.28} parent=0 // pred_check_branch
    %93 = sbr.rel (0) target = $region29
  $region28: #{resnet_forward.28} parent=0 // pred_region
    _
  $region29: #{resnet_forward.28} parent=0 // pred_fallthru
    _

// kernel: resnet_forward.32
$region0: #{resnet_forward.32}
  #allocation0 [shape = 'u32[]', space=smem, size = 0x4, offset = 0x4, fixed_abs, tag = 'smem constant byte address 0x4 - core index']
  #allocation1 [shape = 'u32[144,128]{1,0:T(1,128)}', space=vmem, size = 0x12000, scoped, tag = 'internal scratch']
  #allocation2 [shape = 'f32[2,32]{1,0:T(2,128)}', space=vmem, size = 0x400, scoped, tag = 'scratch operand']
  %s0 = inlined_call_operand.vmem [shape: bf16[2,144], index: 0, kind: input, shape index: {}]
  %s1 = inlined_call_operand.vmem [shape: bf16[144,32], index: 1, kind: input, shape index: {}]
  %s2 = inlined_call_operand.vmem [shape: f32[1,32], index: 2, kind: input, shape index: {}]
  %s3 = inlined_call_operand.vmem [shape: bf16[2,32], index: 3, kind: output, shape index: {}]
  %s4 = sld [smem:[#allocation0]]
  $region30: #{resnet_forward.32} parent=0
    _
  %s6 = ssub.s32 1, %s4
  %s7 = scalar_select 0, %s6, %s4
  // Predicated region
  $region2: #{resnet_forward.32} parent=0 // pred_check
    _
  $region3: #{resnet_forward.32} parent=0 // pred_check_branch
    %9 = sbr.rel (0) target = $region5
  $region4: #{resnet_forward.32} parent=0 // pred_region
    _
  $region5: #{resnet_forward.32} parent=0 // pred_fallthru
    _
  // Predicated region
  $region6: #{resnet_forward.32} parent=0 // pred_check
    _
  $region7: #{resnet_forward.32} parent=0 // pred_check_branch
    %11 = sbr.rel (0) target = $region9
  $region8: #{resnet_forward.32} parent=0 // pred_region
    _
  $region9: #{resnet_forward.32} parent=0 // pred_fallthru
    _
  // Predicated region
  $region10: #{resnet_forward.32} parent=0 // pred_check
    _
  $region11: #{resnet_forward.32} parent=0 // pred_check_branch
    %13 = sbr.rel (0) target = $region13
  $region12: #{resnet_forward.32} parent=0 // pred_region
    _
  $region13: #{resnet_forward.32} parent=0 // pred_fallthru
    _
  %p15 = scmp.eq.s32.totalorder 0, 0
  // Predicated region
  $region14: #{resnet_forward.32} parent=0 // pred_check
    %p16 = pneg %p15
  $region15: #{resnet_forward.32} parent=0 // pred_check_branch
    %18 = sbr.rel (%p16) target = $region17
  $region16: #{resnet_forward.32} parent=0 // pred_region
    %vm19 = vcmask 254976
    %20 = vst.msk [vmem:[#allocation2] sm:$0x3] %vm19, 0.0
  $region17: #{resnet_forward.32} parent=0 // pred_fallthru
    _
  %v21 = vld [vmem:[#allocation2] sm:$0x3]
  %v22 = vld [vmem:[%s0] sm:$0x3]
  %v23 = vld [vmem:[%s1] sm:$0xf]
  %v24 = vld [vmem:[%s1 + $0x4] sm:$0xf]
  %v25 = vld [vmem:[%s1 + $0x8] sm:$0xf]
  %v26 = vld [vmem:[%s1 + $0xc] sm:$0xf]
  %v27 = vld [vmem:[%s1 + $0x10] sm:$0xf]
  %v28 = vld [vmem:[%s1 + $0x14] sm:$0xf]
  %v29 = vld [vmem:[%s1 + $0x18] sm:$0xf]
  %v30 = vld [vmem:[%s1 + $0x1c] sm:$0xf]
  %v31 = vld [vmem:[%s1 + $0x20] sm:$0xf]
  %v32 = vld [vmem:[%s1 + $0x24] sm:$0xf]
  %v33 = vld [vmem:[%s1 + $0x28] sm:$0xf]
  %v34 = vld [vmem:[%s1 + $0x2c] sm:$0xf]
  %v35 = vld [vmem:[%s1 + $0x30] sm:$0xf]
  %v36 = vld [vmem:[%s1 + $0x34] sm:$0xf]
  %v37 = vld [vmem:[%s1 + $0x38] sm:$0xf]
  %v38 = vld [vmem:[%s1 + $0x3c] sm:$0xf]
  %v39 = vld [vmem:[%s1 + $0x40] sm:$0xf]
  %v40 = vld [vmem:[%s1 + $0x44] sm:$0xf]
  %v43 = vunpack.c.l.s4 1966171168
  %v44 = vunpack.c.0.s8 %v43
  %v45 = vlaneseq
  %v46 = vshrl.u32 %v45, 7
  %v47 = vsub.s32 %v44, %v46
  %v48 = vrot.slane %v22, %v47
  %v49 = vcombine.high %v48, %v48
  %v51 = vunpack.c.l.s4 1966171168
  %v52 = vunpack.c.0.s8 %v51
  %v53 = vlaneseq
  %v54 = vshrl.u32 %v53, 7
  %v55 = vsub.s32 %v52, %v54
  %v56 = vrot.slane %v48, %v55
  %v58 = vunpack.c.l.s4 1966171168
  %v59 = vunpack.c.0.s8 %v58
  %v60 = vlaneseq
  %v61 = vshrl.u32 %v60, 7
  %v62 = vsub.s32 %v59, %v61
  %v63 = vrot.slane %v49, %v62
  %v83 = vunpack.c.l.b16 %v23
  %v84 = vunpack.c.l.b16 %v24
  %v85 = vunpack.c.l.b16 %v25
  %v86 = vunpack.c.l.b16 %v26
  %v87 = vunpack.c.l.b16 %v27
  %v88 = vunpack.c.l.b16 %v28
  %v89 = vunpack.c.l.b16 %v29
  %v90 = vunpack.c.l.b16 %v30
  %v91 = vunpack.c.l.b16 %v31
  %v92 = vunpack.c.l.b16 %v32
  %v93 = vunpack.c.l.b16 %v33
  %v94 = vunpack.c.l.b16 %v34
  %v95 = vunpack.c.l.b16 %v35
  %v96 = vunpack.c.l.b16 %v36
  %v97 = vunpack.c.l.b16 %v37
  %v98 = vunpack.c.l.b16 %v38
  %v99 = vunpack.c.l.b16 %v39
  %v100 = vunpack.c.l.b16 %v40
  %v101 = vpack.c.b16 %v84, %v83
  %v102 = vpack.c.b16 %v86, %v85
  %v103 = vpack.c.b16 %v88, %v87
  %v104 = vpack.c.b16 %v90, %v89
  %v105 = vpack.c.b16 %v92, %v91
  %v106 = vpack.c.b16 %v94, %v93
  %v107 = vpack.c.b16 %v96, %v95
  %v108 = vpack.c.b16 %v98, %v97
  %v109 = vpack.c.b16 %v100, %v99
  %vm119 = vcmask 130048
  %v121 = vsel %vm119, %v63, 0
  %123 = vmatprep.subr.bf16.mxu0 0
  %124 = vmatpush1.bf16.msra.mxu0 %v108
  %125 = vmatprep.subr.bf16.mxu0 0
  %126 = vmatpush1.bf16.msra.mxu0 %v107
  %127 = vmatprep.subr.bf16.mxu0 0
  %128 = vmatpush1.bf16.msra.mxu0 %v106
  %129 = vmatprep.subr.bf16.mxu0 0
  %130 = vmatpush1.bf16.msra.mxu0 %v105
  %131 = vmatprep.subr.bf16.mxu0 0
  %132 = vmatpush1.bf16.msra.mxu0 %v104
  %133 = vmatprep.subr.bf16.mxu0 0
  %134 = vmatpush1.bf16.msra.mxu0 %v103
  %135 = vmatprep.subr.bf16.mxu0 0
  %136 = vmatpush1.bf16.msra.mxu0 %v102
  %137 = vmatprep.subr.bf16.mxu0 0
  %138 = vmatpush1.bf16.msra.mxu0 %v101
  %139 = vmatprep.subr.bf16.mxu0 0
  %140 = vmatpush2.bf16.msra.mxu0 0
  %141 = vmatprep.subr.bf16.mxu0 0
  %142 = vmatpush2.bf16.msra.mxu0 0
  %143 = vmatprep.subr.bf16.mxu0 0
  %144 = vmatpush2.bf16.msra.mxu0 0
  %145 = vmatprep.subr.bf16.mxu0 0
  %146 = vmatpush2.bf16.msra.mxu0 0
  %147 = vmatprep.subr.bf16.mxu0 0
  %148 = vmatpush2.bf16.msra.mxu0 0
  %149 = vmatprep.subr.bf16.mxu0 0
  %150 = vmatpush2.bf16.msra.mxu0 0
  %151 = vmatprep.subr.bf16.mxu0 0
  %152 = vmatpush2.bf16.msra.mxu0 0
  %153 = vmatprep.subr.bf16.mxu0 0
  %154 = vmatpush2.bf16.msra.mxu0 %v109
  %155 = vmatprep.mubr.bf16.mxu0 %v121
  %156 = vmatmul.mubr.bf16.gmra.mxu0 %v56
  %v157 = vpop.f32.mrf.mxu0
  %v158 = vadd.f32 0.0, %v157
  %v159 = vpop.f32.mrf.mxu0
  %v160 = vpop.f32.mrf.mxu0
  %v161 = vpop.f32.mrf.mxu0
  %162 = vdwg.mxu0
  %v163 = vadd.f32 %v21, %v158
  %vm164 = vcmask 254976
  %165 = vst.msk [vmem:[#allocation2] sm:$0x3] %vm164, %v163
  // Predicated region
  $region18: #{resnet_forward.32} parent=0 // pred_check
    %p166 = pneg %p15
  $region19: #{resnet_forward.32} parent=0 // pred_check_branch
    %168 = sbr.rel (%p166) target = $region21
  $region20: #{resnet_forward.32} parent=0 // pred_region
    %v169 = vld [vmem:[#allocation2] sm:$0x3]
    %v170 = vld [vmem:[%s2] sm:$0x1]
    %v172 = vlaneseq
    %v173 = vshrl.u32 %v172, 7
    %v174 = vsub.s32 0, %v173
    %v175 = vrot.slane %v170, %v174
    %v177 = vadd.f32 %v169, %v175
    %v178 = vmax.f32 %v177, 0.0
    %v179 = vpack.c.bf16 %v178, %v178
    %vm180 = vcmask 253952
    %181 = vst.msk [vmem:[%s3] sm:$0x1] %vm180, %v179
  $region21: #{resnet_forward.32} parent=0 // pred_fallthru
    _
  // Predicated region
  $region22: #{resnet_forward.32} parent=0 // pred_check
    _
  $region23: #{resnet_forward.32} parent=0 // pred_check_branch
    %183 = sbr.rel (0) target = $region25
  $region24: #{resnet_forward.32} parent=0 // pred_region
    _
  $region25: #{resnet_forward.32} parent=0 // pred_fallthru
    _
  // Predicated region
  $region26: #{resnet_forward.32} parent=0 // pred_check
    _
  $region27: #{resnet_forward.32} parent=0 // pred_check_branch
    %185 = sbr.rel (0) target = $region29
  $region28: #{resnet_forward.32} parent=0 // pred_region
    _
  $region29: #{resnet_forward.32} parent=0 // pred_fallthru
    _

// kernel: resnet_forward.33
$region0: #{resnet_forward.33}
  #allocation0 [shape = 'u32[]', space=smem, size = 0x4, offset = 0x4, fixed_abs, tag = 'smem constant byte address 0x4 - core index']
  #allocation1 [shape = 'u32[144,128]{1,0:T(1,128)}', space=vmem, size = 0x12000, scoped, tag = 'internal scratch']
  #allocation2 [shape = 'f32[2,32]{1,0:T(2,128)}', space=vmem, size = 0x400, scoped, tag = 'scratch operand']
  %s0 = inlined_call_operand.vmem [shape: bf16[2,16], index: 0, kind: input, shape index: {}]
  %s1 = inlined_call_operand.vmem [shape: bf16[16,32], index: 1, kind: input, shape index: {}]
  %s2 = inlined_call_operand.vmem [shape: f32[1,32], index: 2, kind: input, shape index: {}]
  %s3 = inlined_call_operand.vmem [shape: bf16[2,32], index: 3, kind: output, shape index: {}]
  %s4 = sld [smem:[#allocation0]]
  $region30: #{resnet_forward.33} parent=0
    _
  %s6 = ssub.s32 1, %s4
  %s7 = scalar_select 0, %s6, %s4
  // Predicated region
  $region2: #{resnet_forward.33} parent=0 // pred_check
    _
  $region3: #{resnet_forward.33} parent=0 // pred_check_branch
    %9 = sbr.rel (0) target = $region5
  $region4: #{resnet_forward.33} parent=0 // pred_region
    _
  $region5: #{resnet_forward.33} parent=0 // pred_fallthru
    _
  // Predicated region
  $region6: #{resnet_forward.33} parent=0 // pred_check
    _
  $region7: #{resnet_forward.33} parent=0 // pred_check_branch
    %11 = sbr.rel (0) target = $region9
  $region8: #{resnet_forward.33} parent=0 // pred_region
    _
  $region9: #{resnet_forward.33} parent=0 // pred_fallthru
    _
  // Predicated region
  $region10: #{resnet_forward.33} parent=0 // pred_check
    _
  $region11: #{resnet_forward.33} parent=0 // pred_check_branch
    %13 = sbr.rel (0) target = $region13
  $region12: #{resnet_forward.33} parent=0 // pred_region
    _
  $region13: #{resnet_forward.33} parent=0 // pred_fallthru
    _
  %p15 = scmp.eq.s32.totalorder 0, 0
  // Predicated region
  $region14: #{resnet_forward.33} parent=0 // pred_check
    %p16 = pneg %p15
  $region15: #{resnet_forward.33} parent=0 // pred_check_branch
    %18 = sbr.rel (%p16) target = $region17
  $region16: #{resnet_forward.33} parent=0 // pred_region
    %vm19 = vcmask 254976
    %20 = vst.msk [vmem:[#allocation2] sm:$0x3] %vm19, 0.0
  $region17: #{resnet_forward.33} parent=0 // pred_fallthru
    _
  %v21 = vld [vmem:[#allocation2] sm:$0x3]
  %v22 = vld [vmem:[%s0] sm:$0x1]
  %v23 = vld [vmem:[%s1] sm:$0xf]
  %v24 = vld [vmem:[%s1 + $0x4] sm:$0xf]
  %v27 = vunpack.c.l.b16 %v23
  %v28 = vunpack.c.l.b16 %v24
  %v29 = vpack.c.b16 %v28, %v27
  %vm31 = vcmask 130048
  %v33 = vsel %vm31, %v22, 0
  %35 = vmatprep.subr.bf16.mxu0 0
  %36 = vmatpush1.bf16.msra.mxu0 0
  %37 = vmatprep.subr.bf16.mxu0 0
  %38 = vmatpush1.bf16.msra.mxu0 0
  %39 = vmatprep.subr.bf16.mxu0 0
  %40 = vmatpush1.bf16.msra.mxu0 0
  %41 = vmatprep.subr.bf16.mxu0 0
  %42 = vmatpush1.bf16.msra.mxu0 0
  %43 = vmatprep.subr.bf16.mxu0 0
  %44 = vmatpush1.bf16.msra.mxu0 0
  %45 = vmatprep.subr.bf16.mxu0 0
  %46 = vmatpush1.bf16.msra.mxu0 0
  %47 = vmatprep.subr.bf16.mxu0 0
  %48 = vmatpush1.bf16.msra.mxu0 0
  %49 = vmatprep.subr.bf16.mxu0 0
  %50 = vmatpush1.bf16.msra.mxu0 %v29
  %51 = vmatprep.subr.bf16.mxu0 0
  %52 = vmatpush2.bf16.msra.mxu0 0
  %53 = vmatprep.subr.bf16.mxu0 0
  %54 = vmatpush2.bf16.msra.mxu0 0
  %55 = vmatprep.subr.bf16.mxu0 0
  %56 = vmatpush2.bf16.msra.mxu0 0
  %57 = vmatprep.subr.bf16.mxu0 0
  %58 = vmatpush2.bf16.msra.mxu0 0
  %59 = vmatprep.subr.bf16.mxu0 0
  %60 = vmatpush2.bf16.msra.mxu0 0
  %61 = vmatprep.subr.bf16.mxu0 0
  %62 = vmatpush2.bf16.msra.mxu0 0
  %63 = vmatprep.subr.bf16.mxu0 0
  %64 = vmatpush2.bf16.msra.mxu0 0
  %65 = vmatprep.subr.bf16.mxu0 0
  %66 = vmatpush2.bf16.msra.mxu0 0
  %67 = vmatprep.mubr.bf16.mxu0 0
  %68 = vmatmul.mubr.bf16.gmra.mxu0 %v33
  %v69 = vpop.f32.mrf.mxu0
  %v70 = vadd.f32 0.0, %v69
  %v71 = vpop.f32.mrf.mxu0
  %v72 = vpop.f32.mrf.mxu0
  %v73 = vpop.f32.mrf.mxu0
  %74 = vdwg.mxu0
  %v75 = vadd.f32 %v21, %v70
  %vm76 = vcmask 254976
  %77 = vst.msk [vmem:[#allocation2] sm:$0x3] %vm76, %v75
  // Predicated region
  $region18: #{resnet_forward.33} parent=0 // pred_check
    %p78 = pneg %p15
  $region19: #{resnet_forward.33} parent=0 // pred_check_branch
    %80 = sbr.rel (%p78) target = $region21
  $region20: #{resnet_forward.33} parent=0 // pred_region
    %v81 = vld [vmem:[#allocation2] sm:$0x3]
    %v82 = vld [vmem:[%s2] sm:$0x1]
    %v84 = vlaneseq
    %v85 = vshrl.u32 %v84, 7
    %v86 = vsub.s32 0, %v85
    %v87 = vrot.slane %v82, %v86
    %v89 = vadd.f32 %v81, %v87
    %v90 = vpack.c.bf16 %v89, %v89
    %vm91 = vcmask 253952
    %92 = vst.msk [vmem:[%s3] sm:$0x1] %vm91, %v90
  $region21: #{resnet_forward.33} parent=0 // pred_fallthru
    _
  // Predicated region
  $region22: #{resnet_forward.33} parent=0 // pred_check
    _
  $region23: #{resnet_forward.33} parent=0 // pred_check_branch
    %94 = sbr.rel (0) target = $region25
  $region24: #{resnet_forward.33} parent=0 // pred_region
    _
  $region25: #{resnet_forward.33} parent=0 // pred_fallthru
    _
  // Predicated region
  $region26: #{resnet_forward.33} parent=0 // pred_check
    _
  $region27: #{resnet_forward.33} parent=0 // pred_check_branch
    %96 = sbr.rel (0) target = $region29
  $region28: #{resnet_forward.33} parent=0 // pred_region
    _
  $region29: #{resnet_forward.33} parent=0 // pred_fallthru
    _

// kernel: resnet_forward.34
$region0: #{resnet_forward.34}
  #allocation0 [shape = 'u32[]', space=smem, size = 0x4, offset = 0x4, fixed_abs, tag = 'smem constant byte address 0x4 - core index']
  #allocation1 [shape = 'u32[144,128]{1,0:T(1,128)}', space=vmem, size = 0x12000, scoped, tag = 'internal scratch']
  #allocation2 [shape = 'f32[2,32]{1,0:T(2,128)}', space=vmem, size = 0x400, scoped, tag = 'scratch operand']
  %s0 = inlined_call_operand.vmem [shape: bf16[2,288], index: 0, kind: input, shape index: {}]
  %s1 = inlined_call_operand.vmem [shape: bf16[288,32], index: 1, kind: input, shape index: {}]
  %s2 = inlined_call_operand.vmem [shape: f32[1,32], index: 2, kind: input, shape index: {}]
  %s3 = inlined_call_operand.vmem [shape: bf16[2,32], index: 3, kind: input, shape index: {}]
  %s4 = inlined_call_operand.vmem [shape: bf16[2,32], index: 4, kind: output, shape index: {}]
  %s5 = sld [smem:[#allocation0]]
  $region34: #{resnet_forward.34} parent=0
    _
  %s7 = ssub.s32 1, %s5
  %s8 = scalar_select 0, %s7, %s5
  // Predicated region
  $region2: #{resnet_forward.34} parent=0 // pred_check
    _
  $region3: #{resnet_forward.34} parent=0 // pred_check_branch
    %10 = sbr.rel (0) target = $region5
  $region4: #{resnet_forward.34} parent=0 // pred_region
    _
  $region5: #{resnet_forward.34} parent=0 // pred_fallthru
    _
  // Predicated region
  $region6: #{resnet_forward.34} parent=0 // pred_check
    _
  $region7: #{resnet_forward.34} parent=0 // pred_check_branch
    %12 = sbr.rel (0) target = $region9
  $region8: #{resnet_forward.34} parent=0 // pred_region
    _
  $region9: #{resnet_forward.34} parent=0 // pred_fallthru
    _
  // Predicated region
  $region10: #{resnet_forward.34} parent=0 // pred_check
    _
  $region11: #{resnet_forward.34} parent=0 // pred_check_branch
    %14 = sbr.rel (0) target = $region13
  $region12: #{resnet_forward.34} parent=0 // pred_region
    _
  $region13: #{resnet_forward.34} parent=0 // pred_fallthru
    _
  // Predicated region
  $region14: #{resnet_forward.34} parent=0 // pred_check
    _
  $region15: #{resnet_forward.34} parent=0 // pred_check_branch
    %16 = sbr.rel (0) target = $region17
  $region16: #{resnet_forward.34} parent=0 // pred_region
    _
  $region17: #{resnet_forward.34} parent=0 // pred_fallthru
    _
  %p18 = scmp.eq.s32.totalorder 0, 0
  // Predicated region
  $region18: #{resnet_forward.34} parent=0 // pred_check
    %p19 = pneg %p18
  $region19: #{resnet_forward.34} parent=0 // pred_check_branch
    %21 = sbr.rel (%p19) target = $region21
  $region20: #{resnet_forward.34} parent=0 // pred_region
    %vm22 = vcmask 254976
    %23 = vst.msk [vmem:[#allocation2] sm:$0x3] %vm22, 0.0
  $region21: #{resnet_forward.34} parent=0 // pred_fallthru
    _
  %v24 = vld [vmem:[#allocation2] sm:$0x3]
  %v25 = vld [vmem:[%s0] sm:$0x7]
  %v26 = vld [vmem:[%s1] sm:$0xf]
  %v27 = vld [vmem:[%s1 + $0x4] sm:$0xf]
  %v28 = vld [vmem:[%s1 + $0x8] sm:$0xf]
  %v29 = vld [vmem:[%s1 + $0xc] sm:$0xf]
  %v30 = vld [vmem:[%s1 + $0x10] sm:$0xf]
  %v31 = vld [vmem:[%s1 + $0x14] sm:$0xf]
  %v32 = vld [vmem:[%s1 + $0x18] sm:$0xf]
  %v33 = vld [vmem:[%s1 + $0x1c] sm:$0xf]
  %v34 = vld [vmem:[%s1 + $0x20] sm:$0xf]
  %v35 = vld [vmem:[%s1 + $0x24] sm:$0xf]
  %v36 = vld [vmem:[%s1 + $0x28] sm:$0xf]
  %v37 = vld [vmem:[%s1 + $0x2c] sm:$0xf]
  %v38 = vld [vmem:[%s1 + $0x30] sm:$0xf]
  %v39 = vld [vmem:[%s1 + $0x34] sm:$0xf]
  %v40 = vld [vmem:[%s1 + $0x38] sm:$0xf]
  %v41 = vld [vmem:[%s1 + $0x3c] sm:$0xf]
  %v42 = vld [vmem:[%s1 + $0x40] sm:$0xf]
  %v43 = vld [vmem:[%s1 + $0x44] sm:$0xf]
  %v44 = vld [vmem:[%s1 + $0x48] sm:$0xf]
  %v45 = vld [vmem:[%s1 + $0x4c] sm:$0xf]
  %v46 = vld [vmem:[%s1 + $0x50] sm:$0xf]
  %v47 = vld [vmem:[%s1 + $0x54] sm:$0xf]
  %v48 = vld [vmem:[%s1 + $0x58] sm:$0xf]
  %v49 = vld [vmem:[%s1 + $0x5c] sm:$0xf]
  %v50 = vld [vmem:[%s1 + $0x60] sm:$0xf]
  %v51 = vld [vmem:[%s1 + $0x64] sm:$0xf]
  %v52 = vld [vmem:[%s1 + $0x68] sm:$0xf]
  %v53 = vld [vmem:[%s1 + $0x6c] sm:$0xf]
  %v54 = vld [vmem:[%s1 + $0x70] sm:$0xf]
  %v55 = vld [vmem:[%s1 + $0x74] sm:$0xf]
  %v56 = vld [vmem:[%s1 + $0x78] sm:$0xf]
  %v57 = vld [vmem:[%s1 + $0x7c] sm:$0xf]
  %v58 = vld [vmem:[%s1 + $0x80] sm:$0xf]
  %v59 = vld [vmem:[%s1 + $0x84] sm:$0xf]
  %v60 = vld [vmem:[%s1 + $0x88] sm:$0xf]
  %v61 = vld [vmem:[%s1 + $0x8c] sm:$0xf]
  %v64 = vunpack.c.l.s4 1966171168
  %v65 = vunpack.c.0.s8 %v64
  %v66 = vlaneseq
  %v67 = vshrl.u32 %v66, 7
  %v68 = vsub.s32 %v65, %v67
  %v69 = vrot.slane %v25, %v68
  %v70 = vcombine.high %v69, %v69
  %v72 = vunpack.c.l.s4 1966171168
  %v73 = vunpack.c.0.s8 %v72
  %v74 = vlaneseq
  %v75 = vshrl.u32 %v74, 7
  %v76 = vsub.s32 %v73, %v75
  %v77 = vrot.slane %v69, %v76
  %v79 = vunpack.c.l.s4 1966171168
  %v80 = vunpack.c.0.s8 %v79
  %v81 = vlaneseq
  %v82 = vshrl.u32 %v81, 7
  %v83 = vsub.s32 %v80, %v82
  %v84 = vrot.slane %v70, %v83
  %v85 = vcombine.high %v77, %v77
  %v124 = vunpack.c.l.b16 %v26
  %v125 = vunpack.c.l.b16 %v27
  %v126 = vunpack.c.l.b16 %v28
  %v127 = vunpack.c.l.b16 %v29
  %v128 = vunpack.c.l.b16 %v30
  %v129 = vunpack.c.l.b16 %v31
  %v130 = vunpack.c.l.b16 %v32
  %v131 = vunpack.c.l.b16 %v33
  %v132 = vunpack.c.l.b16 %v34
  %v133 = vunpack.c.l.b16 %v35
  %v134 = vunpack.c.l.b16 %v36
  %v135 = vunpack.c.l.b16 %v37
  %v136 = vunpack.c.l.b16 %v38
  %v137 = vunpack.c.l.b16 %v39
  %v138 = vunpack.c.l.b16 %v40
  %v139 = vunpack.c.l.b16 %v41
  %v140 = vunpack.c.l.b16 %v42
  %v141 = vunpack.c.l.b16 %v43
  %v142 = vunpack.c.l.b16 %v44
  %v143 = vunpack.c.l.b16 %v45
  %v144 = vunpack.c.l.b16 %v46
  %v145 = vunpack.c.l.b16 %v47
  %v146 = vunpack.c.l.b16 %v48
  %v147 = vunpack.c.l.b16 %v49
  %v148 = vunpack.c.l.b16 %v50
  %v149 = vunpack.c.l.b16 %v51
  %v150 = vunpack.c.l.b16 %v52
  %v151 = vunpack.c.l.b16 %v53
  %v152 = vunpack.c.l.b16 %v54
  %v153 = vunpack.c.l.b16 %v55
  %v154 = vunpack.c.l.b16 %v56
  %v155 = vunpack.c.l.b16 %v57
  %v156 = vunpack.c.l.b16 %v58
  %v157 = vunpack.c.l.b16 %v59
  %v158 = vunpack.c.l.b16 %v60
  %v159 = vunpack.c.l.b16 %v61
  %v160 = vpack.c.b16 %v125, %v124
  %v161 = vpack.c.b16 %v127, %v126
  %v162 = vpack.c.b16 %v129, %v128
  %v163 = vpack.c.b16 %v131, %v130
  %v164 = vpack.c.b16 %v133, %v132
  %v165 = vpack.c.b16 %v135, %v134
  %v166 = vpack.c.b16 %v137, %v136
  %v167 = vpack.c.b16 %v139, %v138
  %v168 = vpack.c.b16 %v141, %v140
  %v169 = vpack.c.b16 %v143, %v142
  %v170 = vpack.c.b16 %v145, %v144
  %v171 = vpack.c.b16 %v147, %v146
  %v172 = vpack.c.b16 %v149, %v148
  %v173 = vpack.c.b16 %v151, %v150
  %v174 = vpack.c.b16 %v153, %v152
  %v175 = vpack.c.b16 %v155, %v154
  %v176 = vpack.c.b16 %v157, %v156
  %v177 = vpack.c.b16 %v159, %v158
  %vm196 = vcmask 261120
  %v198 = vsel %vm196, %v85, 0
  %200 = vmatprep.subr.bf16.mxu0 0
  %201 = vmatpush1.bf16.msra.mxu0 %v167
  %202 = vmatprep.subr.bf16.mxu0 0
  %203 = vmatpush1.bf16.msra.mxu0 %v166
  %204 = vmatprep.subr.bf16.mxu0 0
  %205 = vmatpush1.bf16.msra.mxu0 %v165
  %206 = vmatprep.subr.bf16.mxu0 0
  %207 = vmatpush1.bf16.msra.mxu0 %v164
  %208 = vmatprep.subr.bf16.mxu0 0
  %209 = vmatpush1.bf16.msra.mxu0 %v163
  %210 = vmatprep.subr.bf16.mxu0 0
  %211 = vmatpush1.bf16.msra.mxu0 %v162
  %212 = vmatprep.subr.bf16.mxu0 0
  %213 = vmatpush1.bf16.msra.mxu0 %v161
  %214 = vmatprep.subr.bf16.mxu0 0
  %215 = vmatpush1.bf16.msra.mxu0 %v160
  %216 = vmatprep.subr.bf16.mxu0 0
  %217 = vmatpush2.bf16.msra.mxu0 %v175
  %218 = vmatprep.subr.bf16.mxu0 0
  %219 = vmatpush2.bf16.msra.mxu0 %v174
  %220 = vmatprep.subr.bf16.mxu0 0
  %221 = vmatpush2.bf16.msra.mxu0 %v173
  %222 = vmatprep.subr.bf16.mxu0 0
  %223 = vmatpush2.bf16.msra.mxu0 %v172
  %224 = vmatprep.subr.bf16.mxu0 0
  %225 = vmatpush2.bf16.msra.mxu0 %v171
  %226 = vmatprep.subr.bf16.mxu0 0
  %227 = vmatpush2.bf16.msra.mxu0 %v170
  %228 = vmatprep.subr.bf16.mxu0 0
  %229 = vmatpush2.bf16.msra.mxu0 %v169
  %230 = vmatprep.subr.bf16.mxu0 0
  %231 = vmatpush2.bf16.msra.mxu0 %v168
  %232 = vmatprep.mubr.bf16.mxu0 %v84
  %233 = vmatmul.mubr.bf16.gmra.mxu0 %v77
  %v234 = vpop.f32.mrf.mxu0
  %v235 = vadd.f32 0.0, %v234
  %v236 = vpop.f32.mrf.mxu0
  %v237 = vpop.f32.mrf.mxu0
  %v238 = vpop.f32.mrf.mxu0
  %239 = vdwg.mxu0
  %240 = vmatprep.subr.bf16.mxu0 0
  %241 = vmatpush1.bf16.msra.mxu0 0
  %242 = vmatprep.subr.bf16.mxu0 0
  %243 = vmatpush1.bf16.msra.mxu0 0
  %244 = vmatprep.subr.bf16.mxu0 0
  %245 = vmatpush1.bf16.msra.mxu0 0
  %246 = vmatprep.subr.bf16.mxu0 0
  %247 = vmatpush1.bf16.msra.mxu0 0
  %248 = vmatprep.subr.bf16.mxu0 0
  %249 = vmatpush1.bf16.msra.mxu0 0
  %250 = vmatprep.subr.bf16.mxu0 0
  %251 = vmatpush1.bf16.msra.mxu0 0
  %252 = vmatprep.subr.bf16.mxu0 0
  %253 = vmatpush1.bf16.msra.mxu0 %v177
  %254 = vmatprep.subr.bf16.mxu0 0
  %255 = vmatpush1.bf16.msra.mxu0 %v176
  %256 = vmatprep.subr.bf16.mxu0 0
  %257 = vmatpush2.bf16.msra.mxu0 0
  %258 = vmatprep.subr.bf16.mxu0 0
  %259 = vmatpush2.bf16.msra.mxu0 0
  %260 = vmatprep.subr.bf16.mxu0 0
  %261 = vmatpush2.bf16.msra.mxu0 0
  %262 = vmatprep.subr.bf16.mxu0 0
  %263 = vmatpush2.bf16.msra.mxu0 0
  %264 = vmatprep.subr.bf16.mxu0 0
  %265 = vmatpush2.bf16.msra.mxu0 0
  %266 = vmatprep.subr.bf16.mxu0 0
  %267 = vmatpush2.bf16.msra.mxu0 0
  %268 = vmatprep.subr.bf16.mxu0 0
  %269 = vmatpush2.bf16.msra.mxu0 0
  %270 = vmatprep.subr.bf16.mxu0 0
  %271 = vmatpush2.bf16.msra.mxu0 0
  %272 = vmatprep.mubr.bf16.mxu0 0
  %273 = vmatmul.mubr.bf16.gmra.mxu0 %v198
  %v274 = vpop.f32.mrf.mxu0
  %v275 = vadd.f32 %v235, %v274
  %v276 = vpop.f32.mrf.mxu0
  %v277 = vpop.f32.mrf.mxu0
  %v278 = vpop.f32.mrf.mxu0
  %279 = vdwg.mxu0
  %v280 = vadd.f32 %v24, %v275
  %vm281 = vcmask 254976
  %282 = vst.msk [vmem:[#allocation2] sm:$0x3] %vm281, %v280
  // Predicated region
  $region22: #{resnet_forward.34} parent=0 // pred_check
    %p283 = pneg %p18
  $region23: #{resnet_forward.34} parent=0 // pred_check_branch
    %285 = sbr.rel (%p283) target = $region25
  $region24: #{resnet_forward.34} parent=0 // pred_region
    %v286 = vld [vmem:[#allocation2] sm:$0x3]
    %v287 = vld [vmem:[%s2] sm:$0x1]
    %v289 = vlaneseq
    %v290 = vshrl.u32 %v289, 7
    %v291 = vsub.s32 0, %v290
    %v292 = vrot.slane %v287, %v291
    %v294 = vadd.f32 %v286, %v292
    %v295 = vld [vmem:[%s3] sm:$0x1]
    %v296 = vunpack.c.l.bf16 %v295
    %v297 = vadd.f32 %v294, %v296
    %v298 = vmax.f32 %v297, 0.0
    %v299 = vpack.c.bf16 %v298, %v298
    %vm300 = vcmask 253952
    %301 = vst.msk [vmem:[%s4] sm:$0x1] %vm300, %v299
  $region25: #{resnet_forward.34} parent=0 // pred_fallthru
    _
  // Predicated region
  $region26: #{resnet_forward.34} parent=0 // pred_check
    _
  $region27: #{resnet_forward.34} parent=0 // pred_check_branch
    %303 = sbr.rel (0) target = $region29
  $region28: #{resnet_forward.34} parent=0 // pred_region
    _
  $region29: #{resnet_forward.34} parent=0 // pred_fallthru
    _
  // Predicated region
  $region30: #{resnet_forward.34} parent=0 // pred_check
    _
  $region31: #{resnet_forward.34} parent=0 // pred_check_branch
    %305 = sbr.rel (0) target = $region33
  $region32: #{resnet_forward.34} parent=0 // pred_region
    _
  $region33: #{resnet_forward.34} parent=0 // pred_fallthru
    _

// kernel: resnet_forward.35
$region0: #{resnet_forward.35}
  #allocation0 [shape = 'u32[]', space=smem, size = 0x4, offset = 0x4, fixed_abs, tag = 'smem constant byte address 0x4 - core index']
  #allocation1 [shape = 'u32[144,128]{1,0:T(1,128)}', space=vmem, size = 0x12000, scoped, tag = 'internal scratch']
  #allocation2 [shape = 'f32[2,32]{1,0:T(2,128)}', space=vmem, size = 0x400, scoped, tag = 'scratch operand']
  %s0 = inlined_call_operand.vmem [shape: bf16[2,288], index: 0, kind: input, shape index: {}]
  %s1 = inlined_call_operand.vmem [shape: bf16[288,32], index: 1, kind: input, shape index: {}]
  %s2 = inlined_call_operand.vmem [shape: f32[1,32], index: 2, kind: input, shape index: {}]
  %s3 = inlined_call_operand.vmem [shape: bf16[2,32], index: 3, kind: output, shape index: {}]
  %s4 = sld [smem:[#allocation0]]
  $region30: #{resnet_forward.35} parent=0
    _
  %s6 = ssub.s32 1, %s4
  %s7 = scalar_select 0, %s6, %s4
  // Predicated region
  $region2: #{resnet_forward.35} parent=0 // pred_check
    _
  $region3: #{resnet_forward.35} parent=0 // pred_check_branch
    %9 = sbr.rel (0) target = $region5
  $region4: #{resnet_forward.35} parent=0 // pred_region
    _
  $region5: #{resnet_forward.35} parent=0 // pred_fallthru
    _
  // Predicated region
  $region6: #{resnet_forward.35} parent=0 // pred_check
    _
  $region7: #{resnet_forward.35} parent=0 // pred_check_branch
    %11 = sbr.rel (0) target = $region9
  $region8: #{resnet_forward.35} parent=0 // pred_region
    _
  $region9: #{resnet_forward.35} parent=0 // pred_fallthru
    _
  // Predicated region
  $region10: #{resnet_forward.35} parent=0 // pred_check
    _
  $region11: #{resnet_forward.35} parent=0 // pred_check_branch
    %13 = sbr.rel (0) target = $region13
  $region12: #{resnet_forward.35} parent=0 // pred_region
    _
  $region13: #{resnet_forward.35} parent=0 // pred_fallthru
    _
  %p15 = scmp.eq.s32.totalorder 0, 0
  // Predicated region
  $region14: #{resnet_forward.35} parent=0 // pred_check
    %p16 = pneg %p15
  $region15: #{resnet_forward.35} parent=0 // pred_check_branch
    %18 = sbr.rel (%p16) target = $region17
  $region16: #{resnet_forward.35} parent=0 // pred_region
    %vm19 = vcmask 254976
    %20 = vst.msk [vmem:[#allocation2] sm:$0x3] %vm19, 0.0
  $region17: #{resnet_forward.35} parent=0 // pred_fallthru
    _
  %v21 = vld [vmem:[#allocation2] sm:$0x3]
  %v22 = vld [vmem:[%s0] sm:$0x7]
  %v23 = vld [vmem:[%s1] sm:$0xf]
  %v24 = vld [vmem:[%s1 + $0x4] sm:$0xf]
  %v25 = vld [vmem:[%s1 + $0x8] sm:$0xf]
  %v26 = vld [vmem:[%s1 + $0xc] sm:$0xf]
  %v27 = vld [vmem:[%s1 + $0x10] sm:$0xf]
  %v28 = vld [vmem:[%s1 + $0x14] sm:$0xf]
  %v29 = vld [vmem:[%s1 + $0x18] sm:$0xf]
  %v30 = vld [vmem:[%s1 + $0x1c] sm:$0xf]
  %v31 = vld [vmem:[%s1 + $0x20] sm:$0xf]
  %v32 = vld [vmem:[%s1 + $0x24] sm:$0xf]
  %v33 = vld [vmem:[%s1 + $0x28] sm:$0xf]
  %v34 = vld [vmem:[%s1 + $0x2c] sm:$0xf]
  %v35 = vld [vmem:[%s1 + $0x30] sm:$0xf]
  %v36 = vld [vmem:[%s1 + $0x34] sm:$0xf]
  %v37 = vld [vmem:[%s1 + $0x38] sm:$0xf]
  %v38 = vld [vmem:[%s1 + $0x3c] sm:$0xf]
  %v39 = vld [vmem:[%s1 + $0x40] sm:$0xf]
  %v40 = vld [vmem:[%s1 + $0x44] sm:$0xf]
  %v41 = vld [vmem:[%s1 + $0x48] sm:$0xf]
  %v42 = vld [vmem:[%s1 + $0x4c] sm:$0xf]
  %v43 = vld [vmem:[%s1 + $0x50] sm:$0xf]
  %v44 = vld [vmem:[%s1 + $0x54] sm:$0xf]
  %v45 = vld [vmem:[%s1 + $0x58] sm:$0xf]
  %v46 = vld [vmem:[%s1 + $0x5c] sm:$0xf]
  %v47 = vld [vmem:[%s1 + $0x60] sm:$0xf]
  %v48 = vld [vmem:[%s1 + $0x64] sm:$0xf]
  %v49 = vld [vmem:[%s1 + $0x68] sm:$0xf]
  %v50 = vld [vmem:[%s1 + $0x6c] sm:$0xf]
  %v51 = vld [vmem:[%s1 + $0x70] sm:$0xf]
  %v52 = vld [vmem:[%s1 + $0x74] sm:$0xf]
  %v53 = vld [vmem:[%s1 + $0x78] sm:$0xf]
  %v54 = vld [vmem:[%s1 + $0x7c] sm:$0xf]
  %v55 = vld [vmem:[%s1 + $0x80] sm:$0xf]
  %v56 = vld [vmem:[%s1 + $0x84] sm:$0xf]
  %v57 = vld [vmem:[%s1 + $0x88] sm:$0xf]
  %v58 = vld [vmem:[%s1 + $0x8c] sm:$0xf]
  %v61 = vunpack.c.l.s4 1966171168
  %v62 = vunpack.c.0.s8 %v61
  %v63 = vlaneseq
  %v64 = vshrl.u32 %v63, 7
  %v65 = vsub.s32 %v62, %v64
  %v66 = vrot.slane %v22, %v65
  %v67 = vcombine.high %v66, %v66
  %v69 = vunpack.c.l.s4 1966171168
  %v70 = vunpack.c.0.s8 %v69
  %v71 = vlaneseq
  %v72 = vshrl.u32 %v71, 7
  %v73 = vsub.s32 %v70, %v72
  %v74 = vrot.slane %v66, %v73
  %v76 = vunpack.c.l.s4 1966171168
  %v77 = vunpack.c.0.s8 %v76
  %v78 = vlaneseq
  %v79 = vshrl.u32 %v78, 7
  %v80 = vsub.s32 %v77, %v79
  %v81 = vrot.slane %v67, %v80
  %v82 = vcombine.high %v74, %v74
  %v121 = vunpack.c.l.b16 %v23
  %v122 = vunpack.c.l.b16 %v24
  %v123 = vunpack.c.l.b16 %v25
  %v124 = vunpack.c.l.b16 %v26
  %v125 = vunpack.c.l.b16 %v27
  %v126 = vunpack.c.l.b16 %v28
  %v127 = vunpack.c.l.b16 %v29
  %v128 = vunpack.c.l.b16 %v30
  %v129 = vunpack.c.l.b16 %v31
  %v130 = vunpack.c.l.b16 %v32
  %v131 = vunpack.c.l.b16 %v33
  %v132 = vunpack.c.l.b16 %v34
  %v133 = vunpack.c.l.b16 %v35
  %v134 = vunpack.c.l.b16 %v36
  %v135 = vunpack.c.l.b16 %v37
  %v136 = vunpack.c.l.b16 %v38
  %v137 = vunpack.c.l.b16 %v39
  %v138 = vunpack.c.l.b16 %v40
  %v139 = vunpack.c.l.b16 %v41
  %v140 = vunpack.c.l.b16 %v42
  %v141 = vunpack.c.l.b16 %v43
  %v142 = vunpack.c.l.b16 %v44
  %v143 = vunpack.c.l.b16 %v45
  %v144 = vunpack.c.l.b16 %v46
  %v145 = vunpack.c.l.b16 %v47
  %v146 = vunpack.c.l.b16 %v48
  %v147 = vunpack.c.l.b16 %v49
  %v148 = vunpack.c.l.b16 %v50
  %v149 = vunpack.c.l.b16 %v51
  %v150 = vunpack.c.l.b16 %v52
  %v151 = vunpack.c.l.b16 %v53
  %v152 = vunpack.c.l.b16 %v54
  %v153 = vunpack.c.l.b16 %v55
  %v154 = vunpack.c.l.b16 %v56
  %v155 = vunpack.c.l.b16 %v57
  %v156 = vunpack.c.l.b16 %v58
  %v157 = vpack.c.b16 %v122, %v121
  %v158 = vpack.c.b16 %v124, %v123
  %v159 = vpack.c.b16 %v126, %v125
  %v160 = vpack.c.b16 %v128, %v127
  %v161 = vpack.c.b16 %v130, %v129
  %v162 = vpack.c.b16 %v132, %v131
  %v163 = vpack.c.b16 %v134, %v133
  %v164 = vpack.c.b16 %v136, %v135
  %v165 = vpack.c.b16 %v138, %v137
  %v166 = vpack.c.b16 %v140, %v139
  %v167 = vpack.c.b16 %v142, %v141
  %v168 = vpack.c.b16 %v144, %v143
  %v169 = vpack.c.b16 %v146, %v145
  %v170 = vpack.c.b16 %v148, %v147
  %v171 = vpack.c.b16 %v150, %v149
  %v172 = vpack.c.b16 %v152, %v151
  %v173 = vpack.c.b16 %v154, %v153
  %v174 = vpack.c.b16 %v156, %v155
  %vm193 = vcmask 261120
  %v195 = vsel %vm193, %v82, 0
  %197 = vmatprep.subr.bf16.mxu0 0
  %198 = vmatpush1.bf16.msra.mxu0 %v164
  %199 = vmatprep.subr.bf16.mxu0 0
  %200 = vmatpush1.bf16.msra.mxu0 %v163
  %201 = vmatprep.subr.bf16.mxu0 0
  %202 = vmatpush1.bf16.msra.mxu0 %v162
  %203 = vmatprep.subr.bf16.mxu0 0
  %204 = vmatpush1.bf16.msra.mxu0 %v161
  %205 = vmatprep.subr.bf16.mxu0 0
  %206 = vmatpush1.bf16.msra.mxu0 %v160
  %207 = vmatprep.subr.bf16.mxu0 0
  %208 = vmatpush1.bf16.msra.mxu0 %v159
  %209 = vmatprep.subr.bf16.mxu0 0
  %210 = vmatpush1.bf16.msra.mxu0 %v158
  %211 = vmatprep.subr.bf16.mxu0 0
  %212 = vmatpush1.bf16.msra.mxu0 %v157
  %213 = vmatprep.subr.bf16.mxu0 0
  %214 = vmatpush2.bf16.msra.mxu0 %v172
  %215 = vmatprep.subr.bf16.mxu0 0
  %216 = vmatpush2.bf16.msra.mxu0 %v171
  %217 = vmatprep.subr.bf16.mxu0 0
  %218 = vmatpush2.bf16.msra.mxu0 %v170
  %219 = vmatprep.subr.bf16.mxu0 0
  %220 = vmatpush2.bf16.msra.mxu0 %v169
  %221 = vmatprep.subr.bf16.mxu0 0
  %222 = vmatpush2.bf16.msra.mxu0 %v168
  %223 = vmatprep.subr.bf16.mxu0 0
  %224 = vmatpush2.bf16.msra.mxu0 %v167
  %225 = vmatprep.subr.bf16.mxu0 0
  %226 = vmatpush2.bf16.msra.mxu0 %v166
  %227 = vmatprep.subr.bf16.mxu0 0
  %228 = vmatpush2.bf16.msra.mxu0 %v165
  %229 = vmatprep.mubr.bf16.mxu0 %v81
  %230 = vmatmul.mubr.bf16.gmra.mxu0 %v74
  %v231 = vpop.f32.mrf.mxu0
  %v232 = vadd.f32 0.0, %v231
  %v233 = vpop.f32.mrf.mxu0
  %v234 = vpop.f32.mrf.mxu0
  %v235 = vpop.f32.mrf.mxu0
  %236 = vdwg.mxu0
  %237 = vmatprep.subr.bf16.mxu0 0
  %238 = vmatpush1.bf16.msra.mxu0 0
  %239 = vmatprep.subr.bf16.mxu0 0
  %240 = vmatpush1.bf16.msra.mxu0 0
  %241 = vmatprep.subr.bf16.mxu0 0
  %242 = vmatpush1.bf16.msra.mxu0 0
  %243 = vmatprep.subr.bf16.mxu0 0
  %244 = vmatpush1.bf16.msra.mxu0 0
  %245 = vmatprep.subr.bf16.mxu0 0
  %246 = vmatpush1.bf16.msra.mxu0 0
  %247 = vmatprep.subr.bf16.mxu0 0
  %248 = vmatpush1.bf16.msra.mxu0 0
  %249 = vmatprep.subr.bf16.mxu0 0
  %250 = vmatpush1.bf16.msra.mxu0 %v174
  %251 = vmatprep.subr.bf16.mxu0 0
  %252 = vmatpush1.bf16.msra.mxu0 %v173
  %253 = vmatprep.subr.bf16.mxu0 0
  %254 = vmatpush2.bf16.msra.mxu0 0
  %255 = vmatprep.subr.bf16.mxu0 0
  %256 = vmatpush2.bf16.msra.mxu0 0
  %257 = vmatprep.subr.bf16.mxu0 0
  %258 = vmatpush2.bf16.msra.mxu0 0
  %259 = vmatprep.subr.bf16.mxu0 0
  %260 = vmatpush2.bf16.msra.mxu0 0
  %261 = vmatprep.subr.bf16.mxu0 0
  %262 = vmatpush2.bf16.msra.mxu0 0
  %263 = vmatprep.subr.bf16.mxu0 0
  %264 = vmatpush2.bf16.msra.mxu0 0
  %265 = vmatprep.subr.bf16.mxu0 0
  %266 = vmatpush2.bf16.msra.mxu0 0
  %267 = vmatprep.subr.bf16.mxu0 0
  %268 = vmatpush2.bf16.msra.mxu0 0
  %269 = vmatprep.mubr.bf16.mxu0 0
  %270 = vmatmul.mubr.bf16.gmra.mxu0 %v195
  %v271 = vpop.f32.mrf.mxu0
  %v272 = vadd.f32 %v232, %v271
  %v273 = vpop.f32.mrf.mxu0
  %v274 = vpop.f32.mrf.mxu0
  %v275 = vpop.f32.mrf.mxu0
  %276 = vdwg.mxu0
  %v277 = vadd.f32 %v21, %v272
  %vm278 = vcmask 254976
  %279 = vst.msk [vmem:[#allocation2] sm:$0x3] %vm278, %v277
  // Predicated region
  $region18: #{resnet_forward.35} parent=0 // pred_check
    %p280 = pneg %p15
  $region19: #{resnet_forward.35} parent=0 // pred_check_branch
    %282 = sbr.rel (%p280) target = $region21
  $region20: #{resnet_forward.35} parent=0 // pred_region
    %v283 = vld [vmem:[#allocation2] sm:$0x3]
    %v284 = vld [vmem:[%s2] sm:$0x1]
    %v286 = vlaneseq
    %v287 = vshrl.u32 %v286, 7
    %v288 = vsub.s32 0, %v287
    %v289 = vrot.slane %v284, %v288
    %v291 = vadd.f32 %v283, %v289
    %v292 = vmax.f32 %v291, 0.0
    %v293 = vpack.c.bf16 %v292, %v292
    %vm294 = vcmask 253952
    %295 = vst.msk [vmem:[%s3] sm:$0x1] %vm294, %v293
  $region21: #{resnet_forward.35} parent=0 // pred_fallthru
    _
  // Predicated region
  $region22: #{resnet_forward.35} parent=0 // pred_check
    _
  $region23: #{resnet_forward.35} parent=0 // pred_check_branch
    %297 = sbr.rel (0) target = $region25
  $region24: #{resnet_forward.35} parent=0 // pred_region
    _
  $region25: #{resnet_forward.35} parent=0 // pred_fallthru
    _
  // Predicated region
  $region26: #{resnet_forward.35} parent=0 // pred_check
    _
  $region27: #{resnet_forward.35} parent=0 // pred_check_branch
    %299 = sbr.rel (0) target = $region29
  $region28: #{resnet_forward.35} parent=0 // pred_region
    _
  $region29: #{resnet_forward.35} parent=0 // pred_fallthru
    _

// kernel: resnet_forward.37
$region0: #{resnet_forward.37}
  #allocation0 [shape = 'u32[]', space=smem, size = 0x4, offset = 0x4, fixed_abs, tag = 'smem constant byte address 0x4 - core index']
  #allocation1 [shape = 'u32[144,128]{1,0:T(1,128)}', space=vmem, size = 0x12000, scoped, tag = 'internal scratch']
  #allocation2 [shape = 'f32[2,64]{1,0:T(2,128)}', space=vmem, size = 0x400, scoped, tag = 'scratch operand']
  %s0 = inlined_call_operand.vmem [shape: bf16[2,288], index: 0, kind: input, shape index: {}]
  %s1 = inlined_call_operand.vmem [shape: bf16[288,64], index: 1, kind: input, shape index: {}]
  %s2 = inlined_call_operand.vmem [shape: f32[1,64], index: 2, kind: input, shape index: {}]
  %s3 = inlined_call_operand.vmem [shape: bf16[2,64], index: 3, kind: output, shape index: {}]
  %s4 = sld [smem:[#allocation0]]
  $region30: #{resnet_forward.37} parent=0
    _
  %s6 = ssub.s32 1, %s4
  %s7 = scalar_select 0, %s6, %s4
  // Predicated region
  $region2: #{resnet_forward.37} parent=0 // pred_check
    _
  $region3: #{resnet_forward.37} parent=0 // pred_check_branch
    %9 = sbr.rel (0) target = $region5
  $region4: #{resnet_forward.37} parent=0 // pred_region
    _
  $region5: #{resnet_forward.37} parent=0 // pred_fallthru
    _
  // Predicated region
  $region6: #{resnet_forward.37} parent=0 // pred_check
    _
  $region7: #{resnet_forward.37} parent=0 // pred_check_branch
    %11 = sbr.rel (0) target = $region9
  $region8: #{resnet_forward.37} parent=0 // pred_region
    _
  $region9: #{resnet_forward.37} parent=0 // pred_fallthru
    _
  // Predicated region
  $region10: #{resnet_forward.37} parent=0 // pred_check
    _
  $region11: #{resnet_forward.37} parent=0 // pred_check_branch
    %13 = sbr.rel (0) target = $region13
  $region12: #{resnet_forward.37} parent=0 // pred_region
    _
  $region13: #{resnet_forward.37} parent=0 // pred_fallthru
    _
  %p15 = scmp.eq.s32.totalorder 0, 0
  // Predicated region
  $region14: #{resnet_forward.37} parent=0 // pred_check
    %p16 = pneg %p15
  $region15: #{resnet_forward.37} parent=0 // pred_check_branch
    %18 = sbr.rel (%p16) target = $region17
  $region16: #{resnet_forward.37} parent=0 // pred_region
    %vm19 = vcmask 517120
    %20 = vst.msk [vmem:[#allocation2] sm:$0x3] %vm19, 0.0
  $region17: #{resnet_forward.37} parent=0 // pred_fallthru
    _
  %v21 = vld [vmem:[#allocation2] sm:$0x3]
  %v22 = vld [vmem:[%s0] sm:$0x7]
  %v23 = vld [vmem:[%s1] sm:$0xf]
  %v24 = vld [vmem:[%s1 + $0x4] sm:$0xf]
  %v25 = vld [vmem:[%s1 + $0x8] sm:$0xf]
  %v26 = vld [vmem:[%s1 + $0xc] sm:$0xf]
  %v27 = vld [vmem:[%s1 + $0x10] sm:$0xf]
  %v28 = vld [vmem:[%s1 + $0x14] sm:$0xf]
  %v29 = vld [vmem:[%s1 + $0x18] sm:$0xf]
  %v30 = vld [vmem:[%s1 + $0x1c] sm:$0xf]
  %v31 = vld [vmem:[%s1 + $0x20] sm:$0xf]
  %v32 = vld [vmem:[%s1 + $0x24] sm:$0xf]
  %v33 = vld [vmem:[%s1 + $0x28] sm:$0xf]
  %v34 = vld [vmem:[%s1 + $0x2c] sm:$0xf]
  %v35 = vld [vmem:[%s1 + $0x30] sm:$0xf]
  %v36 = vld [vmem:[%s1 + $0x34] sm:$0xf]
  %v37 = vld [vmem:[%s1 + $0x38] sm:$0xf]
  %v38 = vld [vmem:[%s1 + $0x3c] sm:$0xf]
  %v39 = vld [vmem:[%s1 + $0x40] sm:$0xf]
  %v40 = vld [vmem:[%s1 + $0x44] sm:$0xf]
  %v41 = vld [vmem:[%s1 + $0x48] sm:$0xf]
  %v42 = vld [vmem:[%s1 + $0x4c] sm:$0xf]
  %v43 = vld [vmem:[%s1 + $0x50] sm:$0xf]
  %v44 = vld [vmem:[%s1 + $0x54] sm:$0xf]
  %v45 = vld [vmem:[%s1 + $0x58] sm:$0xf]
  %v46 = vld [vmem:[%s1 + $0x5c] sm:$0xf]
  %v47 = vld [vmem:[%s1 + $0x60] sm:$0xf]
  %v48 = vld [vmem:[%s1 + $0x64] sm:$0xf]
  %v49 = vld [vmem:[%s1 + $0x68] sm:$0xf]
  %v50 = vld [vmem:[%s1 + $0x6c] sm:$0xf]
  %v51 = vld [vmem:[%s1 + $0x70] sm:$0xf]
  %v52 = vld [vmem:[%s1 + $0x74] sm:$0xf]
  %v53 = vld [vmem:[%s1 + $0x78] sm:$0xf]
  %v54 = vld [vmem:[%s1 + $0x7c] sm:$0xf]
  %v55 = vld [vmem:[%s1 + $0x80] sm:$0xf]
  %v56 = vld [vmem:[%s1 + $0x84] sm:$0xf]
  %v57 = vld [vmem:[%s1 + $0x88] sm:$0xf]
  %v58 = vld [vmem:[%s1 + $0x8c] sm:$0xf]
  %v61 = vunpack.c.l.s4 1966171168
  %v62 = vunpack.c.0.s8 %v61
  %v63 = vlaneseq
  %v64 = vshrl.u32 %v63, 7
  %v65 = vsub.s32 %v62, %v64
  %v66 = vrot.slane %v22, %v65
  %v67 = vcombine.high %v66, %v66
  %v69 = vunpack.c.l.s4 1966171168
  %v70 = vunpack.c.0.s8 %v69
  %v71 = vlaneseq
  %v72 = vshrl.u32 %v71, 7
  %v73 = vsub.s32 %v70, %v72
  %v74 = vrot.slane %v66, %v73
  %v76 = vunpack.c.l.s4 1966171168
  %v77 = vunpack.c.0.s8 %v76
  %v78 = vlaneseq
  %v79 = vshrl.u32 %v78, 7
  %v80 = vsub.s32 %v77, %v79
  %v81 = vrot.slane %v67, %v80
  %v82 = vcombine.high %v74, %v74
  %v121 = vunpack.c.l.b16 %v23
  %v122 = vunpack.c.l.b16 %v24
  %v123 = vunpack.c.l.b16 %v25
  %v124 = vunpack.c.l.b16 %v26
  %v125 = vunpack.c.l.b16 %v27
  %v126 = vunpack.c.l.b16 %v28
  %v127 = vunpack.c.l.b16 %v29
  %v128 = vunpack.c.l.b16 %v30
  %v129 = vunpack.c.l.b16 %v31
  %v130 = vunpack.c.l.b16 %v32
  %v131 = vunpack.c.l.b16 %v33
  %v132 = vunpack.c.l.b16 %v34
  %v133 = vunpack.c.l.b16 %v35
  %v134 = vunpack.c.l.b16 %v36
  %v135 = vunpack.c.l.b16 %v37
  %v136 = vunpack.c.l.b16 %v38
  %v137 = vunpack.c.l.b16 %v39
  %v138 = vunpack.c.l.b16 %v40
  %v139 = vunpack.c.l.b16 %v41
  %v140 = vunpack.c.l.b16 %v42
  %v141 = vunpack.c.l.b16 %v43
  %v142 = vunpack.c.l.b16 %v44
  %v143 = vunpack.c.l.b16 %v45
  %v144 = vunpack.c.l.b16 %v46
  %v145 = vunpack.c.l.b16 %v47
  %v146 = vunpack.c.l.b16 %v48
  %v147 = vunpack.c.l.b16 %v49
  %v148 = vunpack.c.l.b16 %v50
  %v149 = vunpack.c.l.b16 %v51
  %v150 = vunpack.c.l.b16 %v52
  %v151 = vunpack.c.l.b16 %v53
  %v152 = vunpack.c.l.b16 %v54
  %v153 = vunpack.c.l.b16 %v55
  %v154 = vunpack.c.l.b16 %v56
  %v155 = vunpack.c.l.b16 %v57
  %v156 = vunpack.c.l.b16 %v58
  %v157 = vpack.c.b16 %v122, %v121
  %v158 = vpack.c.b16 %v124, %v123
  %v159 = vpack.c.b16 %v126, %v125
  %v160 = vpack.c.b16 %v128, %v127
  %v161 = vpack.c.b16 %v130, %v129
  %v162 = vpack.c.b16 %v132, %v131
  %v163 = vpack.c.b16 %v134, %v133
  %v164 = vpack.c.b16 %v136, %v135
  %v165 = vpack.c.b16 %v138, %v137
  %v166 = vpack.c.b16 %v140, %v139
  %v167 = vpack.c.b16 %v142, %v141
  %v168 = vpack.c.b16 %v144, %v143
  %v169 = vpack.c.b16 %v146, %v145
  %v170 = vpack.c.b16 %v148, %v147
  %v171 = vpack.c.b16 %v150, %v149
  %v172 = vpack.c.b16 %v152, %v151
  %v173 = vpack.c.b16 %v154, %v153
  %v174 = vpack.c.b16 %v156, %v155
  %vm193 = vcmask 261120
  %v195 = vsel %vm193, %v82, 0
  %197 = vmatprep.subr.bf16.mxu0 0
  %198 = vmatpush1.bf16.msra.mxu0 %v164
  %199 = vmatprep.subr.bf16.mxu0 0
  %200 = vmatpush1.bf16.msra.mxu0 %v163
  %201 = vmatprep.subr.bf16.mxu0 0
  %202 = vmatpush1.bf16.msra.mxu0 %v162
  %203 = vmatprep.subr.bf16.mxu0 0
  %204 = vmatpush1.bf16.msra.mxu0 %v161
  %205 = vmatprep.subr.bf16.mxu0 0
  %206 = vmatpush1.bf16.msra.mxu0 %v160
  %207 = vmatprep.subr.bf16.mxu0 0
  %208 = vmatpush1.bf16.msra.mxu0 %v159
  %209 = vmatprep.subr.bf16.mxu0 0
  %210 = vmatpush1.bf16.msra.mxu0 %v158
  %211 = vmatprep.subr.bf16.mxu0 0
  %212 = vmatpush1.bf16.msra.mxu0 %v157
  %213 = vmatprep.subr.bf16.mxu0 0
  %214 = vmatpush2.bf16.msra.mxu0 %v172
  %215 = vmatprep.subr.bf16.mxu0 0
  %216 = vmatpush2.bf16.msra.mxu0 %v171
  %217 = vmatprep.subr.bf16.mxu0 0
  %218 = vmatpush2.bf16.msra.mxu0 %v170
  %219 = vmatprep.subr.bf16.mxu0 0
  %220 = vmatpush2.bf16.msra.mxu0 %v169
  %221 = vmatprep.subr.bf16.mxu0 0
  %222 = vmatpush2.bf16.msra.mxu0 %v168
  %223 = vmatprep.subr.bf16.mxu0 0
  %224 = vmatpush2.bf16.msra.mxu0 %v167
  %225 = vmatprep.subr.bf16.mxu0 0
  %226 = vmatpush2.bf16.msra.mxu0 %v166
  %227 = vmatprep.subr.bf16.mxu0 0
  %228 = vmatpush2.bf16.msra.mxu0 %v165
  %229 = vmatprep.mubr.bf16.mxu0 %v81
  %230 = vmatmul.mubr.bf16.gmra.mxu0 %v74
  %v231 = vpop.f32.mrf.mxu0
  %v232 = vadd.f32 0.0, %v231
  %v233 = vpop.f32.mrf.mxu0
  %v234 = vpop.f32.mrf.mxu0
  %v235 = vpop.f32.mrf.mxu0
  %236 = vdwg.mxu0
  %237 = vmatprep.subr.bf16.mxu0 0
  %238 = vmatpush1.bf16.msra.mxu0 0
  %239 = vmatprep.subr.bf16.mxu0 0
  %240 = vmatpush1.bf16.msra.mxu0 0
  %241 = vmatprep.subr.bf16.mxu0 0
  %242 = vmatpush1.bf16.msra.mxu0 0
  %243 = vmatprep.subr.bf16.mxu0 0
  %244 = vmatpush1.bf16.msra.mxu0 0
  %245 = vmatprep.subr.bf16.mxu0 0
  %246 = vmatpush1.bf16.msra.mxu0 0
  %247 = vmatprep.subr.bf16.mxu0 0
  %248 = vmatpush1.bf16.msra.mxu0 0
  %249 = vmatprep.subr.bf16.mxu0 0
  %250 = vmatpush1.bf16.msra.mxu0 %v174
  %251 = vmatprep.subr.bf16.mxu0 0
  %252 = vmatpush1.bf16.msra.mxu0 %v173
  %253 = vmatprep.subr.bf16.mxu0 0
  %254 = vmatpush2.bf16.msra.mxu0 0
  %255 = vmatprep.subr.bf16.mxu0 0
  %256 = vmatpush2.bf16.msra.mxu0 0
  %257 = vmatprep.subr.bf16.mxu0 0
  %258 = vmatpush2.bf16.msra.mxu0 0
  %259 = vmatprep.subr.bf16.mxu0 0
  %260 = vmatpush2.bf16.msra.mxu0 0
  %261 = vmatprep.subr.bf16.mxu0 0
  %262 = vmatpush2.bf16.msra.mxu0 0
  %263 = vmatprep.subr.bf16.mxu0 0
  %264 = vmatpush2.bf16.msra.mxu0 0
  %265 = vmatprep.subr.bf16.mxu0 0
  %266 = vmatpush2.bf16.msra.mxu0 0
  %267 = vmatprep.subr.bf16.mxu0 0
  %268 = vmatpush2.bf16.msra.mxu0 0
  %269 = vmatprep.mubr.bf16.mxu0 0
  %270 = vmatmul.mubr.bf16.gmra.mxu0 %v195
  %v271 = vpop.f32.mrf.mxu0
  %v272 = vadd.f32 %v232, %v271
  %v273 = vpop.f32.mrf.mxu0
  %v274 = vpop.f32.mrf.mxu0
  %v275 = vpop.f32.mrf.mxu0
  %276 = vdwg.mxu0
  %v277 = vadd.f32 %v21, %v272
  %vm278 = vcmask 517120
  %279 = vst.msk [vmem:[#allocation2] sm:$0x3] %vm278, %v277
  // Predicated region
  $region18: #{resnet_forward.37} parent=0 // pred_check
    %p280 = pneg %p15
  $region19: #{resnet_forward.37} parent=0 // pred_check_branch
    %282 = sbr.rel (%p280) target = $region21
  $region20: #{resnet_forward.37} parent=0 // pred_region
    %v283 = vld [vmem:[#allocation2] sm:$0x3]
    %v284 = vld [vmem:[%s2] sm:$0x1]
    %v286 = vlaneseq
    %v287 = vshrl.u32 %v286, 7
    %v288 = vsub.s32 0, %v287
    %v289 = vrot.slane %v284, %v288
    %v291 = vadd.f32 %v283, %v289
    %v292 = vmax.f32 %v291, 0.0
    %v293 = vpack.c.bf16 %v292, %v292
    %vm294 = vcmask 516096
    %295 = vst.msk [vmem:[%s3] sm:$0x1] %vm294, %v293
  $region21: #{resnet_forward.37} parent=0 // pred_fallthru
    _
  // Predicated region
  $region22: #{resnet_forward.37} parent=0 // pred_check
    _
  $region23: #{resnet_forward.37} parent=0 // pred_check_branch
    %297 = sbr.rel (0) target = $region25
  $region24: #{resnet_forward.37} parent=0 // pred_region
    _
  $region25: #{resnet_forward.37} parent=0 // pred_fallthru
    _
  // Predicated region
  $region26: #{resnet_forward.37} parent=0 // pred_check
    _
  $region27: #{resnet_forward.37} parent=0 // pred_check_branch
    %299 = sbr.rel (0) target = $region29
  $region28: #{resnet_forward.37} parent=0 // pred_region
    _
  $region29: #{resnet_forward.37} parent=0 // pred_fallthru
    _

// kernel: resnet_forward.38
$region0: #{resnet_forward.38}
  #allocation0 [shape = 'u32[]', space=smem, size = 0x4, offset = 0x4, fixed_abs, tag = 'smem constant byte address 0x4 - core index']
  #allocation1 [shape = 'u32[144,128]{1,0:T(1,128)}', space=vmem, size = 0x12000, scoped, tag = 'internal scratch']
  #allocation2 [shape = 'f32[2,64]{1,0:T(2,128)}', space=vmem, size = 0x400, scoped, tag = 'scratch operand']
  %s0 = inlined_call_operand.vmem [shape: bf16[2,32], index: 0, kind: input, shape index: {}]
  %s1 = inlined_call_operand.vmem [shape: bf16[32,64], index: 1, kind: input, shape index: {}]
  %s2 = inlined_call_operand.vmem [shape: f32[1,64], index: 2, kind: input, shape index: {}]
  %s3 = inlined_call_operand.vmem [shape: bf16[2,64], index: 3, kind: output, shape index: {}]
  %s4 = sld [smem:[#allocation0]]
  $region30: #{resnet_forward.38} parent=0
    _
  %s6 = ssub.s32 1, %s4
  %s7 = scalar_select 0, %s6, %s4
  // Predicated region
  $region2: #{resnet_forward.38} parent=0 // pred_check
    _
  $region3: #{resnet_forward.38} parent=0 // pred_check_branch
    %9 = sbr.rel (0) target = $region5
  $region4: #{resnet_forward.38} parent=0 // pred_region
    _
  $region5: #{resnet_forward.38} parent=0 // pred_fallthru
    _
  // Predicated region
  $region6: #{resnet_forward.38} parent=0 // pred_check
    _
  $region7: #{resnet_forward.38} parent=0 // pred_check_branch
    %11 = sbr.rel (0) target = $region9
  $region8: #{resnet_forward.38} parent=0 // pred_region
    _
  $region9: #{resnet_forward.38} parent=0 // pred_fallthru
    _
  // Predicated region
  $region10: #{resnet_forward.38} parent=0 // pred_check
    _
  $region11: #{resnet_forward.38} parent=0 // pred_check_branch
    %13 = sbr.rel (0) target = $region13
  $region12: #{resnet_forward.38} parent=0 // pred_region
    _
  $region13: #{resnet_forward.38} parent=0 // pred_fallthru
    _
  %p15 = scmp.eq.s32.totalorder 0, 0
  // Predicated region
  $region14: #{resnet_forward.38} parent=0 // pred_check
    %p16 = pneg %p15
  $region15: #{resnet_forward.38} parent=0 // pred_check_branch
    %18 = sbr.rel (%p16) target = $region17
  $region16: #{resnet_forward.38} parent=0 // pred_region
    %vm19 = vcmask 517120
    %20 = vst.msk [vmem:[#allocation2] sm:$0x3] %vm19, 0.0
  $region17: #{resnet_forward.38} parent=0 // pred_fallthru
    _
  %v21 = vld [vmem:[#allocation2] sm:$0x3]
  %v22 = vld [vmem:[%s0] sm:$0x1]
  %v23 = vld [vmem:[%s1] sm:$0xf]
  %v24 = vld [vmem:[%s1 + $0x4] sm:$0xf]
  %v25 = vld [vmem:[%s1 + $0x8] sm:$0xf]
  %v26 = vld [vmem:[%s1 + $0xc] sm:$0xf]
  %v31 = vunpack.c.l.b16 %v23
  %v32 = vunpack.c.l.b16 %v24
  %v33 = vunpack.c.l.b16 %v25
  %v34 = vunpack.c.l.b16 %v26
  %v35 = vpack.c.b16 %v32, %v31
  %v36 = vpack.c.b16 %v34, %v33
  %vm39 = vcmask 261120
  %v41 = vsel %vm39, %v22, 0
  %43 = vmatprep.subr.bf16.mxu0 0
  %44 = vmatpush1.bf16.msra.mxu0 0
  %45 = vmatprep.subr.bf16.mxu0 0
  %46 = vmatpush1.bf16.msra.mxu0 0
  %47 = vmatprep.subr.bf16.mxu0 0
  %48 = vmatpush1.bf16.msra.mxu0 0
  %49 = vmatprep.subr.bf16.mxu0 0
  %50 = vmatpush1.bf16.msra.mxu0 0
  %51 = vmatprep.subr.bf16.mxu0 0
  %52 = vmatpush1.bf16.msra.mxu0 0
  %53 = vmatprep.subr.bf16.mxu0 0
  %54 = vmatpush1.bf16.msra.mxu0 0
  %55 = vmatprep.subr.bf16.mxu0 0
  %56 = vmatpush1.bf16.msra.mxu0 %v36
  %57 = vmatprep.subr.bf16.mxu0 0
  %58 = vmatpush1.bf16.msra.mxu0 %v35
  %59 = vmatprep.subr.bf16.mxu0 0
  %60 = vmatpush2.bf16.msra.mxu0 0
  %61 = vmatprep.subr.bf16.mxu0 0
  %62 = vmatpush2.bf16.msra.mxu0 0
  %63 = vmatprep.subr.bf16.mxu0 0
  %64 = vmatpush2.bf16.msra.mxu0 0
  %65 = vmatprep.subr.bf16.mxu0 0
  %66 = vmatpush2.bf16.msra.mxu0 0
  %67 = vmatprep.subr.bf16.mxu0 0
  %68 = vmatpush2.bf16.msra.mxu0 0
  %69 = vmatprep.subr.bf16.mxu0 0
  %70 = vmatpush2.bf16.msra.mxu0 0
  %71 = vmatprep.subr.bf16.mxu0 0
  %72 = vmatpush2.bf16.msra.mxu0 0
  %73 = vmatprep.subr.bf16.mxu0 0
  %74 = vmatpush2.bf16.msra.mxu0 0
  %75 = vmatprep.mubr.bf16.mxu0 0
  %76 = vmatmul.mubr.bf16.gmra.mxu0 %v41
  %v77 = vpop.f32.mrf.mxu0
  %v78 = vadd.f32 0.0, %v77
  %v79 = vpop.f32.mrf.mxu0
  %v80 = vpop.f32.mrf.mxu0
  %v81 = vpop.f32.mrf.mxu0
  %82 = vdwg.mxu0
  %v83 = vadd.f32 %v21, %v78
  %vm84 = vcmask 517120
  %85 = vst.msk [vmem:[#allocation2] sm:$0x3] %vm84, %v83
  // Predicated region
  $region18: #{resnet_forward.38} parent=0 // pred_check
    %p86 = pneg %p15
  $region19: #{resnet_forward.38} parent=0 // pred_check_branch
    %88 = sbr.rel (%p86) target = $region21
  $region20: #{resnet_forward.38} parent=0 // pred_region
    %v89 = vld [vmem:[#allocation2] sm:$0x3]
    %v90 = vld [vmem:[%s2] sm:$0x1]
    %v92 = vlaneseq
    %v93 = vshrl.u32 %v92, 7
    %v94 = vsub.s32 0, %v93
    %v95 = vrot.slane %v90, %v94
    %v97 = vadd.f32 %v89, %v95
    %v98 = vpack.c.bf16 %v97, %v97
    %vm99 = vcmask 516096
    %100 = vst.msk [vmem:[%s3] sm:$0x1] %vm99, %v98
  $region21: #{resnet_forward.38} parent=0 // pred_fallthru
    _
  // Predicated region
  $region22: #{resnet_forward.38} parent=0 // pred_check
    _
  $region23: #{resnet_forward.38} parent=0 // pred_check_branch
    %102 = sbr.rel (0) target = $region25
  $region24: #{resnet_forward.38} parent=0 // pred_region
    _
  $region25: #{resnet_forward.38} parent=0 // pred_fallthru
    _
  // Predicated region
  $region26: #{resnet_forward.38} parent=0 // pred_check
    _
  $region27: #{resnet_forward.38} parent=0 // pred_check_branch
    %104 = sbr.rel (0) target = $region29
  $region28: #{resnet_forward.38} parent=0 // pred_region
    _
  $region29: #{resnet_forward.38} parent=0 // pred_fallthru
    _

// kernel: resnet_forward.39
$region0: #{resnet_forward.39}
  #allocation0 [shape = 'u32[]', space=smem, size = 0x4, offset = 0x4, fixed_abs, tag = 'smem constant byte address 0x4 - core index']
  #allocation1 [shape = 'u32[144,128]{1,0:T(1,128)}', space=vmem, size = 0x12000, scoped, tag = 'internal scratch']
  #allocation2 [shape = 'f32[2,64]{1,0:T(2,128)}', space=vmem, size = 0x400, scoped, tag = 'scratch operand']
  %s0 = inlined_call_operand.vmem [shape: bf16[2,576], index: 0, kind: input, shape index: {}]
  %s1 = inlined_call_operand.vmem [shape: bf16[576,64], index: 1, kind: input, shape index: {}]
  %s2 = inlined_call_operand.vmem [shape: f32[1,64], index: 2, kind: input, shape index: {}]
  %s3 = inlined_call_operand.vmem [shape: bf16[2,64], index: 3, kind: input, shape index: {}]
  %s4 = inlined_call_operand.vmem [shape: bf16[2,64], index: 4, kind: output, shape index: {}]
  %s5 = sld [smem:[#allocation0]]
  $region34: #{resnet_forward.39} parent=0
    _
  %s7 = ssub.s32 1, %s5
  %s8 = scalar_select 0, %s7, %s5
  // Predicated region
  $region2: #{resnet_forward.39} parent=0 // pred_check
    _
  $region3: #{resnet_forward.39} parent=0 // pred_check_branch
    %10 = sbr.rel (0) target = $region5
  $region4: #{resnet_forward.39} parent=0 // pred_region
    _
  $region5: #{resnet_forward.39} parent=0 // pred_fallthru
    _
  // Predicated region
  $region6: #{resnet_forward.39} parent=0 // pred_check
    _
  $region7: #{resnet_forward.39} parent=0 // pred_check_branch
    %12 = sbr.rel (0) target = $region9
  $region8: #{resnet_forward.39} parent=0 // pred_region
    _
  $region9: #{resnet_forward.39} parent=0 // pred_fallthru
    _
  // Predicated region
  $region10: #{resnet_forward.39} parent=0 // pred_check
    _
  $region11: #{resnet_forward.39} parent=0 // pred_check_branch
    %14 = sbr.rel (0) target = $region13
  $region12: #{resnet_forward.39} parent=0 // pred_region
    _
  $region13: #{resnet_forward.39} parent=0 // pred_fallthru
    _
  // Predicated region
  $region14: #{resnet_forward.39} parent=0 // pred_check
    _
  $region15: #{resnet_forward.39} parent=0 // pred_check_branch
    %16 = sbr.rel (0) target = $region17
  $region16: #{resnet_forward.39} parent=0 // pred_region
    _
  $region17: #{resnet_forward.39} parent=0 // pred_fallthru
    _
  %p18 = scmp.eq.s32.totalorder 0, 0
  // Predicated region
  $region18: #{resnet_forward.39} parent=0 // pred_check
    %p19 = pneg %p18
  $region19: #{resnet_forward.39} parent=0 // pred_check_branch
    %21 = sbr.rel (%p19) target = $region21
  $region20: #{resnet_forward.39} parent=0 // pred_region
    %vm22 = vcmask 517120
    %23 = vst.msk [vmem:[#allocation2] sm:$0x3] %vm22, 0.0
  $region21: #{resnet_forward.39} parent=0 // pred_fallthru
    _
  %v24 = vld [vmem:[#allocation2] sm:$0x3]
  %v25 = vld [vmem:[%s0] sm:$0x1f]
  %v26 = vld [vmem:[%s1] sm:$0xf]
  %v27 = vld [vmem:[%s1 + $0x4] sm:$0xf]
  %v28 = vld [vmem:[%s1 + $0x8] sm:$0xf]
  %v29 = vld [vmem:[%s1 + $0xc] sm:$0xf]
  %v30 = vld [vmem:[%s1 + $0x10] sm:$0xf]
  %v31 = vld [vmem:[%s1 + $0x14] sm:$0xf]
  %v32 = vld [vmem:[%s1 + $0x18] sm:$0xf]
  %v33 = vld [vmem:[%s1 + $0x1c] sm:$0xf]
  %v34 = vld [vmem:[%s1 + $0x20] sm:$0xf]
  %v35 = vld [vmem:[%s1 + $0x24] sm:$0xf]
  %v36 = vld [vmem:[%s1 + $0x28] sm:$0xf]
  %v37 = vld [vmem:[%s1 + $0x2c] sm:$0xf]
  %v38 = vld [vmem:[%s1 + $0x30] sm:$0xf]
  %v39 = vld [vmem:[%s1 + $0x34] sm:$0xf]
  %v40 = vld [vmem:[%s1 + $0x38] sm:$0xf]
  %v41 = vld [vmem:[%s1 + $0x3c] sm:$0xf]
  %v42 = vld [vmem:[%s1 + $0x40] sm:$0xf]
  %v43 = vld [vmem:[%s1 + $0x44] sm:$0xf]
  %v44 = vld [vmem:[%s1 + $0x48] sm:$0xf]
  %v45 = vld [vmem:[%s1 + $0x4c] sm:$0xf]
  %v46 = vld [vmem:[%s1 + $0x50] sm:$0xf]
  %v47 = vld [vmem:[%s1 + $0x54] sm:$0xf]
  %v48 = vld [vmem:[%s1 + $0x58] sm:$0xf]
  %v49 = vld [vmem:[%s1 + $0x5c] sm:$0xf]
  %v50 = vld [vmem:[%s1 + $0x60] sm:$0xf]
  %v51 = vld [vmem:[%s1 + $0x64] sm:$0xf]
  %v52 = vld [vmem:[%s1 + $0x68] sm:$0xf]
  %v53 = vld [vmem:[%s1 + $0x6c] sm:$0xf]
  %v54 = vld [vmem:[%s1 + $0x70] sm:$0xf]
  %v55 = vld [vmem:[%s1 + $0x74] sm:$0xf]
  %v56 = vld [vmem:[%s1 + $0x78] sm:$0xf]
  %v57 = vld [vmem:[%s1 + $0x7c] sm:$0xf]
  %v58 = vld [vmem:[%s1 + $0x80] sm:$0xf]
  %v59 = vld [vmem:[%s1 + $0x84] sm:$0xf]
  %v60 = vld [vmem:[%s1 + $0x88] sm:$0xf]
  %v61 = vld [vmem:[%s1 + $0x8c] sm:$0xf]
  %v62 = vld [vmem:[%s1 + $0x90] sm:$0xf]
  %v63 = vld [vmem:[%s1 + $0x94] sm:$0xf]
  %v64 = vld [vmem:[%s1 + $0x98] sm:$0xf]
  %v65 = vld [vmem:[%s1 + $0x9c] sm:$0xf]
  %v66 = vld [vmem:[%s1 + $0xa0] sm:$0xf]
  %v67 = vld [vmem:[%s1 + $0xa4] sm:$0xf]
  %v68 = vld [vmem:[%s1 + $0xa8] sm:$0xf]
  %v69 = vld [vmem:[%s1 + $0xac] sm:$0xf]
  %v70 = vld [vmem:[%s1 + $0xb0] sm:$0xf]
  %v71 = vld [vmem:[%s1 + $0xb4] sm:$0xf]
  %v72 = vld [vmem:[%s1 + $0xb8] sm:$0xf]
  %v73 = vld [vmem:[%s1 + $0xbc] sm:$0xf]
  %v74 = vld [vmem:[%s1 + $0xc0] sm:$0xf]
  %v75 = vld [vmem:[%s1 + $0xc4] sm:$0xf]
  %v76 = vld [vmem:[%s1 + $0xc8] sm:$0xf]
  %v77 = vld [vmem:[%s1 + $0xcc] sm:$0xf]
  %v78 = vld [vmem:[%s1 + $0xd0] sm:$0xf]
  %v79 = vld [vmem:[%s1 + $0xd4] sm:$0xf]
  %v80 = vld [vmem:[%s1 + $0xd8] sm:$0xf]
  %v81 = vld [vmem:[%s1 + $0xdc] sm:$0xf]
  %v82 = vld [vmem:[%s1 + $0xe0] sm:$0xf]
  %v83 = vld [vmem:[%s1 + $0xe4] sm:$0xf]
  %v84 = vld [vmem:[%s1 + $0xe8] sm:$0xf]
  %v85 = vld [vmem:[%s1 + $0xec] sm:$0xf]
  %v86 = vld [vmem:[%s1 + $0xf0] sm:$0xf]
  %v87 = vld [vmem:[%s1 + $0xf4] sm:$0xf]
  %v88 = vld [vmem:[%s1 + $0xf8] sm:$0xf]
  %v89 = vld [vmem:[%s1 + $0xfc] sm:$0xf]
  %v90 = vld [vmem:[%s1 + $0x100] sm:$0xf]
  %v91 = vld [vmem:[%s1 + $0x104] sm:$0xf]
  %v92 = vld [vmem:[%s1 + $0x108] sm:$0xf]
  %v93 = vld [vmem:[%s1 + $0x10c] sm:$0xf]
  %v94 = vld [vmem:[%s1 + $0x110] sm:$0xf]
  %v95 = vld [vmem:[%s1 + $0x114] sm:$0xf]
  %v96 = vld [vmem:[%s1 + $0x118] sm:$0xf]
  %v97 = vld [vmem:[%s1 + $0x11c] sm:$0xf]
  %v99 = vcombine.high %v25, %v25
  %v101 = vunpack.c.l.s4 1966171168
  %v102 = vunpack.c.0.s8 %v101
  %v103 = vlaneseq
  %v104 = vshrl.u32 %v103, 7
  %v105 = vsub.s32 %v102, %v104
  %v106 = vrot.slane %v25, %v105
  %v108 = vunpack.c.l.s4 1966171168
  %v109 = vunpack.c.0.s8 %v108
  %v110 = vlaneseq
  %v111 = vshrl.u32 %v110, 7
  %v112 = vsub.s32 %v109, %v111
  %v113 = vrot.slane %v99, %v112
  %v114 = vcombine.high %v106, %v106
  %v116 = vunpack.c.l.s4 1966171168
  %v117 = vunpack.c.0.s8 %v116
  %v118 = vlaneseq
  %v119 = vshrl.u32 %v118, 7
  %v120 = vsub.s32 %v117, %v119
  %v121 = vrot.slane %v106, %v120
  %v123 = vunpack.c.l.s4 1966171168
  %v124 = vunpack.c.0.s8 %v123
  %v125 = vlaneseq
  %v126 = vshrl.u32 %v125, 7
  %v127 = vsub.s32 %v124, %v126
  %v128 = vrot.slane %v113, %v127
  %v130 = vunpack.c.l.s4 1966171168
  %v131 = vunpack.c.0.s8 %v130
  %v132 = vlaneseq
  %v133 = vshrl.u32 %v132, 7
  %v134 = vsub.s32 %v131, %v133
  %v135 = vrot.slane %v114, %v134
  %v136 = vcombine.high %v121, %v121
  %v137 = vcombine.high %v135, %v135
  %v214 = vunpack.c.l.b16 %v26
  %v215 = vunpack.c.l.b16 %v27
  %v216 = vunpack.c.l.b16 %v28
  %v217 = vunpack.c.l.b16 %v29
  %v218 = vunpack.c.l.b16 %v30
  %v219 = vunpack.c.l.b16 %v31
  %v220 = vunpack.c.l.b16 %v32
  %v221 = vunpack.c.l.b16 %v33
  %v222 = vunpack.c.l.b16 %v34
  %v223 = vunpack.c.l.b16 %v35
  %v224 = vunpack.c.l.b16 %v36
  %v225 = vunpack.c.l.b16 %v37
  %v226 = vunpack.c.l.b16 %v38
  %v227 = vunpack.c.l.b16 %v39
  %v228 = vunpack.c.l.b16 %v40
  %v229 = vunpack.c.l.b16 %v41
  %v230 = vunpack.c.l.b16 %v42
  %v231 = vunpack.c.l.b16 %v43
  %v232 = vunpack.c.l.b16 %v44
  %v233 = vunpack.c.l.b16 %v45
  %v234 = vunpack.c.l.b16 %v46
  %v235 = vunpack.c.l.b16 %v47
  %v236 = vunpack.c.l.b16 %v48
  %v237 = vunpack.c.l.b16 %v49
  %v238 = vunpack.c.l.b16 %v50
  %v239 = vunpack.c.l.b16 %v51
  %v240 = vunpack.c.l.b16 %v52
  %v241 = vunpack.c.l.b16 %v53
  %v242 = vunpack.c.l.b16 %v54
  %v243 = vunpack.c.l.b16 %v55
  %v244 = vunpack.c.l.b16 %v56
  %v245 = vunpack.c.l.b16 %v57
  %v246 = vunpack.c.l.b16 %v58
  %v247 = vunpack.c.l.b16 %v59
  %v248 = vunpack.c.l.b16 %v60
  %v249 = vunpack.c.l.b16 %v61
  %v250 = vunpack.c.l.b16 %v62
  %v251 = vunpack.c.l.b16 %v63
  %v252 = vunpack.c.l.b16 %v64
  %v253 = vunpack.c.l.b16 %v65
  %v254 = vunpack.c.l.b16 %v66
  %v255 = vunpack.c.l.b16 %v67
  %v256 = vunpack.c.l.b16 %v68
  %v257 = vunpack.c.l.b16 %v69
  %v258 = vunpack.c.l.b16 %v70
  %v259 = vunpack.c.l.b16 %v71
  %v260 = vunpack.c.l.b16 %v72
  %v261 = vunpack.c.l.b16 %v73
  %v262 = vunpack.c.l.b16 %v74
  %v263 = vunpack.c.l.b16 %v75
  %v264 = vunpack.c.l.b16 %v76
  %v265 = vunpack.c.l.b16 %v77
  %v266 = vunpack.c.l.b16 %v78
  %v267 = vunpack.c.l.b16 %v79
  %v268 = vunpack.c.l.b16 %v80
  %v269 = vunpack.c.l.b16 %v81
  %v270 = vunpack.c.l.b16 %v82
  %v271 = vunpack.c.l.b16 %v83
  %v272 = vunpack.c.l.b16 %v84
  %v273 = vunpack.c.l.b16 %v85
  %v274 = vunpack.c.l.b16 %v86
  %v275 = vunpack.c.l.b16 %v87
  %v276 = vunpack.c.l.b16 %v88
  %v277 = vunpack.c.l.b16 %v89
  %v278 = vunpack.c.l.b16 %v90
  %v279 = vunpack.c.l.b16 %v91
  %v280 = vunpack.c.l.b16 %v92
  %v281 = vunpack.c.l.b16 %v93
  %v282 = vunpack.c.l.b16 %v94
  %v283 = vunpack.c.l.b16 %v95
  %v284 = vunpack.c.l.b16 %v96
  %v285 = vunpack.c.l.b16 %v97
  %v286 = vpack.c.b16 %v215, %v214
  %v287 = vpack.c.b16 %v217, %v216
  %v288 = vpack.c.b16 %v219, %v218
  %v289 = vpack.c.b16 %v221, %v220
  %v290 = vpack.c.b16 %v223, %v222
  %v291 = vpack.c.b16 %v225, %v224
  %v292 = vpack.c.b16 %v227, %v226
  %v293 = vpack.c.b16 %v229, %v228
  %v294 = vpack.c.b16 %v231, %v230
  %v295 = vpack.c.b16 %v233, %v232
  %v296 = vpack.c.b16 %v235, %v234
  %v297 = vpack.c.b16 %v237, %v236
  %v298 = vpack.c.b16 %v239, %v238
  %v299 = vpack.c.b16 %v241, %v240
  %v300 = vpack.c.b16 %v243, %v242
  %v301 = vpack.c.b16 %v245, %v244
  %v302 = vpack.c.b16 %v247, %v246
  %v303 = vpack.c.b16 %v249, %v248
  %v304 = vpack.c.b16 %v251, %v250
  %v305 = vpack.c.b16 %v253, %v252
  %v306 = vpack.c.b16 %v255, %v254
  %v307 = vpack.c.b16 %v257, %v256
  %v308 = vpack.c.b16 %v259, %v258
  %v309 = vpack.c.b16 %v261, %v260
  %v310 = vpack.c.b16 %v263, %v262
  %v311 = vpack.c.b16 %v265, %v264
  %v312 = vpack.c.b16 %v267, %v266
  %v313 = vpack.c.b16 %v269, %v268
  %v314 = vpack.c.b16 %v271, %v270
  %v315 = vpack.c.b16 %v273, %v272
  %v316 = vpack.c.b16 %v275, %v274
  %v317 = vpack.c.b16 %v277, %v276
  %v318 = vpack.c.b16 %v279, %v278
  %v319 = vpack.c.b16 %v281, %v280
  %v320 = vpack.c.b16 %v283, %v282
  %v321 = vpack.c.b16 %v285, %v284
  %vm358 = vcmask 523264
  %v360 = vsel %vm358, %v128, 0
  %362 = vmatprep.subr.bf16.mxu0 0
  %363 = vmatpush1.bf16.msra.mxu0 %v293
  %364 = vmatprep.subr.bf16.mxu0 0
  %365 = vmatpush1.bf16.msra.mxu0 %v292
  %366 = vmatprep.subr.bf16.mxu0 0
  %367 = vmatpush1.bf16.msra.mxu0 %v291
  %368 = vmatprep.subr.bf16.mxu0 0
  %369 = vmatpush1.bf16.msra.mxu0 %v290
  %370 = vmatprep.subr.bf16.mxu0 0
  %371 = vmatpush1.bf16.msra.mxu0 %v289
  %372 = vmatprep.subr.bf16.mxu0 0
  %373 = vmatpush1.bf16.msra.mxu0 %v288
  %374 = vmatprep.subr.bf16.mxu0 0
  %375 = vmatpush1.bf16.msra.mxu0 %v287
  %376 = vmatprep.subr.bf16.mxu0 0
  %377 = vmatpush1.bf16.msra.mxu0 %v286
  %378 = vmatprep.subr.bf16.mxu0 0
  %379 = vmatpush2.bf16.msra.mxu0 %v301
  %380 = vmatprep.subr.bf16.mxu0 0
  %381 = vmatpush2.bf16.msra.mxu0 %v300
  %382 = vmatprep.subr.bf16.mxu0 0
  %383 = vmatpush2.bf16.msra.mxu0 %v299
  %384 = vmatprep.subr.bf16.mxu0 0
  %385 = vmatpush2.bf16.msra.mxu0 %v298
  %386 = vmatprep.subr.bf16.mxu0 0
  %387 = vmatpush2.bf16.msra.mxu0 %v297
  %388 = vmatprep.subr.bf16.mxu0 0
  %389 = vmatpush2.bf16.msra.mxu0 %v296
  %390 = vmatprep.subr.bf16.mxu0 0
  %391 = vmatpush2.bf16.msra.mxu0 %v295
  %392 = vmatprep.subr.bf16.mxu0 0
  %393 = vmatpush2.bf16.msra.mxu0 %v294
  %394 = vmatprep.mubr.bf16.mxu0 %v135
  %395 = vmatmul.mubr.bf16.gmra.mxu0 %v121
  %v396 = vpop.f32.mrf.mxu0
  %v397 = vadd.f32 0.0, %v396
  %v398 = vpop.f32.mrf.mxu0
  %v399 = vpop.f32.mrf.mxu0
  %v400 = vpop.f32.mrf.mxu0
  %401 = vdwg.mxu0
  %402 = vmatprep.subr.bf16.mxu0 0
  %403 = vmatpush1.bf16.msra.mxu0 %v309
  %404 = vmatprep.subr.bf16.mxu0 0
  %405 = vmatpush1.bf16.msra.mxu0 %v308
  %406 = vmatprep.subr.bf16.mxu0 0
  %407 = vmatpush1.bf16.msra.mxu0 %v307
  %408 = vmatprep.subr.bf16.mxu0 0
  %409 = vmatpush1.bf16.msra.mxu0 %v306
  %410 = vmatprep.subr.bf16.mxu0 0
  %411 = vmatpush1.bf16.msra.mxu0 %v305
  %412 = vmatprep.subr.bf16.mxu0 0
  %413 = vmatpush1.bf16.msra.mxu0 %v304
  %414 = vmatprep.subr.bf16.mxu0 0
  %415 = vmatpush1.bf16.msra.mxu0 %v303
  %416 = vmatprep.subr.bf16.mxu0 0
  %417 = vmatpush1.bf16.msra.mxu0 %v302
  %418 = vmatprep.subr.bf16.mxu0 0
  %419 = vmatpush2.bf16.msra.mxu0 %v317
  %420 = vmatprep.subr.bf16.mxu0 0
  %421 = vmatpush2.bf16.msra.mxu0 %v316
  %422 = vmatprep.subr.bf16.mxu0 0
  %423 = vmatpush2.bf16.msra.mxu0 %v315
  %424 = vmatprep.subr.bf16.mxu0 0
  %425 = vmatpush2.bf16.msra.mxu0 %v314
  %426 = vmatprep.subr.bf16.mxu0 0
  %427 = vmatpush2.bf16.msra.mxu0 %v313
  %428 = vmatprep.subr.bf16.mxu0 0
  %429 = vmatpush2.bf16.msra.mxu0 %v312
  %430 = vmatprep.subr.bf16.mxu0 0
  %431 = vmatpush2.bf16.msra.mxu0 %v311
  %432 = vmatprep.subr.bf16.mxu0 0
  %433 = vmatpush2.bf16.msra.mxu0 %v310
  %434 = vmatprep.mubr.bf16.mxu0 %v137
  %435 = vmatmul.mubr.bf16.gmra.mxu0 %v136
  %v436 = vpop.f32.mrf.mxu0
  %v437 = vadd.f32 %v397, %v436
  %v438 = vpop.f32.mrf.mxu0
  %v439 = vpop.f32.mrf.mxu0
  %v440 = vpop.f32.mrf.mxu0
  %441 = vdwg.mxu0
  %442 = vmatprep.subr.bf16.mxu0 0
  %443 = vmatpush1.bf16.msra.mxu0 0
  %444 = vmatprep.subr.bf16.mxu0 0
  %445 = vmatpush1.bf16.msra.mxu0 0
  %446 = vmatprep.subr.bf16.mxu0 0
  %447 = vmatpush1.bf16.msra.mxu0 0
  %448 = vmatprep.subr.bf16.mxu0 0
  %449 = vmatpush1.bf16.msra.mxu0 0
  %450 = vmatprep.subr.bf16.mxu0 0
  %451 = vmatpush1.bf16.msra.mxu0 %v321
  %452 = vmatprep.subr.bf16.mxu0 0
  %453 = vmatpush1.bf16.msra.mxu0 %v320
  %454 = vmatprep.subr.bf16.mxu0 0
  %455 = vmatpush1.bf16.msra.mxu0 %v319
  %456 = vmatprep.subr.bf16.mxu0 0
  %457 = vmatpush1.bf16.msra.mxu0 %v318
  %458 = vmatprep.subr.bf16.mxu0 0
  %459 = vmatpush2.bf16.msra.mxu0 0
  %460 = vmatprep.subr.bf16.mxu0 0
  %461 = vmatpush2.bf16.msra.mxu0 0
  %462 = vmatprep.subr.bf16.mxu0 0
  %463 = vmatpush2.bf16.msra.mxu0 0
  %464 = vmatprep.subr.bf16.mxu0 0
  %465 = vmatpush2.bf16.msra.mxu0 0
  %466 = vmatprep.subr.bf16.mxu0 0
  %467 = vmatpush2.bf16.msra.mxu0 0
  %468 = vmatprep.subr.bf16.mxu0 0
  %469 = vmatpush2.bf16.msra.mxu0 0
  %470 = vmatprep.subr.bf16.mxu0 0
  %471 = vmatpush2.bf16.msra.mxu0 0
  %472 = vmatprep.subr.bf16.mxu0 0
  %473 = vmatpush2.bf16.msra.mxu0 0
  %474 = vmatprep.mubr.bf16.mxu0 0
  %475 = vmatmul.mubr.bf16.gmra.mxu0 %v360
  %v476 = vpop.f32.mrf.mxu0
  %v477 = vadd.f32 %v437, %v476
  %v478 = vpop.f32.mrf.mxu0
  %v479 = vpop.f32.mrf.mxu0
  %v480 = vpop.f32.mrf.mxu0
  %481 = vdwg.mxu0
  %v482 = vadd.f32 %v24, %v477
  %vm483 = vcmask 517120
  %484 = vst.msk [vmem:[#allocation2] sm:$0x3] %vm483, %v482
  // Predicated region
  $region22: #{resnet_forward.39} parent=0 // pred_check
    %p485 = pneg %p18
  $region23: #{resnet_forward.39} parent=0 // pred_check_branch
    %487 = sbr.rel (%p485) target = $region25
  $region24: #{resnet_forward.39} parent=0 // pred_region
    %v488 = vld [vmem:[#allocation2] sm:$0x3]
    %v489 = vld [vmem:[%s2] sm:$0x1]
    %v491 = vlaneseq
    %v492 = vshrl.u32 %v491, 7
    %v493 = vsub.s32 0, %v492
    %v494 = vrot.slane %v489, %v493
    %v496 = vadd.f32 %v488, %v494
    %v497 = vld [vmem:[%s3] sm:$0x1]
    %v498 = vunpack.c.l.bf16 %v497
    %v499 = vadd.f32 %v496, %v498
    %v500 = vmax.f32 %v499, 0.0
    %v501 = vpack.c.bf16 %v500, %v500
    %vm502 = vcmask 516096
    %503 = vst.msk [vmem:[%s4] sm:$0x1] %vm502, %v501
  $region25: #{resnet_forward.39} parent=0 // pred_fallthru
    _
  // Predicated region
  $region26: #{resnet_forward.39} parent=0 // pred_check
    _
  $region27: #{resnet_forward.39} parent=0 // pred_check_branch
    %505 = sbr.rel (0) target = $region29
  $region28: #{resnet_forward.39} parent=0 // pred_region
    _
  $region29: #{resnet_forward.39} parent=0 // pred_fallthru
    _
  // Predicated region
  $region30: #{resnet_forward.39} parent=0 // pred_check
    _
  $region31: #{resnet_forward.39} parent=0 // pred_check_branch
    %507 = sbr.rel (0) target = $region33
  $region32: #{resnet_forward.39} parent=0 // pred_region
    _
  $region33: #{resnet_forward.39} parent=0 // pred_fallthru
    _

// kernel: resnet_forward.40
$region0: #{resnet_forward.40}
  #allocation0 [shape = 'u32[]', space=smem, size = 0x4, offset = 0x4, fixed_abs, tag = 'smem constant byte address 0x4 - core index']
  #allocation1 [shape = 'u32[144,128]{1,0:T(1,128)}', space=vmem, size = 0x12000, scoped, tag = 'internal scratch']
  #allocation2 [shape = 'f32[2,64]{1,0:T(2,128)}', space=vmem, size = 0x400, scoped, tag = 'scratch operand']
  %s0 = inlined_call_operand.vmem [shape: bf16[2,576], index: 0, kind: input, shape index: {}]
  %s1 = inlined_call_operand.vmem [shape: bf16[576,64], index: 1, kind: input, shape index: {}]
  %s2 = inlined_call_operand.vmem [shape: f32[1,64], index: 2, kind: input, shape index: {}]
  %s3 = inlined_call_operand.vmem [shape: bf16[2,64], index: 3, kind: output, shape index: {}]
  %s4 = sld [smem:[#allocation0]]
  $region30: #{resnet_forward.40} parent=0
    _
  %s6 = ssub.s32 1, %s4
  %s7 = scalar_select 0, %s6, %s4
  // Predicated region
  $region2: #{resnet_forward.40} parent=0 // pred_check
    _
  $region3: #{resnet_forward.40} parent=0 // pred_check_branch
    %9 = sbr.rel (0) target = $region5
  $region4: #{resnet_forward.40} parent=0 // pred_region
    _
  $region5: #{resnet_forward.40} parent=0 // pred_fallthru
    _
  // Predicated region
  $region6: #{resnet_forward.40} parent=0 // pred_check
    _
  $region7: #{resnet_forward.40} parent=0 // pred_check_branch
    %11 = sbr.rel (0) target = $region9
  $region8: #{resnet_forward.40} parent=0 // pred_region
    _
  $region9: #{resnet_forward.40} parent=0 // pred_fallthru
    _
  // Predicated region
  $region10: #{resnet_forward.40} parent=0 // pred_check
    _
  $region11: #{resnet_forward.40} parent=0 // pred_check_branch
    %13 = sbr.rel (0) target = $region13
  $region12: #{resnet_forward.40} parent=0 // pred_region
    _
  $region13: #{resnet_forward.40} parent=0 // pred_fallthru
    _
  %p15 = scmp.eq.s32.totalorder 0, 0
  // Predicated region
  $region14: #{resnet_forward.40} parent=0 // pred_check
    %p16 = pneg %p15
  $region15: #{resnet_forward.40} parent=0 // pred_check_branch
    %18 = sbr.rel (%p16) target = $region17
  $region16: #{resnet_forward.40} parent=0 // pred_region
    %vm19 = vcmask 517120
    %20 = vst.msk [vmem:[#allocation2] sm:$0x3] %vm19, 0.0
  $region17: #{resnet_forward.40} parent=0 // pred_fallthru
    _
  %v21 = vld [vmem:[#allocation2] sm:$0x3]
  %v22 = vld [vmem:[%s0] sm:$0x1f]
  %v23 = vld [vmem:[%s1] sm:$0xf]
  %v24 = vld [vmem:[%s1 + $0x4] sm:$0xf]
  %v25 = vld [vmem:[%s1 + $0x8] sm:$0xf]
  %v26 = vld [vmem:[%s1 + $0xc] sm:$0xf]
  %v27 = vld [vmem:[%s1 + $0x10] sm:$0xf]
  %v28 = vld [vmem:[%s1 + $0x14] sm:$0xf]
  %v29 = vld [vmem:[%s1 + $0x18] sm:$0xf]
  %v30 = vld [vmem:[%s1 + $0x1c] sm:$0xf]
  %v31 = vld [vmem:[%s1 + $0x20] sm:$0xf]
  %v32 = vld [vmem:[%s1 + $0x24] sm:$0xf]
  %v33 = vld [vmem:[%s1 + $0x28] sm:$0xf]
  %v34 = vld [vmem:[%s1 + $0x2c] sm:$0xf]
  %v35 = vld [vmem:[%s1 + $0x30] sm:$0xf]
  %v36 = vld [vmem:[%s1 + $0x34] sm:$0xf]
  %v37 = vld [vmem:[%s1 + $0x38] sm:$0xf]
  %v38 = vld [vmem:[%s1 + $0x3c] sm:$0xf]
  %v39 = vld [vmem:[%s1 + $0x40] sm:$0xf]
  %v40 = vld [vmem:[%s1 + $0x44] sm:$0xf]
  %v41 = vld [vmem:[%s1 + $0x48] sm:$0xf]
  %v42 = vld [vmem:[%s1 + $0x4c] sm:$0xf]
  %v43 = vld [vmem:[%s1 + $0x50] sm:$0xf]
  %v44 = vld [vmem:[%s1 + $0x54] sm:$0xf]
  %v45 = vld [vmem:[%s1 + $0x58] sm:$0xf]
  %v46 = vld [vmem:[%s1 + $0x5c] sm:$0xf]
  %v47 = vld [vmem:[%s1 + $0x60] sm:$0xf]
  %v48 = vld [vmem:[%s1 + $0x64] sm:$0xf]
  %v49 = vld [vmem:[%s1 + $0x68] sm:$0xf]
  %v50 = vld [vmem:[%s1 + $0x6c] sm:$0xf]
  %v51 = vld [vmem:[%s1 + $0x70] sm:$0xf]
  %v52 = vld [vmem:[%s1 + $0x74] sm:$0xf]
  %v53 = vld [vmem:[%s1 + $0x78] sm:$0xf]
  %v54 = vld [vmem:[%s1 + $0x7c] sm:$0xf]
  %v55 = vld [vmem:[%s1 + $0x80] sm:$0xf]
  %v56 = vld [vmem:[%s1 + $0x84] sm:$0xf]
  %v57 = vld [vmem:[%s1 + $0x88] sm:$0xf]
  %v58 = vld [vmem:[%s1 + $0x8c] sm:$0xf]
  %v59 = vld [vmem:[%s1 + $0x90] sm:$0xf]
  %v60 = vld [vmem:[%s1 + $0x94] sm:$0xf]
  %v61 = vld [vmem:[%s1 + $0x98] sm:$0xf]
  %v62 = vld [vmem:[%s1 + $0x9c] sm:$0xf]
  %v63 = vld [vmem:[%s1 + $0xa0] sm:$0xf]
  %v64 = vld [vmem:[%s1 + $0xa4] sm:$0xf]
  %v65 = vld [vmem:[%s1 + $0xa8] sm:$0xf]
  %v66 = vld [vmem:[%s1 + $0xac] sm:$0xf]
  %v67 = vld [vmem:[%s1 + $0xb0] sm:$0xf]
  %v68 = vld [vmem:[%s1 + $0xb4] sm:$0xf]
  %v69 = vld [vmem:[%s1 + $0xb8] sm:$0xf]
  %v70 = vld [vmem:[%s1 + $0xbc] sm:$0xf]
  %v71 = vld [vmem:[%s1 + $0xc0] sm:$0xf]
  %v72 = vld [vmem:[%s1 + $0xc4] sm:$0xf]
  %v73 = vld [vmem:[%s1 + $0xc8] sm:$0xf]
  %v74 = vld [vmem:[%s1 + $0xcc] sm:$0xf]
  %v75 = vld [vmem:[%s1 + $0xd0] sm:$0xf]
  %v76 = vld [vmem:[%s1 + $0xd4] sm:$0xf]
  %v77 = vld [vmem:[%s1 + $0xd8] sm:$0xf]
  %v78 = vld [vmem:[%s1 + $0xdc] sm:$0xf]
  %v79 = vld [vmem:[%s1 + $0xe0] sm:$0xf]
  %v80 = vld [vmem:[%s1 + $0xe4] sm:$0xf]
  %v81 = vld [vmem:[%s1 + $0xe8] sm:$0xf]
  %v82 = vld [vmem:[%s1 + $0xec] sm:$0xf]
  %v83 = vld [vmem:[%s1 + $0xf0] sm:$0xf]
  %v84 = vld [vmem:[%s1 + $0xf4] sm:$0xf]
  %v85 = vld [vmem:[%s1 + $0xf8] sm:$0xf]
  %v86 = vld [vmem:[%s1 + $0xfc] sm:$0xf]
  %v87 = vld [vmem:[%s1 + $0x100] sm:$0xf]
  %v88 = vld [vmem:[%s1 + $0x104] sm:$0xf]
  %v89 = vld [vmem:[%s1 + $0x108] sm:$0xf]
  %v90 = vld [vmem:[%s1 + $0x10c] sm:$0xf]
  %v91 = vld [vmem:[%s1 + $0x110] sm:$0xf]
  %v92 = vld [vmem:[%s1 + $0x114] sm:$0xf]
  %v93 = vld [vmem:[%s1 + $0x118] sm:$0xf]
  %v94 = vld [vmem:[%s1 + $0x11c] sm:$0xf]
  %v96 = vcombine.high %v22, %v22
  %v98 = vunpack.c.l.s4 1966171168
  %v99 = vunpack.c.0.s8 %v98
  %v100 = vlaneseq
  %v101 = vshrl.u32 %v100, 7
  %v102 = vsub.s32 %v99, %v101
  %v103 = vrot.slane %v22, %v102
  %v105 = vunpack.c.l.s4 1966171168
  %v106 = vunpack.c.0.s8 %v105
  %v107 = vlaneseq
  %v108 = vshrl.u32 %v107, 7
  %v109 = vsub.s32 %v106, %v108
  %v110 = vrot.slane %v96, %v109
  %v111 = vcombine.high %v103, %v103
  %v113 = vunpack.c.l.s4 1966171168
  %v114 = vunpack.c.0.s8 %v113
  %v115 = vlaneseq
  %v116 = vshrl.u32 %v115, 7
  %v117 = vsub.s32 %v114, %v116
  %v118 = vrot.slane %v103, %v117
  %v120 = vunpack.c.l.s4 1966171168
  %v121 = vunpack.c.0.s8 %v120
  %v122 = vlaneseq
  %v123 = vshrl.u32 %v122, 7
  %v124 = vsub.s32 %v121, %v123
  %v125 = vrot.slane %v110, %v124
  %v127 = vunpack.c.l.s4 1966171168
  %v128 = vunpack.c.0.s8 %v127
  %v129 = vlaneseq
  %v130 = vshrl.u32 %v129, 7
  %v131 = vsub.s32 %v128, %v130
  %v132 = vrot.slane %v111, %v131
  %v133 = vcombine.high %v118, %v118
  %v134 = vcombine.high %v132, %v132
  %v211 = vunpack.c.l.b16 %v23
  %v212 = vunpack.c.l.b16 %v24
  %v213 = vunpack.c.l.b16 %v25
  %v214 = vunpack.c.l.b16 %v26
  %v215 = vunpack.c.l.b16 %v27
  %v216 = vunpack.c.l.b16 %v28
  %v217 = vunpack.c.l.b16 %v29
  %v218 = vunpack.c.l.b16 %v30
  %v219 = vunpack.c.l.b16 %v31
  %v220 = vunpack.c.l.b16 %v32
  %v221 = vunpack.c.l.b16 %v33
  %v222 = vunpack.c.l.b16 %v34
  %v223 = vunpack.c.l.b16 %v35
  %v224 = vunpack.c.l.b16 %v36
  %v225 = vunpack.c.l.b16 %v37
  %v226 = vunpack.c.l.b16 %v38
  %v227 = vunpack.c.l.b16 %v39
  %v228 = vunpack.c.l.b16 %v40
  %v229 = vunpack.c.l.b16 %v41
  %v230 = vunpack.c.l.b16 %v42
  %v231 = vunpack.c.l.b16 %v43
  %v232 = vunpack.c.l.b16 %v44
  %v233 = vunpack.c.l.b16 %v45
  %v234 = vunpack.c.l.b16 %v46
  %v235 = vunpack.c.l.b16 %v47
  %v236 = vunpack.c.l.b16 %v48
  %v237 = vunpack.c.l.b16 %v49
  %v238 = vunpack.c.l.b16 %v50
  %v239 = vunpack.c.l.b16 %v51
  %v240 = vunpack.c.l.b16 %v52
  %v241 = vunpack.c.l.b16 %v53
  %v242 = vunpack.c.l.b16 %v54
  %v243 = vunpack.c.l.b16 %v55
  %v244 = vunpack.c.l.b16 %v56
  %v245 = vunpack.c.l.b16 %v57
  %v246 = vunpack.c.l.b16 %v58
  %v247 = vunpack.c.l.b16 %v59
  %v248 = vunpack.c.l.b16 %v60
  %v249 = vunpack.c.l.b16 %v61
  %v250 = vunpack.c.l.b16 %v62
  %v251 = vunpack.c.l.b16 %v63
  %v252 = vunpack.c.l.b16 %v64
  %v253 = vunpack.c.l.b16 %v65
  %v254 = vunpack.c.l.b16 %v66
  %v255 = vunpack.c.l.b16 %v67
  %v256 = vunpack.c.l.b16 %v68
  %v257 = vunpack.c.l.b16 %v69
  %v258 = vunpack.c.l.b16 %v70
  %v259 = vunpack.c.l.b16 %v71
  %v260 = vunpack.c.l.b16 %v72
  %v261 = vunpack.c.l.b16 %v73
  %v262 = vunpack.c.l.b16 %v74
  %v263 = vunpack.c.l.b16 %v75
  %v264 = vunpack.c.l.b16 %v76
  %v265 = vunpack.c.l.b16 %v77
  %v266 = vunpack.c.l.b16 %v78
  %v267 = vunpack.c.l.b16 %v79
  %v268 = vunpack.c.l.b16 %v80
  %v269 = vunpack.c.l.b16 %v81
  %v270 = vunpack.c.l.b16 %v82
  %v271 = vunpack.c.l.b16 %v83
  %v272 = vunpack.c.l.b16 %v84
  %v273 = vunpack.c.l.b16 %v85
  %v274 = vunpack.c.l.b16 %v86
  %v275 = vunpack.c.l.b16 %v87
  %v276 = vunpack.c.l.b16 %v88
  %v277 = vunpack.c.l.b16 %v89
  %v278 = vunpack.c.l.b16 %v90
  %v279 = vunpack.c.l.b16 %v91
  %v280 = vunpack.c.l.b16 %v92
  %v281 = vunpack.c.l.b16 %v93
  %v282 = vunpack.c.l.b16 %v94
  %v283 = vpack.c.b16 %v212, %v211
  %v284 = vpack.c.b16 %v214, %v213
  %v285 = vpack.c.b16 %v216, %v215
  %v286 = vpack.c.b16 %v218, %v217
  %v287 = vpack.c.b16 %v220, %v219
  %v288 = vpack.c.b16 %v222, %v221
  %v289 = vpack.c.b16 %v224, %v223
  %v290 = vpack.c.b16 %v226, %v225
  %v291 = vpack.c.b16 %v228, %v227
  %v292 = vpack.c.b16 %v230, %v229
  %v293 = vpack.c.b16 %v232, %v231
  %v294 = vpack.c.b16 %v234, %v233
  %v295 = vpack.c.b16 %v236, %v235
  %v296 = vpack.c.b16 %v238, %v237
  %v297 = vpack.c.b16 %v240, %v239
  %v298 = vpack.c.b16 %v242, %v241
  %v299 = vpack.c.b16 %v244, %v243
  %v300 = vpack.c.b16 %v246, %v245
  %v301 = vpack.c.b16 %v248, %v247
  %v302 = vpack.c.b16 %v250, %v249
  %v303 = vpack.c.b16 %v252, %v251
  %v304 = vpack.c.b16 %v254, %v253
  %v305 = vpack.c.b16 %v256, %v255
  %v306 = vpack.c.b16 %v258, %v257
  %v307 = vpack.c.b16 %v260, %v259
  %v308 = vpack.c.b16 %v262, %v261
  %v309 = vpack.c.b16 %v264, %v263
  %v310 = vpack.c.b16 %v266, %v265
  %v311 = vpack.c.b16 %v268, %v267
  %v312 = vpack.c.b16 %v270, %v269
  %v313 = vpack.c.b16 %v272, %v271
  %v314 = vpack.c.b16 %v274, %v273
  %v315 = vpack.c.b16 %v276, %v275
  %v316 = vpack.c.b16 %v278, %v277
  %v317 = vpack.c.b16 %v280, %v279
  %v318 = vpack.c.b16 %v282, %v281
  %vm355 = vcmask 523264
  %v357 = vsel %vm355, %v125, 0
  %359 = vmatprep.subr.bf16.mxu0 0
  %360 = vmatpush1.bf16.msra.mxu0 %v290
  %361 = vmatprep.subr.bf16.mxu0 0
  %362 = vmatpush1.bf16.msra.mxu0 %v289
  %363 = vmatprep.subr.bf16.mxu0 0
  %364 = vmatpush1.bf16.msra.mxu0 %v288
  %365 = vmatprep.subr.bf16.mxu0 0
  %366 = vmatpush1.bf16.msra.mxu0 %v287
  %367 = vmatprep.subr.bf16.mxu0 0
  %368 = vmatpush1.bf16.msra.mxu0 %v286
  %369 = vmatprep.subr.bf16.mxu0 0
  %370 = vmatpush1.bf16.msra.mxu0 %v285
  %371 = vmatprep.subr.bf16.mxu0 0
  %372 = vmatpush1.bf16.msra.mxu0 %v284
  %373 = vmatprep.subr.bf16.mxu0 0
  %374 = vmatpush1.bf16.msra.mxu0 %v283
  %375 = vmatprep.subr.bf16.mxu0 0
  %376 = vmatpush2.bf16.msra.mxu0 %v298
  %377 = vmatprep.subr.bf16.mxu0 0
  %378 = vmatpush2.bf16.msra.mxu0 %v297
  %379 = vmatprep.subr.bf16.mxu0 0
  %380 = vmatpush2.bf16.msra.mxu0 %v296
  %381 = vmatprep.subr.bf16.mxu0 0
  %382 = vmatpush2.bf16.msra.mxu0 %v295
  %383 = vmatprep.subr.bf16.mxu0 0
  %384 = vmatpush2.bf16.msra.mxu0 %v294
  %385 = vmatprep.subr.bf16.mxu0 0
  %386 = vmatpush2.bf16.msra.mxu0 %v293
  %387 = vmatprep.subr.bf16.mxu0 0
  %388 = vmatpush2.bf16.msra.mxu0 %v292
  %389 = vmatprep.subr.bf16.mxu0 0
  %390 = vmatpush2.bf16.msra.mxu0 %v291
  %391 = vmatprep.mubr.bf16.mxu0 %v132
  %392 = vmatmul.mubr.bf16.gmra.mxu0 %v118
  %v393 = vpop.f32.mrf.mxu0
  %v394 = vadd.f32 0.0, %v393
  %v395 = vpop.f32.mrf.mxu0
  %v396 = vpop.f32.mrf.mxu0
  %v397 = vpop.f32.mrf.mxu0
  %398 = vdwg.mxu0
  %399 = vmatprep.subr.bf16.mxu0 0
  %400 = vmatpush1.bf16.msra.mxu0 %v306
  %401 = vmatprep.subr.bf16.mxu0 0
  %402 = vmatpush1.bf16.msra.mxu0 %v305
  %403 = vmatprep.subr.bf16.mxu0 0
  %404 = vmatpush1.bf16.msra.mxu0 %v304
  %405 = vmatprep.subr.bf16.mxu0 0
  %406 = vmatpush1.bf16.msra.mxu0 %v303
  %407 = vmatprep.subr.bf16.mxu0 0
  %408 = vmatpush1.bf16.msra.mxu0 %v302
  %409 = vmatprep.subr.bf16.mxu0 0
  %410 = vmatpush1.bf16.msra.mxu0 %v301
  %411 = vmatprep.subr.bf16.mxu0 0
  %412 = vmatpush1.bf16.msra.mxu0 %v300
  %413 = vmatprep.subr.bf16.mxu0 0
  %414 = vmatpush1.bf16.msra.mxu0 %v299
  %415 = vmatprep.subr.bf16.mxu0 0
  %416 = vmatpush2.bf16.msra.mxu0 %v314
  %417 = vmatprep.subr.bf16.mxu0 0
  %418 = vmatpush2.bf16.msra.mxu0 %v313
  %419 = vmatprep.subr.bf16.mxu0 0
  %420 = vmatpush2.bf16.msra.mxu0 %v312
  %421 = vmatprep.subr.bf16.mxu0 0
  %422 = vmatpush2.bf16.msra.mxu0 %v311
  %423 = vmatprep.subr.bf16.mxu0 0
  %424 = vmatpush2.bf16.msra.mxu0 %v310
  %425 = vmatprep.subr.bf16.mxu0 0
  %426 = vmatpush2.bf16.msra.mxu0 %v309
  %427 = vmatprep.subr.bf16.mxu0 0
  %428 = vmatpush2.bf16.msra.mxu0 %v308
  %429 = vmatprep.subr.bf16.mxu0 0
  %430 = vmatpush2.bf16.msra.mxu0 %v307
  %431 = vmatprep.mubr.bf16.mxu0 %v134
  %432 = vmatmul.mubr.bf16.gmra.mxu0 %v133
  %v433 = vpop.f32.mrf.mxu0
  %v434 = vadd.f32 %v394, %v433
  %v435 = vpop.f32.mrf.mxu0
  %v436 = vpop.f32.mrf.mxu0
  %v437 = vpop.f32.mrf.mxu0
  %438 = vdwg.mxu0
  %439 = vmatprep.subr.bf16.mxu0 0
  %440 = vmatpush1.bf16.msra.mxu0 0
  %441 = vmatprep.subr.bf16.mxu0 0
  %442 = vmatpush1.bf16.msra.mxu0 0
  %443 = vmatprep.subr.bf16.mxu0 0
  %444 = vmatpush1.bf16.msra.mxu0 0
  %445 = vmatprep.subr.bf16.mxu0 0
  %446 = vmatpush1.bf16.msra.mxu0 0
  %447 = vmatprep.subr.bf16.mxu0 0
  %448 = vmatpush1.bf16.msra.mxu0 %v318
  %449 = vmatprep.subr.bf16.mxu0 0
  %450 = vmatpush1.bf16.msra.mxu0 %v317
  %451 = vmatprep.subr.bf16.mxu0 0
  %452 = vmatpush1.bf16.msra.mxu0 %v316
  %453 = vmatprep.subr.bf16.mxu0 0
  %454 = vmatpush1.bf16.msra.mxu0 %v315
  %455 = vmatprep.subr.bf16.mxu0 0
  %456 = vmatpush2.bf16.msra.mxu0 0
  %457 = vmatprep.subr.bf16.mxu0 0
  %458 = vmatpush2.bf16.msra.mxu0 0
  %459 = vmatprep.subr.bf16.mxu0 0
  %460 = vmatpush2.bf16.msra.mxu0 0
  %461 = vmatprep.subr.bf16.mxu0 0
  %462 = vmatpush2.bf16.msra.mxu0 0
  %463 = vmatprep.subr.bf16.mxu0 0
  %464 = vmatpush2.bf16.msra.mxu0 0
  %465 = vmatprep.subr.bf16.mxu0 0
  %466 = vmatpush2.bf16.msra.mxu0 0
  %467 = vmatprep.subr.bf16.mxu0 0
  %468 = vmatpush2.bf16.msra.mxu0 0
  %469 = vmatprep.subr.bf16.mxu0 0
  %470 = vmatpush2.bf16.msra.mxu0 0
  %471 = vmatprep.mubr.bf16.mxu0 0
  %472 = vmatmul.mubr.bf16.gmra.mxu0 %v357
  %v473 = vpop.f32.mrf.mxu0
  %v474 = vadd.f32 %v434, %v473
  %v475 = vpop.f32.mrf.mxu0
  %v476 = vpop.f32.mrf.mxu0
  %v477 = vpop.f32.mrf.mxu0
  %478 = vdwg.mxu0
  %v479 = vadd.f32 %v21, %v474
  %vm480 = vcmask 517120
  %481 = vst.msk [vmem:[#allocation2] sm:$0x3] %vm480, %v479
  // Predicated region
  $region18: #{resnet_forward.40} parent=0 // pred_check
    %p482 = pneg %p15
  $region19: #{resnet_forward.40} parent=0 // pred_check_branch
    %484 = sbr.rel (%p482) target = $region21
  $region20: #{resnet_forward.40} parent=0 // pred_region
    %v485 = vld [vmem:[#allocation2] sm:$0x3]
    %v486 = vld [vmem:[%s2] sm:$0x1]
    %v488 = vlaneseq
    %v489 = vshrl.u32 %v488, 7
    %v490 = vsub.s32 0, %v489
    %v491 = vrot.slane %v486, %v490
    %v493 = vadd.f32 %v485, %v491
    %v494 = vmax.f32 %v493, 0.0
    %v495 = vpack.c.bf16 %v494, %v494
    %vm496 = vcmask 516096
    %497 = vst.msk [vmem:[%s3] sm:$0x1] %vm496, %v495
  $region21: #{resnet_forward.40} parent=0 // pred_fallthru
    _
  // Predicated region
  $region22: #{resnet_forward.40} parent=0 // pred_check
    _
  $region23: #{resnet_forward.40} parent=0 // pred_check_branch
    %499 = sbr.rel (0) target = $region25
  $region24: #{resnet_forward.40} parent=0 // pred_region
    _
  $region25: #{resnet_forward.40} parent=0 // pred_fallthru
    _
  // Predicated region
  $region26: #{resnet_forward.40} parent=0 // pred_check
    _
  $region27: #{resnet_forward.40} parent=0 // pred_check_branch
    %501 = sbr.rel (0) target = $region29
  $region28: #{resnet_forward.40} parent=0 // pred_region
    _
  $region29: #{resnet_forward.40} parent=0 // pred_fallthru
    _

</llo_original>
